<compile_context>
chip_gen: v6e
topology: v6e:2x2x1
jax: 0.10.0
libtpu: 0.0.40
codegen_flags: <defaults>
</compile_context>

<pallas_src>
import numpy as np
import jax
import jax.numpy as jnp
from jax import lax
from jax.experimental import pallas as pl
from jax.experimental.pallas import tpu as pltpu

_LANE = 128


def _sigmoid(x):
    # tanh-form sigmoid: identical formula in kernel and reference; keeps the
    # transcendental on the EUP slot and avoids the f32 divide.
    return 0.5 * jnp.tanh(0.5 * x) + 0.5


# ---------------------------------------------------------------------------------
# Single fused kernel: BiLSTM recurrence + hidden2label + CRF Viterbi + backtrack.
# All operands are tiny, so every array is a single full-size VMEM block and every
# loop is fully unrolled at trace time.
# ---------------------------------------------------------------------------------
def _pooler_kernel(x_ref, wih_ref, bias_ref, whhf_ref, whhb_ref,
                   wl_ref, bl_ref, trans_ref, start_ref, end_ref,
                   paths_ref, emis_ref):
    T, B, H = x_ref.shape
    Hh = whhf_ref.shape[0]
    G = 4 * Hh
    L = trans_ref.shape[0]
    Lp = wl_ref.shape[1]
    f32 = jnp.float32

    # --- 1. Batched input projection for BOTH directions (+ fused gate biases):
    #         one big MXU call, one broadcast add -----------------------------------
    x2d = x_ref[...].reshape(T * B, H)
    xp = jnp.dot(x2d, wih_ref[...], preferred_element_type=f32) + bias_ref[...]
    xp3 = xp.reshape(T, B, 2 * G)                                  # (T, B, 8*Hh)

    whhf = whhf_ref[...]
    whhb = whhb_ref[...]

    def cell(pre_t, h, c, whh):
        # Gate columns pre-ordered host-side as (i, f, o, g): one contiguous
        # sigmoid slab [:, :3*Hh] and one tanh slab [:, 3*Hh:].  Biases are
        # already folded into pre_t.
        gates = pre_t + jnp.dot(h, whh, preferred_element_type=f32)
        s = _sigmoid(gates[:, :3 * Hh])
        i_g = s[:, :Hh]
        f_g = s[:, Hh:2 * Hh]
        o_g = s[:, 2 * Hh:3 * Hh]
        g_g = jnp.tanh(gates[:, 3 * Hh:])
        c_new = f_g * c + i_g * g_g
        h_new = o_g * jnp.tanh(c_new)
        return h_new, c_new

    h0 = jnp.zeros((B, Hh), f32)
    c0 = jnp.zeros((B, Hh), f32)

    # --- 2. Forward recurrence (fully unrolled; T is tiny and static) ------------
    h, c = h0, c0
    hf = []
    for t in range(T):
        h, c = cell(xp3[t, :, :G], h, c, whhf)
        hf.append(h)

    # --- 3. Backward recurrence ----------------------------------------------------
    h, c = h0, c0
    hb = [None] * T
    for t in range(T - 1, -1, -1):
        h, c = cell(xp3[t, :, G:], h, c, whhb)
        hb[t] = h

    # --- 4. hidden2label: single lane-padded (T*B, H) x (H, 128) matmul -----------
    HF = jnp.concatenate(hf, axis=0)                               # (T*B, Hh), t-major
    HB = jnp.concatenate(hb, axis=0)                               # (T*B, Hh), t-major
    OUT = jnp.concatenate([HF, HB], axis=1)                        # (T*B, H)
    emis = (jnp.dot(OUT, wl_ref[...], preferred_element_type=f32)
            + bl_ref[...])                                         # (T*B, Lp), cols >= L are 0
    emis_ref[...] = emis.reshape(T, B, Lp)                         # dense 128-lane store

    # --- 5. CRF Viterbi (torchcrf semantics: CRF batch = T, CRF seq = B) ----------
    e3 = emis.reshape(T, B, Lp)
    trans_bc = jnp.broadcast_to(trans_ref[...][None, :, :], (T, L, L))   # hoisted
    iota_prev = lax.broadcasted_iota(jnp.int32, (T, L, L), 1)            # hoisted
    lane_iota = lax.broadcasted_iota(jnp.int32, (T, L), 1)               # hoisted

    score = start_ref[...] + e3[:, 0, :L]                          # (T, L)
    hist = []
    for j in range(1, B):
        # Emission term is constant along the previous-tag axis, so it is added
        # AFTER the max/argmax (halves the broadcast work per step).
        cand = score[:, :, None] + trans_bc                        # (T, Lprev, Lcur)
        nxt = jnp.max(cand, axis=1)                                # (T, L)
        # First-occurrence argmax over the previous-tag axis using max+min only
        # (jnp.argmax over a middle axis is avoided for lowering robustness).
        bp = jnp.min(jnp.where(cand == nxt[:, None, :], iota_prev, L), axis=1)
        hist.append(bp)
        score = nxt + e3[:, j, :L]
    score = score + end_ref[...]

    # --- 6. Backtrack in-kernel; write only the (T, B) int32 path table -----------
    m = jnp.max(score, axis=-1, keepdims=True)
    best = jnp.min(jnp.where(score == m, lane_iota, L), axis=-1, keepdims=True)  # (T,1)
    cols = [best]
    for bp in reversed(hist):
        best = jnp.sum(jnp.where(lane_iota == best, bp, 0), axis=-1, keepdims=True)
        cols.append(best)
    paths_ref[...] = jnp.concatenate(cols[::-1], axis=1).astype(jnp.int32)       # (T, B)


# ---------------------------------------------------------------------------------
# Host-side wrapper: weight re-layout + one pallas_call.
# ---------------------------------------------------------------------------------
def _gate_reorder(w):
    # PyTorch LSTM gate order along dim 0 is (i, f, g, o); regroup to (i, f, o, g)
    # so the kernel applies sigmoid to one contiguous slab.
    i, f, g, o = jnp.split(w, 4, axis=0)
    return jnp.concatenate([i, f, o, g], axis=0)


def _pooler_pallas(x, p):
    T, B, H = x.shape
    Hh = H // 2
    L = p["w_lab"].shape[0]
    Lp = ((L + _LANE - 1) // _LANE) * _LANE       # lane-pad label dim for dense stores

    # Input projection for both directions in one (H, 8*Hh) matrix; gate biases of
    # both directions fused into a single (1, 8*Hh) row added once to x @ Wih.
    wih = jnp.concatenate([_gate_reorder(p["w_ih_f"]).T,
                           _gate_reorder(p["w_ih_b"]).T], axis=1)        # (H, 8*Hh)
    bias = jnp.concatenate([_gate_reorder(p["b_ih_f"] + p["b_hh_f"]),
                            _gate_reorder(p["b_ih_b"] + p["b_hh_b"])]).reshape(1, 8 * Hh)
    whhf = _gate_reorder(p["w_hh_f"]).T                                   # (Hh, 4*Hh)
    whhb = _gate_reorder(p["w_hh_b"]).T

    # hidden2label fused into one lane-padded (H, Lp) matrix (fwd rows on top,
    # bwd rows below -- matches the in-kernel lane concat [HF | HB]).
    wl = jnp.zeros((H, Lp), jnp.float32).at[:, :L].set(p["w_lab"].T)
    bl = jnp.zeros((1, Lp), jnp.float32).at[:, :L].set(p["b_lab"])

    vmem = pl.BlockSpec(memory_space=pltpu.MemorySpace.VMEM)
    paths, emis_pad = pl.pallas_call(
        _pooler_kernel,
        out_shape=(jax.ShapeDtypeStruct((T, B), jnp.int32),
                   jax.ShapeDtypeStruct((T, B, Lp), jnp.float32)),
        in_specs=[vmem] * 10,
        out_specs=(vmem, vmem),
    )(x, wih, bias, whhf, whhb, wl, bl,
      p["crf_trans"], p["crf_start"].reshape(1, L), p["crf_end"].reshape(1, L))
    return paths, emis_pad[..., :L]


_pooler_pallas_jit = jax.jit(_pooler_pallas)


def pooler_forward(x, params):
    """Equivalent of Pooler.forward(last_hidden_states, labels=None) -> (T, B) int32."""
    return _pooler_pallas_jit(x, params)[0]


# ---------------------------------------------------------------------------------
# Pure-JAX reference (for correctness checking only).
# ---------------------------------------------------------------------------------
def reference_forward(x, p):
    T, B, H = x.shape
    Hh = H // 2
    hi = lax.Precision.HIGHEST

    def run_dir(wih, whh, bih, bhh, reverse):
        def cell(carry, xt):
            h, c = carry
            gates = (jnp.dot(xt, wih.T, precision=hi) + bih
                     + jnp.dot(h, whh.T, precision=hi) + bhh)
            i = _sigmoid(gates[:, :Hh]); f = _sigmoid(gates[:, Hh:2 * Hh])
            g = jnp.tanh(gates[:, 2 * Hh:3 * Hh]); o = _sigmoid(gates[:, 3 * Hh:])
            c = f * c + i * g
            h = o * jnp.tanh(c)
            return (h, c), h
        xs = x[::-1] if reverse else x
        _, hs = lax.scan(cell, (jnp.zeros((B, Hh)), jnp.zeros((B, Hh))), xs)
        return hs[::-1] if reverse else hs

    hf = run_dir(p["w_ih_f"], p["w_hh_f"], p["b_ih_f"], p["b_hh_f"], False)
    hb = run_dir(p["w_ih_b"], p["w_hh_b"], p["b_ih_b"], p["b_hh_b"], True)
    out = jnp.concatenate([hf, hb], axis=-1)                               # (T, B, H)
    emis = jnp.dot(out, p["w_lab"].T, precision=hi) + p["b_lab"]           # (T, B, L)

    e = jnp.transpose(emis, (1, 0, 2))                                     # (B, T, L)
    score = p["crf_start"] + e[0]
    hist = []
    for j in range(1, e.shape[0]):
        cand = score[:, :, None] + p["crf_trans"][None] + e[j][:, None, :]
        score = cand.max(axis=1)
        hist.append(jnp.argmax(cand, axis=1))
    score = score + p["crf_end"]
    best = jnp.argmax(score, axis=-1)
    tags = [best]
    for hmat in reversed(hist):
        best = jnp.take_along_axis(hmat, best[:, None], axis=-1)[:, 0]
        tags.append(best)
    tags = jnp.stack(tags[::-1], axis=0)                                   # (B, T)
    return emis, tags.T                                                    # (T,B,L), (T,B)


if __name__ == "__main__":
    T, B, H, L = 10, 8, 32, 5        # seq_len, batch, hidden_size, num_labels
    Hh = H // 2

    keys = jax.random.split(jax.random.PRNGKey(0), 14)

    def u(k, shape, lo=-0.1, hi=0.1):
        return jax.random.uniform(k, shape, jnp.float32, lo, hi)

    params = {
        "w_ih_f": u(keys[0], (4 * Hh, H)),
        "w_hh_f": u(keys[1], (4 * Hh, Hh)),
        "b_ih_f": u(keys[2], (4 * Hh,)),
        "b_hh_f": u(keys[3], (4 * Hh,)),
        "w_ih_b": u(keys[4], (4 * Hh, H)),
        "w_hh_b": u(keys[5], (4 * Hh, Hh)),
        "b_ih_b": u(keys[6], (4 * Hh,)),
        "b_hh_b": u(keys[7], (4 * Hh,)),
        "w_lab":  u(keys[8], (L, H)),
        "b_lab":  u(keys[9], (L,)),
        "crf_start": u(keys[10], (L,)),
        "crf_end":   u(keys[11], (L,)),
        "crf_trans": u(keys[12], (L, L)),
    }
    x = jax.random.normal(keys[13], (T, B, H), jnp.float32)

    # Run the fused Pallas kernel (paths + emissions for verification).
    best_paths, emis_kernel = _pooler_pallas_jit(x, params)
    jax.block_until_ready(best_paths)

    # Correctness check against the pure-JAX reference.
    emis_ref, paths_ref = reference_forward(x, params)
    np.testing.assert_allclose(np.asarray(emis_kernel), np.asarray(emis_ref),
                               rtol=2e-4, atol=2e-4)
    assert best_paths.shape == (T, B)
    assert np.array_equal(np.asarray(best_paths), np.asarray(paths_ref))

    print("KERNEL_OK")
</pallas_src>

<mosaic_0001>
module attributes {stable_mosaic.version = 11 : i64} {
  func.func @_pooler_kernel(%arg0: memref<10x8x32xf32, #tpu.memory_space<vmem>>, %arg1: memref<32x128xf32, #tpu.memory_space<vmem>>, %arg2: memref<1x128xf32, #tpu.memory_space<vmem>>, %arg3: memref<16x64xf32, #tpu.memory_space<vmem>>, %arg4: memref<16x64xf32, #tpu.memory_space<vmem>>, %arg5: memref<32x128xf32, #tpu.memory_space<vmem>>, %arg6: memref<1x128xf32, #tpu.memory_space<vmem>>, %arg7: memref<5x5xf32, #tpu.memory_space<vmem>>, %arg8: memref<1x5xf32, #tpu.memory_space<vmem>>, %arg9: memref<1x5xf32, #tpu.memory_space<vmem>>, %arg10: memref<10x8xi32, #tpu.memory_space<vmem>>, %arg11: memref<10x8x128xf32, #tpu.memory_space<vmem>>) attributes {dimension_semantics = [], scalar_prefetch = 0 : i64, scratch_operands = 0 : i64, tpu.core_type = #tpu.core_type<tc>} {
    %c0 = arith.constant 0 : index
    %c0_0 = arith.constant 0 : index
    %c0_1 = arith.constant 0 : index
    %0 = vector.load %arg0[%c0, %c0_0, %c0_1] : memref<10x8x32xf32, #tpu.memory_space<vmem>>, vector<10x8x32xf32>
    %1 = vector.shape_cast %0 : vector<10x8x32xf32> to vector<80x32xf32>
    %c0_2 = arith.constant 0 : index
    %c0_3 = arith.constant 0 : index
    %2 = vector.load %arg1[%c0_2, %c0_3] : memref<32x128xf32, #tpu.memory_space<vmem>>, vector<32x128xf32>
    %cst = arith.constant dense<0.000000e+00> : vector<80x128xf32>
    %3 = tpu.matmul %1, %2, %cst {dimension_numbers = #tpu.dot_dimension_numbers<[1], [0], [0], [1], [0, 0, 1, 1], [], []>} : vector<80x32xf32>, vector<32x128xf32>, vector<80x128xf32> -> vector<80x128xf32>
    %c0_4 = arith.constant 0 : index
    %c0_5 = arith.constant 0 : index
    %4 = vector.load %arg2[%c0_4, %c0_5] : memref<1x128xf32, #tpu.memory_space<vmem>>, vector<1x128xf32>
    %5 = vector.broadcast %4 : vector<1x128xf32> to vector<80x128xf32>
    %6 = arith.addf %3, %5 : vector<80x128xf32>
    %7 = vector.shape_cast %6 : vector<80x128xf32> to vector<10x8x128xf32>
    %c0_6 = arith.constant 0 : index
    %c0_7 = arith.constant 0 : index
    %8 = vector.load %arg3[%c0_6, %c0_7] : memref<16x64xf32, #tpu.memory_space<vmem>>, vector<16x64xf32>
    %c0_8 = arith.constant 0 : index
    %c0_9 = arith.constant 0 : index
    %9 = vector.load %arg4[%c0_8, %c0_9] : memref<16x64xf32, #tpu.memory_space<vmem>>, vector<16x64xf32>
    %cst_10 = arith.constant 0.000000e+00 : f32
    %10 = vector.broadcast %cst_10 : f32 to vector<8x16xf32>
    %cst_11 = arith.constant 0.000000e+00 : f32
    %11 = vector.broadcast %cst_11 : f32 to vector<8x16xf32>
    %12 = vector.extract_strided_slice %7 {offsets = [0, 0, 0], sizes = [1, 8, 64], strides = [1, 1, 1]} : vector<10x8x128xf32> to vector<1x8x64xf32>
    %13 = vector.shape_cast %12 : vector<1x8x64xf32> to vector<8x64xf32>
    %cst_12 = arith.constant dense<0.000000e+00> : vector<8x64xf32>
    %14 = tpu.matmul %10, %8, %cst_12 {dimension_numbers = #tpu.dot_dimension_numbers<[1], [0], [0], [1], [0, 0, 1, 1], [], []>} : vector<8x16xf32>, vector<16x64xf32>, vector<8x64xf32> -> vector<8x64xf32>
    %15 = arith.addf %13, %14 : vector<8x64xf32>
    %16 = vector.extract_strided_slice %15 {offsets = [0, 0], sizes = [8, 48], strides = [1, 1]} : vector<8x64xf32> to vector<8x48xf32>
    %cst_13 = arith.constant 5.000000e-01 : f32
    %17 = vector.broadcast %cst_13 : f32 to vector<8x48xf32>
    %18 = arith.mulf %17, %16 : vector<8x48xf32>
    %19 = math.tanh %18 : vector<8x48xf32>
    %cst_14 = arith.constant 5.000000e-01 : f32
    %20 = vector.broadcast %cst_14 : f32 to vector<8x48xf32>
    %21 = arith.mulf %20, %19 : vector<8x48xf32>
    %cst_15 = arith.constant 5.000000e-01 : f32
    %22 = vector.broadcast %cst_15 : f32 to vector<8x48xf32>
    %23 = arith.addf %21, %22 : vector<8x48xf32>
    %24 = vector.extract_strided_slice %23 {offsets = [0, 0], sizes = [8, 16], strides = [1, 1]} : vector<8x48xf32> to vector<8x16xf32>
    %25 = vector.extract_strided_slice %23 {offsets = [0, 16], sizes = [8, 16], strides = [1, 1]} : vector<8x48xf32> to vector<8x16xf32>
    %26 = vector.extract_strided_slice %23 {offsets = [0, 32], sizes = [8, 16], strides = [1, 1]} : vector<8x48xf32> to vector<8x16xf32>
    %27 = vector.extract_strided_slice %15 {offsets = [0, 48], sizes = [8, 16], strides = [1, 1]} : vector<8x64xf32> to vector<8x16xf32>
    %28 = math.tanh %27 : vector<8x16xf32>
    %29 = arith.mulf %25, %11 : vector<8x16xf32>
    %30 = arith.mulf %24, %28 : vector<8x16xf32>
    %31 = arith.addf %29, %30 : vector<8x16xf32>
    %32 = math.tanh %31 : vector<8x16xf32>
    %33 = arith.mulf %26, %32 : vector<8x16xf32>
    %34 = vector.extract_strided_slice %7 {offsets = [1, 0, 0], sizes = [1, 8, 64], strides = [1, 1, 1]} : vector<10x8x128xf32> to vector<1x8x64xf32>
    %35 = vector.shape_cast %34 : vector<1x8x64xf32> to vector<8x64xf32>
    %cst_16 = arith.constant dense<0.000000e+00> : vector<8x64xf32>
    %36 = tpu.matmul %33, %8, %cst_16 {dimension_numbers = #tpu.dot_dimension_numbers<[1], [0], [0], [1], [0, 0, 1, 1], [], []>} : vector<8x16xf32>, vector<16x64xf32>, vector<8x64xf32> -> vector<8x64xf32>
    %37 = arith.addf %35, %36 : vector<8x64xf32>
    %38 = vector.extract_strided_slice %37 {offsets = [0, 0], sizes = [8, 48], strides = [1, 1]} : vector<8x64xf32> to vector<8x48xf32>
    %cst_17 = arith.constant 5.000000e-01 : f32
    %39 = vector.broadcast %cst_17 : f32 to vector<8x48xf32>
    %40 = arith.mulf %39, %38 : vector<8x48xf32>
    %41 = math.tanh %40 : vector<8x48xf32>
    %cst_18 = arith.constant 5.000000e-01 : f32
    %42 = vector.broadcast %cst_18 : f32 to vector<8x48xf32>
    %43 = arith.mulf %42, %41 : vector<8x48xf32>
    %cst_19 = arith.constant 5.000000e-01 : f32
    %44 = vector.broadcast %cst_19 : f32 to vector<8x48xf32>
    %45 = arith.addf %43, %44 : vector<8x48xf32>
    %46 = vector.extract_strided_slice %45 {offsets = [0, 0], sizes = [8, 16], strides = [1, 1]} : vector<8x48xf32> to vector<8x16xf32>
    %47 = vector.extract_strided_slice %45 {offsets = [0, 16], sizes = [8, 16], strides = [1, 1]} : vector<8x48xf32> to vector<8x16xf32>
    %48 = vector.extract_strided_slice %45 {offsets = [0, 32], sizes = [8, 16], strides = [1, 1]} : vector<8x48xf32> to vector<8x16xf32>
    %49 = vector.extract_strided_slice %37 {offsets = [0, 48], sizes = [8, 16], strides = [1, 1]} : vector<8x64xf32> to vector<8x16xf32>
    %50 = math.tanh %49 : vector<8x16xf32>
    %51 = arith.mulf %47, %31 : vector<8x16xf32>
    %52 = arith.mulf %46, %50 : vector<8x16xf32>
    %53 = arith.addf %51, %52 : vector<8x16xf32>
    %54 = math.tanh %53 : vector<8x16xf32>
    %55 = arith.mulf %48, %54 : vector<8x16xf32>
    %56 = vector.extract_strided_slice %7 {offsets = [2, 0, 0], sizes = [1, 8, 64], strides = [1, 1, 1]} : vector<10x8x128xf32> to vector<1x8x64xf32>
    %57 = vector.shape_cast %56 : vector<1x8x64xf32> to vector<8x64xf32>
    %cst_20 = arith.constant dense<0.000000e+00> : vector<8x64xf32>
    %58 = tpu.matmul %55, %8, %cst_20 {dimension_numbers = #tpu.dot_dimension_numbers<[1], [0], [0], [1], [0, 0, 1, 1], [], []>} : vector<8x16xf32>, vector<16x64xf32>, vector<8x64xf32> -> vector<8x64xf32>
    %59 = arith.addf %57, %58 : vector<8x64xf32>
    %60 = vector.extract_strided_slice %59 {offsets = [0, 0], sizes = [8, 48], strides = [1, 1]} : vector<8x64xf32> to vector<8x48xf32>
    %cst_21 = arith.constant 5.000000e-01 : f32
    %61 = vector.broadcast %cst_21 : f32 to vector<8x48xf32>
    %62 = arith.mulf %61, %60 : vector<8x48xf32>
    %63 = math.tanh %62 : vector<8x48xf32>
    %cst_22 = arith.constant 5.000000e-01 : f32
    %64 = vector.broadcast %cst_22 : f32 to vector<8x48xf32>
    %65 = arith.mulf %64, %63 : vector<8x48xf32>
    %cst_23 = arith.constant 5.000000e-01 : f32
    %66 = vector.broadcast %cst_23 : f32 to vector<8x48xf32>
    %67 = arith.addf %65, %66 : vector<8x48xf32>
    %68 = vector.extract_strided_slice %67 {offsets = [0, 0], sizes = [8, 16], strides = [1, 1]} : vector<8x48xf32> to vector<8x16xf32>
    %69 = vector.extract_strided_slice %67 {offsets = [0, 16], sizes = [8, 16], strides = [1, 1]} : vector<8x48xf32> to vector<8x16xf32>
    %70 = vector.extract_strided_slice %67 {offsets = [0, 32], sizes = [8, 16], strides = [1, 1]} : vector<8x48xf32> to vector<8x16xf32>
    %71 = vector.extract_strided_slice %59 {offsets = [0, 48], sizes = [8, 16], strides = [1, 1]} : vector<8x64xf32> to vector<8x16xf32>
    %72 = math.tanh %71 : vector<8x16xf32>
    %73 = arith.mulf %69, %53 : vector<8x16xf32>
    %74 = arith.mulf %68, %72 : vector<8x16xf32>
    %75 = arith.addf %73, %74 : vector<8x16xf32>
    %76 = math.tanh %75 : vector<8x16xf32>
    %77 = arith.mulf %70, %76 : vector<8x16xf32>
    %78 = vector.extract_strided_slice %7 {offsets = [3, 0, 0], sizes = [1, 8, 64], strides = [1, 1, 1]} : vector<10x8x128xf32> to vector<1x8x64xf32>
    %79 = vector.shape_cast %78 : vector<1x8x64xf32> to vector<8x64xf32>
    %cst_24 = arith.constant dense<0.000000e+00> : vector<8x64xf32>
    %80 = tpu.matmul %77, %8, %cst_24 {dimension_numbers = #tpu.dot_dimension_numbers<[1], [0], [0], [1], [0, 0, 1, 1], [], []>} : vector<8x16xf32>, vector<16x64xf32>, vector<8x64xf32> -> vector<8x64xf32>
    %81 = arith.addf %79, %80 : vector<8x64xf32>
    %82 = vector.extract_strided_slice %81 {offsets = [0, 0], sizes = [8, 48], strides = [1, 1]} : vector<8x64xf32> to vector<8x48xf32>
    %cst_25 = arith.constant 5.000000e-01 : f32
    %83 = vector.broadcast %cst_25 : f32 to vector<8x48xf32>
    %84 = arith.mulf %83, %82 : vector<8x48xf32>
    %85 = math.tanh %84 : vector<8x48xf32>
    %cst_26 = arith.constant 5.000000e-01 : f32
    %86 = vector.broadcast %cst_26 : f32 to vector<8x48xf32>
    %87 = arith.mulf %86, %85 : vector<8x48xf32>
    %cst_27 = arith.constant 5.000000e-01 : f32
    %88 = vector.broadcast %cst_27 : f32 to vector<8x48xf32>
    %89 = arith.addf %87, %88 : vector<8x48xf32>
    %90 = vector.extract_strided_slice %89 {offsets = [0, 0], sizes = [8, 16], strides = [1, 1]} : vector<8x48xf32> to vector<8x16xf32>
    %91 = vector.extract_strided_slice %89 {offsets = [0, 16], sizes = [8, 16], strides = [1, 1]} : vector<8x48xf32> to vector<8x16xf32>
    %92 = vector.extract_strided_slice %89 {offsets = [0, 32], sizes = [8, 16], strides = [1, 1]} : vector<8x48xf32> to vector<8x16xf32>
    %93 = vector.extract_strided_slice %81 {offsets = [0, 48], sizes = [8, 16], strides = [1, 1]} : vector<8x64xf32> to vector<8x16xf32>
    %94 = math.tanh %93 : vector<8x16xf32>
    %95 = arith.mulf %91, %75 : vector<8x16xf32>
    %96 = arith.mulf %90, %94 : vector<8x16xf32>
    %97 = arith.addf %95, %96 : vector<8x16xf32>
    %98 = math.tanh %97 : vector<8x16xf32>
    %99 = arith.mulf %92, %98 : vector<8x16xf32>
    %100 = vector.extract_strided_slice %7 {offsets = [4, 0, 0], sizes = [1, 8, 64], strides = [1, 1, 1]} : vector<10x8x128xf32> to vector<1x8x64xf32>
    %101 = vector.shape_cast %100 : vector<1x8x64xf32> to vector<8x64xf32>
    %cst_28 = arith.constant dense<0.000000e+00> : vector<8x64xf32>
    %102 = tpu.matmul %99, %8, %cst_28 {dimension_numbers = #tpu.dot_dimension_numbers<[1], [0], [0], [1], [0, 0, 1, 1], [], []>} : vector<8x16xf32>, vector<16x64xf32>, vector<8x64xf32> -> vector<8x64xf32>
    %103 = arith.addf %101, %102 : vector<8x64xf32>
    %104 = vector.extract_strided_slice %103 {offsets = [0, 0], sizes = [8, 48], strides = [1, 1]} : vector<8x64xf32> to vector<8x48xf32>
    %cst_29 = arith.constant 5.000000e-01 : f32
    %105 = vector.broadcast %cst_29 : f32 to vector<8x48xf32>
    %106 = arith.mulf %105, %104 : vector<8x48xf32>
    %107 = math.tanh %106 : vector<8x48xf32>
    %cst_30 = arith.constant 5.000000e-01 : f32
    %108 = vector.broadcast %cst_30 : f32 to vector<8x48xf32>
    %109 = arith.mulf %108, %107 : vector<8x48xf32>
    %cst_31 = arith.constant 5.000000e-01 : f32
    %110 = vector.broadcast %cst_31 : f32 to vector<8x48xf32>
    %111 = arith.addf %109, %110 : vector<8x48xf32>
    %112 = vector.extract_strided_slice %111 {offsets = [0, 0], sizes = [8, 16], strides = [1, 1]} : vector<8x48xf32> to vector<8x16xf32>
    %113 = vector.extract_strided_slice %111 {offsets = [0, 16], sizes = [8, 16], strides = [1, 1]} : vector<8x48xf32> to vector<8x16xf32>
    %114 = vector.extract_strided_slice %111 {offsets = [0, 32], sizes = [8, 16], strides = [1, 1]} : vector<8x48xf32> to vector<8x16xf32>
    %115 = vector.extract_strided_slice %103 {offsets = [0, 48], sizes = [8, 16], strides = [1, 1]} : vector<8x64xf32> to vector<8x16xf32>
    %116 = math.tanh %115 : vector<8x16xf32>
    %117 = arith.mulf %113, %97 : vector<8x16xf32>
    %118 = arith.mulf %112, %116 : vector<8x16xf32>
    %119 = arith.addf %117, %118 : vector<8x16xf32>
    %120 = math.tanh %119 : vector<8x16xf32>
    %121 = arith.mulf %114, %120 : vector<8x16xf32>
    %122 = vector.extract_strided_slice %7 {offsets = [5, 0, 0], sizes = [1, 8, 64], strides = [1, 1, 1]} : vector<10x8x128xf32> to vector<1x8x64xf32>
    %123 = vector.shape_cast %122 : vector<1x8x64xf32> to vector<8x64xf32>
    %cst_32 = arith.constant dense<0.000000e+00> : vector<8x64xf32>
    %124 = tpu.matmul %121, %8, %cst_32 {dimension_numbers = #tpu.dot_dimension_numbers<[1], [0], [0], [1], [0, 0, 1, 1], [], []>} : vector<8x16xf32>, vector<16x64xf32>, vector<8x64xf32> -> vector<8x64xf32>
    %125 = arith.addf %123, %124 : vector<8x64xf32>
    %126 = vector.extract_strided_slice %125 {offsets = [0, 0], sizes = [8, 48], strides = [1, 1]} : vector<8x64xf32> to vector<8x48xf32>
    %cst_33 = arith.constant 5.000000e-01 : f32
    %127 = vector.broadcast %cst_33 : f32 to vector<8x48xf32>
    %128 = arith.mulf %127, %126 : vector<8x48xf32>
    %129 = math.tanh %128 : vector<8x48xf32>
    %cst_34 = arith.constant 5.000000e-01 : f32
    %130 = vector.broadcast %cst_34 : f32 to vector<8x48xf32>
    %131 = arith.mulf %130, %129 : vector<8x48xf32>
    %cst_35 = arith.constant 5.000000e-01 : f32
    %132 = vector.broadcast %cst_35 : f32 to vector<8x48xf32>
    %133 = arith.addf %131, %132 : vector<8x48xf32>
    %134 = vector.extract_strided_slice %133 {offsets = [0, 0], sizes = [8, 16], strides = [1, 1]} : vector<8x48xf32> to vector<8x16xf32>
    %135 = vector.extract_strided_slice %133 {offsets = [0, 16], sizes = [8, 16], strides = [1, 1]} : vector<8x48xf32> to vector<8x16xf32>
    %136 = vector.extract_strided_slice %133 {offsets = [0, 32], sizes = [8, 16], strides = [1, 1]} : vector<8x48xf32> to vector<8x16xf32>
    %137 = vector.extract_strided_slice %125 {offsets = [0, 48], sizes = [8, 16], strides = [1, 1]} : vector<8x64xf32> to vector<8x16xf32>
    %138 = math.tanh %137 : vector<8x16xf32>
    %139 = arith.mulf %135, %119 : vector<8x16xf32>
    %140 = arith.mulf %134, %138 : vector<8x16xf32>
    %141 = arith.addf %139, %140 : vector<8x16xf32>
    %142 = math.tanh %141 : vector<8x16xf32>
    %143 = arith.mulf %136, %142 : vector<8x16xf32>
    %144 = vector.extract_strided_slice %7 {offsets = [6, 0, 0], sizes = [1, 8, 64], strides = [1, 1, 1]} : vector<10x8x128xf32> to vector<1x8x64xf32>
    %145 = vector.shape_cast %144 : vector<1x8x64xf32> to vector<8x64xf32>
    %cst_36 = arith.constant dense<0.000000e+00> : vector<8x64xf32>
    %146 = tpu.matmul %143, %8, %cst_36 {dimension_numbers = #tpu.dot_dimension_numbers<[1], [0], [0], [1], [0, 0, 1, 1], [], []>} : vector<8x16xf32>, vector<16x64xf32>, vector<8x64xf32> -> vector<8x64xf32>
    %147 = arith.addf %145, %146 : vector<8x64xf32>
    %148 = vector.extract_strided_slice %147 {offsets = [0, 0], sizes = [8, 48], strides = [1, 1]} : vector<8x64xf32> to vector<8x48xf32>
    %cst_37 = arith.constant 5.000000e-01 : f32
    %149 = vector.broadcast %cst_37 : f32 to vector<8x48xf32>
    %150 = arith.mulf %149, %148 : vector<8x48xf32>
    %151 = math.tanh %150 : vector<8x48xf32>
    %cst_38 = arith.constant 5.000000e-01 : f32
    %152 = vector.broadcast %cst_38 : f32 to vector<8x48xf32>
    %153 = arith.mulf %152, %151 : vector<8x48xf32>
    %cst_39 = arith.constant 5.000000e-01 : f32
    %154 = vector.broadcast %cst_39 : f32 to vector<8x48xf32>
    %155 = arith.addf %153, %154 : vector<8x48xf32>
    %156 = vector.extract_strided_slice %155 {offsets = [0, 0], sizes = [8, 16], strides = [1, 1]} : vector<8x48xf32> to vector<8x16xf32>
    %157 = vector.extract_strided_slice %155 {offsets = [0, 16], sizes = [8, 16], strides = [1, 1]} : vector<8x48xf32> to vector<8x16xf32>
    %158 = vector.extract_strided_slice %155 {offsets = [0, 32], sizes = [8, 16], strides = [1, 1]} : vector<8x48xf32> to vector<8x16xf32>
    %159 = vector.extract_strided_slice %147 {offsets = [0, 48], sizes = [8, 16], strides = [1, 1]} : vector<8x64xf32> to vector<8x16xf32>
    %160 = math.tanh %159 : vector<8x16xf32>
    %161 = arith.mulf %157, %141 : vector<8x16xf32>
    %162 = arith.mulf %156, %160 : vector<8x16xf32>
    %163 = arith.addf %161, %162 : vector<8x16xf32>
    %164 = math.tanh %163 : vector<8x16xf32>
    %165 = arith.mulf %158, %164 : vector<8x16xf32>
    %166 = vector.extract_strided_slice %7 {offsets = [7, 0, 0], sizes = [1, 8, 64], strides = [1, 1, 1]} : vector<10x8x128xf32> to vector<1x8x64xf32>
    %167 = vector.shape_cast %166 : vector<1x8x64xf32> to vector<8x64xf32>
    %cst_40 = arith.constant dense<0.000000e+00> : vector<8x64xf32>
    %168 = tpu.matmul %165, %8, %cst_40 {dimension_numbers = #tpu.dot_dimension_numbers<[1], [0], [0], [1], [0, 0, 1, 1], [], []>} : vector<8x16xf32>, vector<16x64xf32>, vector<8x64xf32> -> vector<8x64xf32>
    %169 = arith.addf %167, %168 : vector<8x64xf32>
    %170 = vector.extract_strided_slice %169 {offsets = [0, 0], sizes = [8, 48], strides = [1, 1]} : vector<8x64xf32> to vector<8x48xf32>
    %cst_41 = arith.constant 5.000000e-01 : f32
    %171 = vector.broadcast %cst_41 : f32 to vector<8x48xf32>
    %172 = arith.mulf %171, %170 : vector<8x48xf32>
    %173 = math.tanh %172 : vector<8x48xf32>
    %cst_42 = arith.constant 5.000000e-01 : f32
    %174 = vector.broadcast %cst_42 : f32 to vector<8x48xf32>
    %175 = arith.mulf %174, %173 : vector<8x48xf32>
    %cst_43 = arith.constant 5.000000e-01 : f32
    %176 = vector.broadcast %cst_43 : f32 to vector<8x48xf32>
    %177 = arith.addf %175, %176 : vector<8x48xf32>
    %178 = vector.extract_strided_slice %177 {offsets = [0, 0], sizes = [8, 16], strides = [1, 1]} : vector<8x48xf32> to vector<8x16xf32>
    %179 = vector.extract_strided_slice %177 {offsets = [0, 16], sizes = [8, 16], strides = [1, 1]} : vector<8x48xf32> to vector<8x16xf32>
    %180 = vector.extract_strided_slice %177 {offsets = [0, 32], sizes = [8, 16], strides = [1, 1]} : vector<8x48xf32> to vector<8x16xf32>
    %181 = vector.extract_strided_slice %169 {offsets = [0, 48], sizes = [8, 16], strides = [1, 1]} : vector<8x64xf32> to vector<8x16xf32>
    %182 = math.tanh %181 : vector<8x16xf32>
    %183 = arith.mulf %179, %163 : vector<8x16xf32>
    %184 = arith.mulf %178, %182 : vector<8x16xf32>
    %185 = arith.addf %183, %184 : vector<8x16xf32>
    %186 = math.tanh %185 : vector<8x16xf32>
    %187 = arith.mulf %180, %186 : vector<8x16xf32>
    %188 = vector.extract_strided_slice %7 {offsets = [8, 0, 0], sizes = [1, 8, 64], strides = [1, 1, 1]} : vector<10x8x128xf32> to vector<1x8x64xf32>
    %189 = vector.shape_cast %188 : vector<1x8x64xf32> to vector<8x64xf32>
    %cst_44 = arith.constant dense<0.000000e+00> : vector<8x64xf32>
    %190 = tpu.matmul %187, %8, %cst_44 {dimension_numbers = #tpu.dot_dimension_numbers<[1], [0], [0], [1], [0, 0, 1, 1], [], []>} : vector<8x16xf32>, vector<16x64xf32>, vector<8x64xf32> -> vector<8x64xf32>
    %191 = arith.addf %189, %190 : vector<8x64xf32>
    %192 = vector.extract_strided_slice %191 {offsets = [0, 0], sizes = [8, 48], strides = [1, 1]} : vector<8x64xf32> to vector<8x48xf32>
    %cst_45 = arith.constant 5.000000e-01 : f32
    %193 = vector.broadcast %cst_45 : f32 to vector<8x48xf32>
    %194 = arith.mulf %193, %192 : vector<8x48xf32>
    %195 = math.tanh %194 : vector<8x48xf32>
    %cst_46 = arith.constant 5.000000e-01 : f32
    %196 = vector.broadcast %cst_46 : f32 to vector<8x48xf32>
    %197 = arith.mulf %196, %195 : vector<8x48xf32>
    %cst_47 = arith.constant 5.000000e-01 : f32
    %198 = vector.broadcast %cst_47 : f32 to vector<8x48xf32>
    %199 = arith.addf %197, %198 : vector<8x48xf32>
    %200 = vector.extract_strided_slice %199 {offsets = [0, 0], sizes = [8, 16], strides = [1, 1]} : vector<8x48xf32> to vector<8x16xf32>
    %201 = vector.extract_strided_slice %199 {offsets = [0, 16], sizes = [8, 16], strides = [1, 1]} : vector<8x48xf32> to vector<8x16xf32>
    %202 = vector.extract_strided_slice %199 {offsets = [0, 32], sizes = [8, 16], strides = [1, 1]} : vector<8x48xf32> to vector<8x16xf32>
    %203 = vector.extract_strided_slice %191 {offsets = [0, 48], sizes = [8, 16], strides = [1, 1]} : vector<8x64xf32> to vector<8x16xf32>
    %204 = math.tanh %203 : vector<8x16xf32>
    %205 = arith.mulf %201, %185 : vector<8x16xf32>
    %206 = arith.mulf %200, %204 : vector<8x16xf32>
    %207 = arith.addf %205, %206 : vector<8x16xf32>
    %208 = math.tanh %207 : vector<8x16xf32>
    %209 = arith.mulf %202, %208 : vector<8x16xf32>
    %210 = vector.extract_strided_slice %7 {offsets = [9, 0, 0], sizes = [1, 8, 64], strides = [1, 1, 1]} : vector<10x8x128xf32> to vector<1x8x64xf32>
    %211 = vector.shape_cast %210 : vector<1x8x64xf32> to vector<8x64xf32>
    %cst_48 = arith.constant dense<0.000000e+00> : vector<8x64xf32>
    %212 = tpu.matmul %209, %8, %cst_48 {dimension_numbers = #tpu.dot_dimension_numbers<[1], [0], [0], [1], [0, 0, 1, 1], [], []>} : vector<8x16xf32>, vector<16x64xf32>, vector<8x64xf32> -> vector<8x64xf32>
    %213 = arith.addf %211, %212 : vector<8x64xf32>
    %214 = vector.extract_strided_slice %213 {offsets = [0, 0], sizes = [8, 48], strides = [1, 1]} : vector<8x64xf32> to vector<8x48xf32>
    %cst_49 = arith.constant 5.000000e-01 : f32
    %215 = vector.broadcast %cst_49 : f32 to vector<8x48xf32>
    %216 = arith.mulf %215, %214 : vector<8x48xf32>
    %217 = math.tanh %216 : vector<8x48xf32>
    %cst_50 = arith.constant 5.000000e-01 : f32
    %218 = vector.broadcast %cst_50 : f32 to vector<8x48xf32>
    %219 = arith.mulf %218, %217 : vector<8x48xf32>
    %cst_51 = arith.constant 5.000000e-01 : f32
    %220 = vector.broadcast %cst_51 : f32 to vector<8x48xf32>
    %221 = arith.addf %219, %220 : vector<8x48xf32>
    %222 = vector.extract_strided_slice %221 {offsets = [0, 0], sizes = [8, 16], strides = [1, 1]} : vector<8x48xf32> to vector<8x16xf32>
    %223 = vector.extract_strided_slice %221 {offsets = [0, 16], sizes = [8, 16], strides = [1, 1]} : vector<8x48xf32> to vector<8x16xf32>
    %224 = vector.extract_strided_slice %221 {offsets = [0, 32], sizes = [8, 16], strides = [1, 1]} : vector<8x48xf32> to vector<8x16xf32>
    %225 = vector.extract_strided_slice %213 {offsets = [0, 48], sizes = [8, 16], strides = [1, 1]} : vector<8x64xf32> to vector<8x16xf32>
    %226 = math.tanh %225 : vector<8x16xf32>
    %227 = arith.mulf %223, %207 : vector<8x16xf32>
    %228 = arith.mulf %222, %226 : vector<8x16xf32>
    %229 = arith.addf %227, %228 : vector<8x16xf32>
    %230 = math.tanh %229 : vector<8x16xf32>
    %231 = arith.mulf %224, %230 : vector<8x16xf32>
    %232 = vector.extract_strided_slice %7 {offsets = [9, 0, 64], sizes = [1, 8, 64], strides = [1, 1, 1]} : vector<10x8x128xf32> to vector<1x8x64xf32>
    %233 = vector.shape_cast %232 : vector<1x8x64xf32> to vector<8x64xf32>
    %cst_52 = arith.constant dense<0.000000e+00> : vector<8x64xf32>
    %234 = tpu.matmul %10, %9, %cst_52 {dimension_numbers = #tpu.dot_dimension_numbers<[1], [0], [0], [1], [0, 0, 1, 1], [], []>} : vector<8x16xf32>, vector<16x64xf32>, vector<8x64xf32> -> vector<8x64xf32>
    %235 = arith.addf %233, %234 : vector<8x64xf32>
    %236 = vector.extract_strided_slice %235 {offsets = [0, 0], sizes = [8, 48], strides = [1, 1]} : vector<8x64xf32> to vector<8x48xf32>
    %cst_53 = arith.constant 5.000000e-01 : f32
    %237 = vector.broadcast %cst_53 : f32 to vector<8x48xf32>
    %238 = arith.mulf %237, %236 : vector<8x48xf32>
    %239 = math.tanh %238 : vector<8x48xf32>
    %cst_54 = arith.constant 5.000000e-01 : f32
    %240 = vector.broadcast %cst_54 : f32 to vector<8x48xf32>
    %241 = arith.mulf %240, %239 : vector<8x48xf32>
    %cst_55 = arith.constant 5.000000e-01 : f32
    %242 = vector.broadcast %cst_55 : f32 to vector<8x48xf32>
    %243 = arith.addf %241, %242 : vector<8x48xf32>
    %244 = vector.extract_strided_slice %243 {offsets = [0, 0], sizes = [8, 16], strides = [1, 1]} : vector<8x48xf32> to vector<8x16xf32>
    %245 = vector.extract_strided_slice %243 {offsets = [0, 16], sizes = [8, 16], strides = [1, 1]} : vector<8x48xf32> to vector<8x16xf32>
    %246 = vector.extract_strided_slice %243 {offsets = [0, 32], sizes = [8, 16], strides = [1, 1]} : vector<8x48xf32> to vector<8x16xf32>
    %247 = vector.extract_strided_slice %235 {offsets = [0, 48], sizes = [8, 16], strides = [1, 1]} : vector<8x64xf32> to vector<8x16xf32>
    %248 = math.tanh %247 : vector<8x16xf32>
    %249 = arith.mulf %245, %11 : vector<8x16xf32>
    %250 = arith.mulf %244, %248 : vector<8x16xf32>
    %251 = arith.addf %249, %250 : vector<8x16xf32>
    %252 = math.tanh %251 : vector<8x16xf32>
    %253 = arith.mulf %246, %252 : vector<8x16xf32>
    %254 = vector.extract_strided_slice %7 {offsets = [8, 0, 64], sizes = [1, 8, 64], strides = [1, 1, 1]} : vector<10x8x128xf32> to vector<1x8x64xf32>
    %255 = vector.shape_cast %254 : vector<1x8x64xf32> to vector<8x64xf32>
    %cst_56 = arith.constant dense<0.000000e+00> : vector<8x64xf32>
    %256 = tpu.matmul %253, %9, %cst_56 {dimension_numbers = #tpu.dot_dimension_numbers<[1], [0], [0], [1], [0, 0, 1, 1], [], []>} : vector<8x16xf32>, vector<16x64xf32>, vector<8x64xf32> -> vector<8x64xf32>
    %257 = arith.addf %255, %256 : vector<8x64xf32>
    %258 = vector.extract_strided_slice %257 {offsets = [0, 0], sizes = [8, 48], strides = [1, 1]} : vector<8x64xf32> to vector<8x48xf32>
    %cst_57 = arith.constant 5.000000e-01 : f32
    %259 = vector.broadcast %cst_57 : f32 to vector<8x48xf32>
    %260 = arith.mulf %259, %258 : vector<8x48xf32>
    %261 = math.tanh %260 : vector<8x48xf32>
    %cst_58 = arith.constant 5.000000e-01 : f32
    %262 = vector.broadcast %cst_58 : f32 to vector<8x48xf32>
    %263 = arith.mulf %262, %261 : vector<8x48xf32>
    %cst_59 = arith.constant 5.000000e-01 : f32
    %264 = vector.broadcast %cst_59 : f32 to vector<8x48xf32>
    %265 = arith.addf %263, %264 : vector<8x48xf32>
    %266 = vector.extract_strided_slice %265 {offsets = [0, 0], sizes = [8, 16], strides = [1, 1]} : vector<8x48xf32> to vector<8x16xf32>
    %267 = vector.extract_strided_slice %265 {offsets = [0, 16], sizes = [8, 16], strides = [1, 1]} : vector<8x48xf32> to vector<8x16xf32>
    %268 = vector.extract_strided_slice %265 {offsets = [0, 32], sizes = [8, 16], strides = [1, 1]} : vector<8x48xf32> to vector<8x16xf32>
    %269 = vector.extract_strided_slice %257 {offsets = [0, 48], sizes = [8, 16], strides = [1, 1]} : vector<8x64xf32> to vector<8x16xf32>
    %270 = math.tanh %269 : vector<8x16xf32>
    %271 = arith.mulf %267, %251 : vector<8x16xf32>
    %272 = arith.mulf %266, %270 : vector<8x16xf32>
    %273 = arith.addf %271, %272 : vector<8x16xf32>
    %274 = math.tanh %273 : vector<8x16xf32>
    %275 = arith.mulf %268, %274 : vector<8x16xf32>
    %276 = vector.extract_strided_slice %7 {offsets = [7, 0, 64], sizes = [1, 8, 64], strides = [1, 1, 1]} : vector<10x8x128xf32> to vector<1x8x64xf32>
    %277 = vector.shape_cast %276 : vector<1x8x64xf32> to vector<8x64xf32>
    %cst_60 = arith.constant dense<0.000000e+00> : vector<8x64xf32>
    %278 = tpu.matmul %275, %9, %cst_60 {dimension_numbers = #tpu.dot_dimension_numbers<[1], [0], [0], [1], [0, 0, 1, 1], [], []>} : vector<8x16xf32>, vector<16x64xf32>, vector<8x64xf32> -> vector<8x64xf32>
    %279 = arith.addf %277, %278 : vector<8x64xf32>
    %280 = vector.extract_strided_slice %279 {offsets = [0, 0], sizes = [8, 48], strides = [1, 1]} : vector<8x64xf32> to vector<8x48xf32>
    %cst_61 = arith.constant 5.000000e-01 : f32
    %281 = vector.broadcast %cst_61 : f32 to vector<8x48xf32>
    %282 = arith.mulf %281, %280 : vector<8x48xf32>
    %283 = math.tanh %282 : vector<8x48xf32>
    %cst_62 = arith.constant 5.000000e-01 : f32
    %284 = vector.broadcast %cst_62 : f32 to vector<8x48xf32>
    %285 = arith.mulf %284, %283 : vector<8x48xf32>
    %cst_63 = arith.constant 5.000000e-01 : f32
    %286 = vector.broadcast %cst_63 : f32 to vector<8x48xf32>
    %287 = arith.addf %285, %286 : vector<8x48xf32>
    %288 = vector.extract_strided_slice %287 {offsets = [0, 0], sizes = [8, 16], strides = [1, 1]} : vector<8x48xf32> to vector<8x16xf32>
    %289 = vector.extract_strided_slice %287 {offsets = [0, 16], sizes = [8, 16], strides = [1, 1]} : vector<8x48xf32> to vector<8x16xf32>
    %290 = vector.extract_strided_slice %287 {offsets = [0, 32], sizes = [8, 16], strides = [1, 1]} : vector<8x48xf32> to vector<8x16xf32>
    %291 = vector.extract_strided_slice %279 {offsets = [0, 48], sizes = [8, 16], strides = [1, 1]} : vector<8x64xf32> to vector<8x16xf32>
    %292 = math.tanh %291 : vector<8x16xf32>
    %293 = arith.mulf %289, %273 : vector<8x16xf32>
    %294 = arith.mulf %288, %292 : vector<8x16xf32>
    %295 = arith.addf %293, %294 : vector<8x16xf32>
    %296 = math.tanh %295 : vector<8x16xf32>
    %297 = arith.mulf %290, %296 : vector<8x16xf32>
    %298 = vector.extract_strided_slice %7 {offsets = [6, 0, 64], sizes = [1, 8, 64], strides = [1, 1, 1]} : vector<10x8x128xf32> to vector<1x8x64xf32>
    %299 = vector.shape_cast %298 : vector<1x8x64xf32> to vector<8x64xf32>
    %cst_64 = arith.constant dense<0.000000e+00> : vector<8x64xf32>
    %300 = tpu.matmul %297, %9, %cst_64 {dimension_numbers = #tpu.dot_dimension_numbers<[1], [0], [0], [1], [0, 0, 1, 1], [], []>} : vector<8x16xf32>, vector<16x64xf32>, vector<8x64xf32> -> vector<8x64xf32>
    %301 = arith.addf %299, %300 : vector<8x64xf32>
    %302 = vector.extract_strided_slice %301 {offsets = [0, 0], sizes = [8, 48], strides = [1, 1]} : vector<8x64xf32> to vector<8x48xf32>
    %cst_65 = arith.constant 5.000000e-01 : f32
    %303 = vector.broadcast %cst_65 : f32 to vector<8x48xf32>
    %304 = arith.mulf %303, %302 : vector<8x48xf32>
    %305 = math.tanh %304 : vector<8x48xf32>
    %cst_66 = arith.constant 5.000000e-01 : f32
    %306 = vector.broadcast %cst_66 : f32 to vector<8x48xf32>
    %307 = arith.mulf %306, %305 : vector<8x48xf32>
    %cst_67 = arith.constant 5.000000e-01 : f32
    %308 = vector.broadcast %cst_67 : f32 to vector<8x48xf32>
    %309 = arith.addf %307, %308 : vector<8x48xf32>
    %310 = vector.extract_strided_slice %309 {offsets = [0, 0], sizes = [8, 16], strides = [1, 1]} : vector<8x48xf32> to vector<8x16xf32>
    %311 = vector.extract_strided_slice %309 {offsets = [0, 16], sizes = [8, 16], strides = [1, 1]} : vector<8x48xf32> to vector<8x16xf32>
    %312 = vector.extract_strided_slice %309 {offsets = [0, 32], sizes = [8, 16], strides = [1, 1]} : vector<8x48xf32> to vector<8x16xf32>
    %313 = vector.extract_strided_slice %301 {offsets = [0, 48], sizes = [8, 16], strides = [1, 1]} : vector<8x64xf32> to vector<8x16xf32>
    %314 = math.tanh %313 : vector<8x16xf32>
    %315 = arith.mulf %311, %295 : vector<8x16xf32>
    %316 = arith.mulf %310, %314 : vector<8x16xf32>
    %317 = arith.addf %315, %316 : vector<8x16xf32>
    %318 = math.tanh %317 : vector<8x16xf32>
    %319 = arith.mulf %312, %318 : vector<8x16xf32>
    %320 = vector.extract_strided_slice %7 {offsets = [5, 0, 64], sizes = [1, 8, 64], strides = [1, 1, 1]} : vector<10x8x128xf32> to vector<1x8x64xf32>
    %321 = vector.shape_cast %320 : vector<1x8x64xf32> to vector<8x64xf32>
    %cst_68 = arith.constant dense<0.000000e+00> : vector<8x64xf32>
    %322 = tpu.matmul %319, %9, %cst_68 {dimension_numbers = #tpu.dot_dimension_numbers<[1], [0], [0], [1], [0, 0, 1, 1], [], []>} : vector<8x16xf32>, vector<16x64xf32>, vector<8x64xf32> -> vector<8x64xf32>
    %323 = arith.addf %321, %322 : vector<8x64xf32>
    %324 = vector.extract_strided_slice %323 {offsets = [0, 0], sizes = [8, 48], strides = [1, 1]} : vector<8x64xf32> to vector<8x48xf32>
    %cst_69 = arith.constant 5.000000e-01 : f32
    %325 = vector.broadcast %cst_69 : f32 to vector<8x48xf32>
    %326 = arith.mulf %325, %324 : vector<8x48xf32>
    %327 = math.tanh %326 : vector<8x48xf32>
    %cst_70 = arith.constant 5.000000e-01 : f32
    %328 = vector.broadcast %cst_70 : f32 to vector<8x48xf32>
    %329 = arith.mulf %328, %327 : vector<8x48xf32>
    %cst_71 = arith.constant 5.000000e-01 : f32
    %330 = vector.broadcast %cst_71 : f32 to vector<8x48xf32>
    %331 = arith.addf %329, %330 : vector<8x48xf32>
    %332 = vector.extract_strided_slice %331 {offsets = [0, 0], sizes = [8, 16], strides = [1, 1]} : vector<8x48xf32> to vector<8x16xf32>
    %333 = vector.extract_strided_slice %331 {offsets = [0, 16], sizes = [8, 16], strides = [1, 1]} : vector<8x48xf32> to vector<8x16xf32>
    %334 = vector.extract_strided_slice %331 {offsets = [0, 32], sizes = [8, 16], strides = [1, 1]} : vector<8x48xf32> to vector<8x16xf32>
    %335 = vector.extract_strided_slice %323 {offsets = [0, 48], sizes = [8, 16], strides = [1, 1]} : vector<8x64xf32> to vector<8x16xf32>
    %336 = math.tanh %335 : vector<8x16xf32>
    %337 = arith.mulf %333, %317 : vector<8x16xf32>
    %338 = arith.mulf %332, %336 : vector<8x16xf32>
    %339 = arith.addf %337, %338 : vector<8x16xf32>
    %340 = math.tanh %339 : vector<8x16xf32>
    %341 = arith.mulf %334, %340 : vector<8x16xf32>
    %342 = vector.extract_strided_slice %7 {offsets = [4, 0, 64], sizes = [1, 8, 64], strides = [1, 1, 1]} : vector<10x8x128xf32> to vector<1x8x64xf32>
    %343 = vector.shape_cast %342 : vector<1x8x64xf32> to vector<8x64xf32>
    %cst_72 = arith.constant dense<0.000000e+00> : vector<8x64xf32>
    %344 = tpu.matmul %341, %9, %cst_72 {dimension_numbers = #tpu.dot_dimension_numbers<[1], [0], [0], [1], [0, 0, 1, 1], [], []>} : vector<8x16xf32>, vector<16x64xf32>, vector<8x64xf32> -> vector<8x64xf32>
    %345 = arith.addf %343, %344 : vector<8x64xf32>
    %346 = vector.extract_strided_slice %345 {offsets = [0, 0], sizes = [8, 48], strides = [1, 1]} : vector<8x64xf32> to vector<8x48xf32>
    %cst_73 = arith.constant 5.000000e-01 : f32
    %347 = vector.broadcast %cst_73 : f32 to vector<8x48xf32>
    %348 = arith.mulf %347, %346 : vector<8x48xf32>
    %349 = math.tanh %348 : vector<8x48xf32>
    %cst_74 = arith.constant 5.000000e-01 : f32
    %350 = vector.broadcast %cst_74 : f32 to vector<8x48xf32>
    %351 = arith.mulf %350, %349 : vector<8x48xf32>
    %cst_75 = arith.constant 5.000000e-01 : f32
    %352 = vector.broadcast %cst_75 : f32 to vector<8x48xf32>
    %353 = arith.addf %351, %352 : vector<8x48xf32>
    %354 = vector.extract_strided_slice %353 {offsets = [0, 0], sizes = [8, 16], strides = [1, 1]} : vector<8x48xf32> to vector<8x16xf32>
    %355 = vector.extract_strided_slice %353 {offsets = [0, 16], sizes = [8, 16], strides = [1, 1]} : vector<8x48xf32> to vector<8x16xf32>
    %356 = vector.extract_strided_slice %353 {offsets = [0, 32], sizes = [8, 16], strides = [1, 1]} : vector<8x48xf32> to vector<8x16xf32>
    %357 = vector.extract_strided_slice %345 {offsets = [0, 48], sizes = [8, 16], strides = [1, 1]} : vector<8x64xf32> to vector<8x16xf32>
    %358 = math.tanh %357 : vector<8x16xf32>
    %359 = arith.mulf %355, %339 : vector<8x16xf32>
    %360 = arith.mulf %354, %358 : vector<8x16xf32>
    %361 = arith.addf %359, %360 : vector<8x16xf32>
    %362 = math.tanh %361 : vector<8x16xf32>
    %363 = arith.mulf %356, %362 : vector<8x16xf32>
    %364 = vector.extract_strided_slice %7 {offsets = [3, 0, 64], sizes = [1, 8, 64], strides = [1, 1, 1]} : vector<10x8x128xf32> to vector<1x8x64xf32>
    %365 = vector.shape_cast %364 : vector<1x8x64xf32> to vector<8x64xf32>
    %cst_76 = arith.constant dense<0.000000e+00> : vector<8x64xf32>
    %366 = tpu.matmul %363, %9, %cst_76 {dimension_numbers = #tpu.dot_dimension_numbers<[1], [0], [0], [1], [0, 0, 1, 1], [], []>} : vector<8x16xf32>, vector<16x64xf32>, vector<8x64xf32> -> vector<8x64xf32>
    %367 = arith.addf %365, %366 : vector<8x64xf32>
    %368 = vector.extract_strided_slice %367 {offsets = [0, 0], sizes = [8, 48], strides = [1, 1]} : vector<8x64xf32> to vector<8x48xf32>
    %cst_77 = arith.constant 5.000000e-01 : f32
    %369 = vector.broadcast %cst_77 : f32 to vector<8x48xf32>
    %370 = arith.mulf %369, %368 : vector<8x48xf32>
    %371 = math.tanh %370 : vector<8x48xf32>
    %cst_78 = arith.constant 5.000000e-01 : f32
    %372 = vector.broadcast %cst_78 : f32 to vector<8x48xf32>
    %373 = arith.mulf %372, %371 : vector<8x48xf32>
    %cst_79 = arith.constant 5.000000e-01 : f32
    %374 = vector.broadcast %cst_79 : f32 to vector<8x48xf32>
    %375 = arith.addf %373, %374 : vector<8x48xf32>
    %376 = vector.extract_strided_slice %375 {offsets = [0, 0], sizes = [8, 16], strides = [1, 1]} : vector<8x48xf32> to vector<8x16xf32>
    %377 = vector.extract_strided_slice %375 {offsets = [0, 16], sizes = [8, 16], strides = [1, 1]} : vector<8x48xf32> to vector<8x16xf32>
    %378 = vector.extract_strided_slice %375 {offsets = [0, 32], sizes = [8, 16], strides = [1, 1]} : vector<8x48xf32> to vector<8x16xf32>
    %379 = vector.extract_strided_slice %367 {offsets = [0, 48], sizes = [8, 16], strides = [1, 1]} : vector<8x64xf32> to vector<8x16xf32>
    %380 = math.tanh %379 : vector<8x16xf32>
    %381 = arith.mulf %377, %361 : vector<8x16xf32>
    %382 = arith.mulf %376, %380 : vector<8x16xf32>
    %383 = arith.addf %381, %382 : vector<8x16xf32>
    %384 = math.tanh %383 : vector<8x16xf32>
    %385 = arith.mulf %378, %384 : vector<8x16xf32>
    %386 = vector.extract_strided_slice %7 {offsets = [2, 0, 64], sizes = [1, 8, 64], strides = [1, 1, 1]} : vector<10x8x128xf32> to vector<1x8x64xf32>
    %387 = vector.shape_cast %386 : vector<1x8x64xf32> to vector<8x64xf32>
    %cst_80 = arith.constant dense<0.000000e+00> : vector<8x64xf32>
    %388 = tpu.matmul %385, %9, %cst_80 {dimension_numbers = #tpu.dot_dimension_numbers<[1], [0], [0], [1], [0, 0, 1, 1], [], []>} : vector<8x16xf32>, vector<16x64xf32>, vector<8x64xf32> -> vector<8x64xf32>
    %389 = arith.addf %387, %388 : vector<8x64xf32>
    %390 = vector.extract_strided_slice %389 {offsets = [0, 0], sizes = [8, 48], strides = [1, 1]} : vector<8x64xf32> to vector<8x48xf32>
    %cst_81 = arith.constant 5.000000e-01 : f32
    %391 = vector.broadcast %cst_81 : f32 to vector<8x48xf32>
    %392 = arith.mulf %391, %390 : vector<8x48xf32>
    %393 = math.tanh %392 : vector<8x48xf32>
    %cst_82 = arith.constant 5.000000e-01 : f32
    %394 = vector.broadcast %cst_82 : f32 to vector<8x48xf32>
    %395 = arith.mulf %394, %393 : vector<8x48xf32>
    %cst_83 = arith.constant 5.000000e-01 : f32
    %396 = vector.broadcast %cst_83 : f32 to vector<8x48xf32>
    %397 = arith.addf %395, %396 : vector<8x48xf32>
    %398 = vector.extract_strided_slice %397 {offsets = [0, 0], sizes = [8, 16], strides = [1, 1]} : vector<8x48xf32> to vector<8x16xf32>
    %399 = vector.extract_strided_slice %397 {offsets = [0, 16], sizes = [8, 16], strides = [1, 1]} : vector<8x48xf32> to vector<8x16xf32>
    %400 = vector.extract_strided_slice %397 {offsets = [0, 32], sizes = [8, 16], strides = [1, 1]} : vector<8x48xf32> to vector<8x16xf32>
    %401 = vector.extract_strided_slice %389 {offsets = [0, 48], sizes = [8, 16], strides = [1, 1]} : vector<8x64xf32> to vector<8x16xf32>
    %402 = math.tanh %401 : vector<8x16xf32>
    %403 = arith.mulf %399, %383 : vector<8x16xf32>
    %404 = arith.mulf %398, %402 : vector<8x16xf32>
    %405 = arith.addf %403, %404 : vector<8x16xf32>
    %406 = math.tanh %405 : vector<8x16xf32>
    %407 = arith.mulf %400, %406 : vector<8x16xf32>
    %408 = vector.extract_strided_slice %7 {offsets = [1, 0, 64], sizes = [1, 8, 64], strides = [1, 1, 1]} : vector<10x8x128xf32> to vector<1x8x64xf32>
    %409 = vector.shape_cast %408 : vector<1x8x64xf32> to vector<8x64xf32>
    %cst_84 = arith.constant dense<0.000000e+00> : vector<8x64xf32>
    %410 = tpu.matmul %407, %9, %cst_84 {dimension_numbers = #tpu.dot_dimension_numbers<[1], [0], [0], [1], [0, 0, 1, 1], [], []>} : vector<8x16xf32>, vector<16x64xf32>, vector<8x64xf32> -> vector<8x64xf32>
    %411 = arith.addf %409, %410 : vector<8x64xf32>
    %412 = vector.extract_strided_slice %411 {offsets = [0, 0], sizes = [8, 48], strides = [1, 1]} : vector<8x64xf32> to vector<8x48xf32>
    %cst_85 = arith.constant 5.000000e-01 : f32
    %413 = vector.broadcast %cst_85 : f32 to vector<8x48xf32>
    %414 = arith.mulf %413, %412 : vector<8x48xf32>
    %415 = math.tanh %414 : vector<8x48xf32>
    %cst_86 = arith.constant 5.000000e-01 : f32
    %416 = vector.broadcast %cst_86 : f32 to vector<8x48xf32>
    %417 = arith.mulf %416, %415 : vector<8x48xf32>
    %cst_87 = arith.constant 5.000000e-01 : f32
    %418 = vector.broadcast %cst_87 : f32 to vector<8x48xf32>
    %419 = arith.addf %417, %418 : vector<8x48xf32>
    %420 = vector.extract_strided_slice %419 {offsets = [0, 0], sizes = [8, 16], strides = [1, 1]} : vector<8x48xf32> to vector<8x16xf32>
    %421 = vector.extract_strided_slice %419 {offsets = [0, 16], sizes = [8, 16], strides = [1, 1]} : vector<8x48xf32> to vector<8x16xf32>
    %422 = vector.extract_strided_slice %419 {offsets = [0, 32], sizes = [8, 16], strides = [1, 1]} : vector<8x48xf32> to vector<8x16xf32>
    %423 = vector.extract_strided_slice %411 {offsets = [0, 48], sizes = [8, 16], strides = [1, 1]} : vector<8x64xf32> to vector<8x16xf32>
    %424 = math.tanh %423 : vector<8x16xf32>
    %425 = arith.mulf %421, %405 : vector<8x16xf32>
    %426 = arith.mulf %420, %424 : vector<8x16xf32>
    %427 = arith.addf %425, %426 : vector<8x16xf32>
    %428 = math.tanh %427 : vector<8x16xf32>
    %429 = arith.mulf %422, %428 : vector<8x16xf32>
    %430 = vector.extract_strided_slice %7 {offsets = [0, 0, 64], sizes = [1, 8, 64], strides = [1, 1, 1]} : vector<10x8x128xf32> to vector<1x8x64xf32>
    %431 = vector.shape_cast %430 : vector<1x8x64xf32> to vector<8x64xf32>
    %cst_88 = arith.constant dense<0.000000e+00> : vector<8x64xf32>
    %432 = tpu.matmul %429, %9, %cst_88 {dimension_numbers = #tpu.dot_dimension_numbers<[1], [0], [0], [1], [0, 0, 1, 1], [], []>} : vector<8x16xf32>, vector<16x64xf32>, vector<8x64xf32> -> vector<8x64xf32>
    %433 = arith.addf %431, %432 : vector<8x64xf32>
    %434 = vector.extract_strided_slice %433 {offsets = [0, 0], sizes = [8, 48], strides = [1, 1]} : vector<8x64xf32> to vector<8x48xf32>
    %cst_89 = arith.constant 5.000000e-01 : f32
    %435 = vector.broadcast %cst_89 : f32 to vector<8x48xf32>
    %436 = arith.mulf %435, %434 : vector<8x48xf32>
    %437 = math.tanh %436 : vector<8x48xf32>
    %cst_90 = arith.constant 5.000000e-01 : f32
    %438 = vector.broadcast %cst_90 : f32 to vector<8x48xf32>
    %439 = arith.mulf %438, %437 : vector<8x48xf32>
    %cst_91 = arith.constant 5.000000e-01 : f32
    %440 = vector.broadcast %cst_91 : f32 to vector<8x48xf32>
    %441 = arith.addf %439, %440 : vector<8x48xf32>
    %442 = vector.extract_strided_slice %441 {offsets = [0, 0], sizes = [8, 16], strides = [1, 1]} : vector<8x48xf32> to vector<8x16xf32>
    %443 = vector.extract_strided_slice %441 {offsets = [0, 16], sizes = [8, 16], strides = [1, 1]} : vector<8x48xf32> to vector<8x16xf32>
    %444 = vector.extract_strided_slice %441 {offsets = [0, 32], sizes = [8, 16], strides = [1, 1]} : vector<8x48xf32> to vector<8x16xf32>
    %445 = vector.extract_strided_slice %433 {offsets = [0, 48], sizes = [8, 16], strides = [1, 1]} : vector<8x64xf32> to vector<8x16xf32>
    %446 = math.tanh %445 : vector<8x16xf32>
    %447 = arith.mulf %443, %427 : vector<8x16xf32>
    %448 = arith.mulf %442, %446 : vector<8x16xf32>
    %449 = arith.addf %447, %448 : vector<8x16xf32>
    %450 = math.tanh %449 : vector<8x16xf32>
    %451 = arith.mulf %444, %450 : vector<8x16xf32>
    %452 = tpu.concatenate %33, %55, %77, %99, %121, %143, %165, %187, %209, %231 in 0 : vector<8x16xf32>, vector<8x16xf32>, vector<8x16xf32>, vector<8x16xf32>, vector<8x16xf32>, vector<8x16xf32>, vector<8x16xf32>, vector<8x16xf32>, vector<8x16xf32>, vector<8x16xf32> -> vector<80x16xf32>
    %453 = tpu.concatenate %451, %429, %407, %385, %363, %341, %319, %297, %275, %253 in 0 : vector<8x16xf32>, vector<8x16xf32>, vector<8x16xf32>, vector<8x16xf32>, vector<8x16xf32>, vector<8x16xf32>, vector<8x16xf32>, vector<8x16xf32>, vector<8x16xf32>, vector<8x16xf32> -> vector<80x16xf32>
    %454 = tpu.concatenate %452, %453 in 1 : vector<80x16xf32>, vector<80x16xf32> -> vector<80x32xf32>
    %c0_92 = arith.constant 0 : index
    %c0_93 = arith.constant 0 : index
    %455 = vector.load %arg5[%c0_92, %c0_93] : memref<32x128xf32, #tpu.memory_space<vmem>>, vector<32x128xf32>
    %cst_94 = arith.constant dense<0.000000e+00> : vector<80x128xf32>
    %456 = tpu.matmul %454, %455, %cst_94 {dimension_numbers = #tpu.dot_dimension_numbers<[1], [0], [0], [1], [0, 0, 1, 1], [], []>} : vector<80x32xf32>, vector<32x128xf32>, vector<80x128xf32> -> vector<80x128xf32>
    %c0_95 = arith.constant 0 : index
    %c0_96 = arith.constant 0 : index
    %457 = vector.load %arg6[%c0_95, %c0_96] : memref<1x128xf32, #tpu.memory_space<vmem>>, vector<1x128xf32>
    %458 = vector.broadcast %457 : vector<1x128xf32> to vector<80x128xf32>
    %459 = arith.addf %456, %458 : vector<80x128xf32>
    %460 = vector.shape_cast %459 : vector<80x128xf32> to vector<10x8x128xf32>
    %c0_97 = arith.constant 0 : index
    %c0_98 = arith.constant 0 : index
    %c0_99 = arith.constant 0 : index
    %461 = vector.load %arg11[%c0_97, %c0_98, %c0_99] : memref<10x8x128xf32, #tpu.memory_space<vmem>>, vector<10x8x128xf32>
    tpu.vector_store %arg11[%c0_97, %c0_98, %c0_99], %460 {strides = array<i32>} : memref<10x8x128xf32, #tpu.memory_space<vmem>>, vector<10x8x128xf32>,
    %462 = vector.shape_cast %459 : vector<80x128xf32> to vector<10x8x128xf32>
    %c0_100 = arith.constant 0 : index
    %c0_101 = arith.constant 0 : index
    %463 = vector.load %arg7[%c0_100, %c0_101] : memref<5x5xf32, #tpu.memory_space<vmem>>, vector<5x5xf32>
    %464 = vector.shape_cast %463 : vector<5x5xf32> to vector<1x5x5xf32>
    %465 = vector.shape_cast %464 : vector<1x5x5xf32> to vector<1x5x5xf32>
    %466 = vector.broadcast %465 : vector<1x5x5xf32> to vector<10x5x5xf32>
    %467 = tpu.iota {dimensions = array<i32: 1>} : vector<10x5x5xi32>
    %468 = tpu.iota {dimensions = array<i32: 1>} : vector<10x5xi32>
    %c0_102 = arith.constant 0 : index
    %c0_103 = arith.constant 0 : index
    %469 = vector.load %arg8[%c0_102, %c0_103] : memref<1x5xf32, #tpu.memory_space<vmem>>, vector<1x5xf32>
    %470 = vector.extract_strided_slice %462 {offsets = [0, 0, 0], sizes = [10, 1, 5], strides = [1, 1, 1]} : vector<10x8x128xf32> to vector<10x1x5xf32>
    %471 = vector.shape_cast %470 : vector<10x1x5xf32> to vector<10x5xf32>
    %472 = vector.broadcast %469 : vector<1x5xf32> to vector<10x5xf32>
    %473 = arith.addf %472, %471 : vector<10x5xf32>
    %474 = vector.shape_cast %473 : vector<10x5xf32> to vector<10x5x1xf32>
    %475 = vector.broadcast %474 : vector<10x5x1xf32> to vector<10x5x5xf32>
    %476 = arith.addf %475, %466 : vector<10x5x5xf32>
    %cst_104 = arith.constant dense<0xFF800000> : vector<10x5xf32>
    %477 = vector.multi_reduction <maximumf>, %476, %cst_104 [1] : vector<10x5x5xf32> to vector<10x5xf32>
    %478 = vector.shape_cast %477 : vector<10x5xf32> to vector<10x1x5xf32>
    %479 = vector.broadcast %478 : vector<10x1x5xf32> to vector<10x5x5xf32>
    %480 = arith.cmpf oeq, %476, %479 : vector<10x5x5xf32>
    %c5_i32 = arith.constant 5 : i32
    %481 = vector.broadcast %c5_i32 : i32 to vector<10x5x5xi32>
    %482 = arith.select %480, %467, %481 : vector<10x5x5xi1>, vector<10x5x5xi32>
    %cst_105 = arith.constant dense<2147483647> : vector<10x5xi32>
    %483 = vector.multi_reduction <minsi>, %482, %cst_105 [1] : vector<10x5x5xi32> to vector<10x5xi32>
    %484 = vector.extract_strided_slice %462 {offsets = [0, 1, 0], sizes = [10, 1, 5], strides = [1, 1, 1]} : vector<10x8x128xf32> to vector<10x1x5xf32>
    %485 = vector.shape_cast %484 : vector<10x1x5xf32> to vector<10x5xf32>
    %486 = arith.addf %477, %485 : vector<10x5xf32>
    %487 = vector.shape_cast %486 : vector<10x5xf32> to vector<10x5x1xf32>
    %488 = vector.broadcast %487 : vector<10x5x1xf32> to vector<10x5x5xf32>
    %489 = arith.addf %488, %466 : vector<10x5x5xf32>
    %cst_106 = arith.constant dense<0xFF800000> : vector<10x5xf32>
    %490 = vector.multi_reduction <maximumf>, %489, %cst_106 [1] : vector<10x5x5xf32> to vector<10x5xf32>
    %491 = vector.shape_cast %490 : vector<10x5xf32> to vector<10x1x5xf32>
    %492 = vector.broadcast %491 : vector<10x1x5xf32> to vector<10x5x5xf32>
    %493 = arith.cmpf oeq, %489, %492 : vector<10x5x5xf32>
    %c5_i32_107 = arith.constant 5 : i32
    %494 = vector.broadcast %c5_i32_107 : i32 to vector<10x5x5xi32>
    %495 = arith.select %493, %467, %494 : vector<10x5x5xi1>, vector<10x5x5xi32>
    %cst_108 = arith.constant dense<2147483647> : vector<10x5xi32>
    %496 = vector.multi_reduction <minsi>, %495, %cst_108 [1] : vector<10x5x5xi32> to vector<10x5xi32>
    %497 = vector.extract_strided_slice %462 {offsets = [0, 2, 0], sizes = [10, 1, 5], strides = [1, 1, 1]} : vector<10x8x128xf32> to vector<10x1x5xf32>
    %498 = vector.shape_cast %497 : vector<10x1x5xf32> to vector<10x5xf32>
    %499 = arith.addf %490, %498 : vector<10x5xf32>
    %500 = vector.shape_cast %499 : vector<10x5xf32> to vector<10x5x1xf32>
    %501 = vector.broadcast %500 : vector<10x5x1xf32> to vector<10x5x5xf32>
    %502 = arith.addf %501, %466 : vector<10x5x5xf32>
    %cst_109 = arith.constant dense<0xFF800000> : vector<10x5xf32>
    %503 = vector.multi_reduction <maximumf>, %502, %cst_109 [1] : vector<10x5x5xf32> to vector<10x5xf32>
    %504 = vector.shape_cast %503 : vector<10x5xf32> to vector<10x1x5xf32>
    %505 = vector.broadcast %504 : vector<10x1x5xf32> to vector<10x5x5xf32>
    %506 = arith.cmpf oeq, %502, %505 : vector<10x5x5xf32>
    %c5_i32_110 = arith.constant 5 : i32
    %507 = vector.broadcast %c5_i32_110 : i32 to vector<10x5x5xi32>
    %508 = arith.select %506, %467, %507 : vector<10x5x5xi1>, vector<10x5x5xi32>
    %cst_111 = arith.constant dense<2147483647> : vector<10x5xi32>
    %509 = vector.multi_reduction <minsi>, %508, %cst_111 [1] : vector<10x5x5xi32> to vector<10x5xi32>
    %510 = vector.extract_strided_slice %462 {offsets = [0, 3, 0], sizes = [10, 1, 5], strides = [1, 1, 1]} : vector<10x8x128xf32> to vector<10x1x5xf32>
    %511 = vector.shape_cast %510 : vector<10x1x5xf32> to vector<10x5xf32>
    %512 = arith.addf %503, %511 : vector<10x5xf32>
    %513 = vector.shape_cast %512 : vector<10x5xf32> to vector<10x5x1xf32>
    %514 = vector.broadcast %513 : vector<10x5x1xf32> to vector<10x5x5xf32>
    %515 = arith.addf %514, %466 : vector<10x5x5xf32>
    %cst_112 = arith.constant dense<0xFF800000> : vector<10x5xf32>
    %516 = vector.multi_reduction <maximumf>, %515, %cst_112 [1] : vector<10x5x5xf32> to vector<10x5xf32>
    %517 = vector.shape_cast %516 : vector<10x5xf32> to vector<10x1x5xf32>
    %518 = vector.broadcast %517 : vector<10x1x5xf32> to vector<10x5x5xf32>
    %519 = arith.cmpf oeq, %515, %518 : vector<10x5x5xf32>
    %c5_i32_113 = arith.constant 5 : i32
    %520 = vector.broadcast %c5_i32_113 : i32 to vector<10x5x5xi32>
    %521 = arith.select %519, %467, %520 : vector<10x5x5xi1>, vector<10x5x5xi32>
    %cst_114 = arith.constant dense<2147483647> : vector<10x5xi32>
    %522 = vector.multi_reduction <minsi>, %521, %cst_114 [1] : vector<10x5x5xi32> to vector<10x5xi32>
    %523 = vector.extract_strided_slice %462 {offsets = [0, 4, 0], sizes = [10, 1, 5], strides = [1, 1, 1]} : vector<10x8x128xf32> to vector<10x1x5xf32>
    %524 = vector.shape_cast %523 : vector<10x1x5xf32> to vector<10x5xf32>
    %525 = arith.addf %516, %524 : vector<10x5xf32>
    %526 = vector.shape_cast %525 : vector<10x5xf32> to vector<10x5x1xf32>
    %527 = vector.broadcast %526 : vector<10x5x1xf32> to vector<10x5x5xf32>
    %528 = arith.addf %527, %466 : vector<10x5x5xf32>
    %cst_115 = arith.constant dense<0xFF800000> : vector<10x5xf32>
    %529 = vector.multi_reduction <maximumf>, %528, %cst_115 [1] : vector<10x5x5xf32> to vector<10x5xf32>
    %530 = vector.shape_cast %529 : vector<10x5xf32> to vector<10x1x5xf32>
    %531 = vector.broadcast %530 : vector<10x1x5xf32> to vector<10x5x5xf32>
    %532 = arith.cmpf oeq, %528, %531 : vector<10x5x5xf32>
    %c5_i32_116 = arith.constant 5 : i32
    %533 = vector.broadcast %c5_i32_116 : i32 to vector<10x5x5xi32>
    %534 = arith.select %532, %467, %533 : vector<10x5x5xi1>, vector<10x5x5xi32>
    %cst_117 = arith.constant dense<2147483647> : vector<10x5xi32>
    %535 = vector.multi_reduction <minsi>, %534, %cst_117 [1] : vector<10x5x5xi32> to vector<10x5xi32>
    %536 = vector.extract_strided_slice %462 {offsets = [0, 5, 0], sizes = [10, 1, 5], strides = [1, 1, 1]} : vector<10x8x128xf32> to vector<10x1x5xf32>
    %537 = vector.shape_cast %536 : vector<10x1x5xf32> to vector<10x5xf32>
    %538 = arith.addf %529, %537 : vector<10x5xf32>
    %539 = vector.shape_cast %538 : vector<10x5xf32> to vector<10x5x1xf32>
    %540 = vector.broadcast %539 : vector<10x5x1xf32> to vector<10x5x5xf32>
    %541 = arith.addf %540, %466 : vector<10x5x5xf32>
    %cst_118 = arith.constant dense<0xFF800000> : vector<10x5xf32>
    %542 = vector.multi_reduction <maximumf>, %541, %cst_118 [1] : vector<10x5x5xf32> to vector<10x5xf32>
    %543 = vector.shape_cast %542 : vector<10x5xf32> to vector<10x1x5xf32>
    %544 = vector.broadcast %543 : vector<10x1x5xf32> to vector<10x5x5xf32>
    %545 = arith.cmpf oeq, %541, %544 : vector<10x5x5xf32>
    %c5_i32_119 = arith.constant 5 : i32
    %546 = vector.broadcast %c5_i32_119 : i32 to vector<10x5x5xi32>
    %547 = arith.select %545, %467, %546 : vector<10x5x5xi1>, vector<10x5x5xi32>
    %cst_120 = arith.constant dense<2147483647> : vector<10x5xi32>
    %548 = vector.multi_reduction <minsi>, %547, %cst_120 [1] : vector<10x5x5xi32> to vector<10x5xi32>
    %549 = vector.extract_strided_slice %462 {offsets = [0, 6, 0], sizes = [10, 1, 5], strides = [1, 1, 1]} : vector<10x8x128xf32> to vector<10x1x5xf32>
    %550 = vector.shape_cast %549 : vector<10x1x5xf32> to vector<10x5xf32>
    %551 = arith.addf %542, %550 : vector<10x5xf32>
    %552 = vector.shape_cast %551 : vector<10x5xf32> to vector<10x5x1xf32>
    %553 = vector.broadcast %552 : vector<10x5x1xf32> to vector<10x5x5xf32>
    %554 = arith.addf %553, %466 : vector<10x5x5xf32>
    %cst_121 = arith.constant dense<0xFF800000> : vector<10x5xf32>
    %555 = vector.multi_reduction <maximumf>, %554, %cst_121 [1] : vector<10x5x5xf32> to vector<10x5xf32>
    %556 = vector.shape_cast %555 : vector<10x5xf32> to vector<10x1x5xf32>
    %557 = vector.broadcast %556 : vector<10x1x5xf32> to vector<10x5x5xf32>
    %558 = arith.cmpf oeq, %554, %557 : vector<10x5x5xf32>
    %c5_i32_122 = arith.constant 5 : i32
    %559 = vector.broadcast %c5_i32_122 : i32 to vector<10x5x5xi32>
    %560 = arith.select %558, %467, %559 : vector<10x5x5xi1>, vector<10x5x5xi32>
    %cst_123 = arith.constant dense<2147483647> : vector<10x5xi32>
    %561 = vector.multi_reduction <minsi>, %560, %cst_123 [1] : vector<10x5x5xi32> to vector<10x5xi32>
    %562 = vector.extract_strided_slice %462 {offsets = [0, 7, 0], sizes = [10, 1, 5], strides = [1, 1, 1]} : vector<10x8x128xf32> to vector<10x1x5xf32>
    %563 = vector.shape_cast %562 : vector<10x1x5xf32> to vector<10x5xf32>
    %564 = arith.addf %555, %563 : vector<10x5xf32>
    %c0_124 = arith.constant 0 : index
    %c0_125 = arith.constant 0 : index
    %565 = vector.load %arg9[%c0_124, %c0_125] : memref<1x5xf32, #tpu.memory_space<vmem>>, vector<1x5xf32>
    %566 = vector.broadcast %565 : vector<1x5xf32> to vector<10x5xf32>
    %567 = arith.addf %564, %566 : vector<10x5xf32>
    %cst_126 = arith.constant dense<0xFF800000> : vector<10xf32>
    %568 = vector.multi_reduction <maximumf>, %567, %cst_126 [1] : vector<10x5xf32> to vector<10xf32>
    %569 = vector.shape_cast %568 : vector<10xf32> to vector<10x1xf32>
    %570 = vector.broadcast %569 : vector<10x1xf32> to vector<10x5xf32>
    %571 = arith.cmpf oeq, %567, %570 : vector<10x5xf32>
    %c5_i32_127 = arith.constant 5 : i32
    %572 = vector.broadcast %c5_i32_127 : i32 to vector<10x5xi32>
    %573 = arith.select %571, %468, %572 : vector<10x5xi1>, vector<10x5xi32>
    %cst_128 = arith.constant dense<2147483647> : vector<10xi32>
    %574 = vector.multi_reduction <minsi>, %573, %cst_128 [1] : vector<10x5xi32> to vector<10xi32>
    %575 = vector.shape_cast %574 : vector<10xi32> to vector<10x1xi32>
    %576 = vector.broadcast %575 : vector<10x1xi32> to vector<10x5xi32>
    %577 = arith.cmpi eq, %468, %576 : vector<10x5xi32>
    %c0_i32 = arith.constant 0 : i32
    %578 = vector.broadcast %c0_i32 : i32 to vector<10x5xi32>
    %579 = arith.select %577, %561, %578 : vector<10x5xi1>, vector<10x5xi32>
    %cst_129 = arith.constant dense<0> : vector<10xi32>
    %580 = vector.multi_reduction <add>, %579, %cst_129 [1] : vector<10x5xi32> to vector<10xi32>
    %581 = vector.shape_cast %580 : vector<10xi32> to vector<10x1xi32>
    %582 = vector.broadcast %581 : vector<10x1xi32> to vector<10x5xi32>
    %583 = arith.cmpi eq, %468, %582 : vector<10x5xi32>
    %c0_i32_130 = arith.constant 0 : i32
    %584 = vector.broadcast %c0_i32_130 : i32 to vector<10x5xi32>
    %585 = arith.select %583, %548, %584 : vector<10x5xi1>, vector<10x5xi32>
    %cst_131 = arith.constant dense<0> : vector<10xi32>
    %586 = vector.multi_reduction <add>, %585, %cst_131 [1] : vector<10x5xi32> to vector<10xi32>
    %587 = vector.shape_cast %586 : vector<10xi32> to vector<10x1xi32>
    %588 = vector.broadcast %587 : vector<10x1xi32> to vector<10x5xi32>
    %589 = arith.cmpi eq, %468, %588 : vector<10x5xi32>
    %c0_i32_132 = arith.constant 0 : i32
    %590 = vector.broadcast %c0_i32_132 : i32 to vector<10x5xi32>
    %591 = arith.select %589, %535, %590 : vector<10x5xi1>, vector<10x5xi32>
    %cst_133 = arith.constant dense<0> : vector<10xi32>
    %592 = vector.multi_reduction <add>, %591, %cst_133 [1] : vector<10x5xi32> to vector<10xi32>
    %593 = vector.shape_cast %592 : vector<10xi32> to vector<10x1xi32>
    %594 = vector.broadcast %593 : vector<10x1xi32> to vector<10x5xi32>
    %595 = arith.cmpi eq, %468, %594 : vector<10x5xi32>
    %c0_i32_134 = arith.constant 0 : i32
    %596 = vector.broadcast %c0_i32_134 : i32 to vector<10x5xi32>
    %597 = arith.select %595, %522, %596 : vector<10x5xi1>, vector<10x5xi32>
    %cst_135 = arith.constant dense<0> : vector<10xi32>
    %598 = vector.multi_reduction <add>, %597, %cst_135 [1] : vector<10x5xi32> to vector<10xi32>
    %599 = vector.shape_cast %598 : vector<10xi32> to vector<10x1xi32>
    %600 = vector.broadcast %599 : vector<10x1xi32> to vector<10x5xi32>
    %601 = arith.cmpi eq, %468, %600 : vector<10x5xi32>
    %c0_i32_136 = arith.constant 0 : i32
    %602 = vector.broadcast %c0_i32_136 : i32 to vector<10x5xi32>
    %603 = arith.select %601, %509, %602 : vector<10x5xi1>, vector<10x5xi32>
    %cst_137 = arith.constant dense<0> : vector<10xi32>
    %604 = vector.multi_reduction <add>, %603, %cst_137 [1] : vector<10x5xi32> to vector<10xi32>
    %605 = vector.shape_cast %604 : vector<10xi32> to vector<10x1xi32>
    %606 = vector.broadcast %605 : vector<10x1xi32> to vector<10x5xi32>
    %607 = arith.cmpi eq, %468, %606 : vector<10x5xi32>
    %c0_i32_138 = arith.constant 0 : i32
    %608 = vector.broadcast %c0_i32_138 : i32 to vector<10x5xi32>
    %609 = arith.select %607, %496, %608 : vector<10x5xi1>, vector<10x5xi32>
    %cst_139 = arith.constant dense<0> : vector<10xi32>
    %610 = vector.multi_reduction <add>, %609, %cst_139 [1] : vector<10x5xi32> to vector<10xi32>
    %611 = vector.shape_cast %610 : vector<10xi32> to vector<10x1xi32>
    %612 = vector.broadcast %611 : vector<10x1xi32> to vector<10x5xi32>
    %613 = arith.cmpi eq, %468, %612 : vector<10x5xi32>
    %c0_i32_140 = arith.constant 0 : i32
    %614 = vector.broadcast %c0_i32_140 : i32 to vector<10x5xi32>
    %615 = arith.select %613, %483, %614 : vector<10x5xi1>, vector<10x5xi32>
    %cst_141 = arith.constant dense<0> : vector<10xi32>
    %616 = vector.multi_reduction <add>, %615, %cst_141 [1] : vector<10x5xi32> to vector<10xi32>
    %617 = vector.shape_cast %616 : vector<10xi32> to vector<10x1xi32>
    %618 = tpu.concatenate %617, %611, %605, %599, %593, %587, %581, %575 in 1 : vector<10x1xi32>, vector<10x1xi32>, vector<10x1xi32>, vector<10x1xi32>, vector<10x1xi32>, vector<10x1xi32>, vector<10x1xi32>, vector<10x1xi32> -> vector<10x8xi32>
    %c0_142 = arith.constant 0 : index
    %c0_143 = arith.constant 0 : index
    %619 = vector.load %arg10[%c0_142, %c0_143] : memref<10x8xi32, #tpu.memory_space<vmem>>, vector<10x8xi32>
    tpu.vector_store %arg10[%c0_142, %c0_143], %618 {strides = array<i32>} : memref<10x8xi32, #tpu.memory_space<vmem>>, vector<10x8xi32>,
    return
  }
}

</mosaic_0001>

<llo_original>
// kernel: _pooler_pallas.1
$region0: #{_pooler_pallas.1}
  #allocation0 [shape = 'u32[]', space=smem, size = 0x4, offset = 0x4, fixed_abs, tag = 'smem constant byte address 0x4 - core index']
  #allocation1 [shape = 'u32[144,128]{1,0:T(1,128)}', space=vmem, size = 0x12000, scoped, tag = 'internal scratch']
  %s0 = inlined_call_operand.vmem [shape: f32[10,8,32], index: 0, kind: input, shape index: {}]
  %s1 = inlined_call_operand.vmem [shape: f32[32,128], index: 1, kind: input, shape index: {}]
  %s2 = inlined_call_operand.vmem [shape: f32[1,128], index: 2, kind: input, shape index: {}]
  %s3 = inlined_call_operand.vmem [shape: f32[16,64], index: 3, kind: input, shape index: {}]
  %s4 = inlined_call_operand.vmem [shape: f32[16,64], index: 4, kind: input, shape index: {}]
  %s5 = inlined_call_operand.vmem [shape: f32[32,128], index: 5, kind: input, shape index: {}]
  %s6 = inlined_call_operand.vmem [shape: f32[1,128], index: 6, kind: input, shape index: {}]
  %s7 = inlined_call_operand.vmem [shape: f32[5,5], index: 7, kind: input, shape index: {}]
  %s8 = inlined_call_operand.vmem [shape: f32[1,5], index: 8, kind: input, shape index: {}]
  %s9 = inlined_call_operand.vmem [shape: f32[1,5], index: 9, kind: input, shape index: {}]
  %s10 = inlined_call_operand.vmem [shape: s32[10,8], index: 10, kind: output, shape index: {0}]
  %s11 = inlined_call_operand.vmem [shape: f32[10,8,128], index: 11, kind: output, shape index: {1}]
  %12 = xla_tuple %s10, %s11
  %s13 = sld [smem:[#allocation0]]
  $region58: #{_pooler_pallas.1} parent=0
    _
  %s15 = ssub.s32 1, %s13
  %s16 = scalar_select 0, %s15, %s13
  // Predicated region
  $region2: #{_pooler_pallas.1} parent=0 // pred_check
    _
  $region3: #{_pooler_pallas.1} parent=0 // pred_check_branch
    %18 = sbr.rel (0) target = $region5
  $region4: #{_pooler_pallas.1} parent=0 // pred_region
    _
  $region5: #{_pooler_pallas.1} parent=0 // pred_fallthru
    _
  // Predicated region
  $region6: #{_pooler_pallas.1} parent=0 // pred_check
    _
  $region7: #{_pooler_pallas.1} parent=0 // pred_check_branch
    %20 = sbr.rel (0) target = $region9
  $region8: #{_pooler_pallas.1} parent=0 // pred_region
    _
  $region9: #{_pooler_pallas.1} parent=0 // pred_fallthru
    _
  // Predicated region
  $region10: #{_pooler_pallas.1} parent=0 // pred_check
    _
  $region11: #{_pooler_pallas.1} parent=0 // pred_check_branch
    %22 = sbr.rel (0) target = $region13
  $region12: #{_pooler_pallas.1} parent=0 // pred_region
    _
  $region13: #{_pooler_pallas.1} parent=0 // pred_fallthru
    _
  // Predicated region
  $region14: #{_pooler_pallas.1} parent=0 // pred_check
    _
  $region15: #{_pooler_pallas.1} parent=0 // pred_check_branch
    %24 = sbr.rel (0) target = $region17
  $region16: #{_pooler_pallas.1} parent=0 // pred_region
    _
  $region17: #{_pooler_pallas.1} parent=0 // pred_fallthru
    _
  // Predicated region
  $region18: #{_pooler_pallas.1} parent=0 // pred_check
    _
  $region19: #{_pooler_pallas.1} parent=0 // pred_check_branch
    %26 = sbr.rel (0) target = $region21
  $region20: #{_pooler_pallas.1} parent=0 // pred_region
    _
  $region21: #{_pooler_pallas.1} parent=0 // pred_fallthru
    _
  // Predicated region
  $region22: #{_pooler_pallas.1} parent=0 // pred_check
    _
  $region23: #{_pooler_pallas.1} parent=0 // pred_check_branch
    %28 = sbr.rel (0) target = $region25
  $region24: #{_pooler_pallas.1} parent=0 // pred_region
    _
  $region25: #{_pooler_pallas.1} parent=0 // pred_fallthru
    _
  // Predicated region
  $region26: #{_pooler_pallas.1} parent=0 // pred_check
    _
  $region27: #{_pooler_pallas.1} parent=0 // pred_check_branch
    %30 = sbr.rel (0) target = $region29
  $region28: #{_pooler_pallas.1} parent=0 // pred_region
    _
  $region29: #{_pooler_pallas.1} parent=0 // pred_fallthru
    _
  // Predicated region
  $region30: #{_pooler_pallas.1} parent=0 // pred_check
    _
  $region31: #{_pooler_pallas.1} parent=0 // pred_check_branch
    %32 = sbr.rel (0) target = $region33
  $region32: #{_pooler_pallas.1} parent=0 // pred_region
    _
  $region33: #{_pooler_pallas.1} parent=0 // pred_fallthru
    _
  // Predicated region
  $region34: #{_pooler_pallas.1} parent=0 // pred_check
    _
  $region35: #{_pooler_pallas.1} parent=0 // pred_check_branch
    %34 = sbr.rel (0) target = $region37
  $region36: #{_pooler_pallas.1} parent=0 // pred_region
    _
  $region37: #{_pooler_pallas.1} parent=0 // pred_fallthru
    _
  // Predicated region
  $region38: #{_pooler_pallas.1} parent=0 // pred_check
    _
  $region39: #{_pooler_pallas.1} parent=0 // pred_check_branch
    %36 = sbr.rel (0) target = $region41
  $region40: #{_pooler_pallas.1} parent=0 // pred_region
    _
  $region41: #{_pooler_pallas.1} parent=0 // pred_fallthru
    _
  %v37 = vld [vmem:[%s0] sm:$0xff]
  %v38 = vld [vmem:[%s0 + $0x8] sm:$0xff]
  %v39 = vld [vmem:[%s0 + $0x10] sm:$0xff]
  %v40 = vld [vmem:[%s0 + $0x18] sm:$0xff]
  %v41 = vld [vmem:[%s0 + $0x20] sm:$0xff]
  %v42 = vld [vmem:[%s0 + $0x28] sm:$0xff]
  %v43 = vld [vmem:[%s0 + $0x30] sm:$0xff]
  %v44 = vld [vmem:[%s0 + $0x38] sm:$0xff]
  %v45 = vld [vmem:[%s0 + $0x40] sm:$0xff]
  %v46 = vld [vmem:[%s0 + $0x48] sm:$0xff]
  %v47 = vld [vmem:[%s1] sm:$0xff]
  %v48 = vld [vmem:[%s1 + $0x8] sm:$0xff]
  %v49 = vld [vmem:[%s1 + $0x10] sm:$0xff]
  %v50 = vld [vmem:[%s1 + $0x18] sm:$0xff]
  %v51 = vld [vmem:[%s2] sm:$0x1]
  %v53 = vlaneseq
  %v54 = vshrl.u32 %v53, 7
  %v55 = vsub.s32 0, %v54
  %v56 = vrot.slane %v51, %v55
  %vm58 = vcmask 261120
  %v60 = vsel %vm58, %v37, 0
  %v63 = vsel %vm58, %v38, 0
  %v66 = vsel %vm58, %v39, 0
  %v69 = vsel %vm58, %v40, 0
  %v72 = vsel %vm58, %v41, 0
  %v75 = vsel %vm58, %v42, 0
  %v78 = vsel %vm58, %v43, 0
  %v81 = vsel %vm58, %v44, 0
  %v84 = vsel %vm58, %v45, 0
  %v87 = vsel %vm58, %v46, 0
  %89 = vmatprep.subr.mxu0 0.0
  %90 = vmatpush1.msra.mxu0 0.0
  %91 = vmatprep.subr.mxu0 0.0
  %92 = vmatpush1.msra.mxu0 0.0
  %93 = vmatprep.subr.mxu0 0.0
  %94 = vmatpush1.msra.mxu0 0.0
  %95 = vmatprep.subr.mxu0 0.0
  %96 = vmatpush1.msra.mxu0 0.0
  %97 = vmatprep.subr.mxu0 0.0
  %98 = vmatpush1.msra.mxu0 0.0
  %99 = vmatprep.subr.mxu0 0.0
  %100 = vmatpush1.msra.mxu0 0.0
  %101 = vmatprep.subr.mxu0 0.0
  %102 = vmatpush1.msra.mxu0 0.0
  %103 = vmatprep.subr.mxu0 0.0
  %104 = vmatpush1.msra.mxu0 0.0
  %105 = vmatprep.subr.mxu0 0.0
  %106 = vmatpush1.msra.mxu0 0.0
  %107 = vmatprep.subr.mxu0 0.0
  %108 = vmatpush1.msra.mxu0 0.0
  %109 = vmatprep.subr.mxu0 0.0
  %110 = vmatpush1.msra.mxu0 0.0
  %111 = vmatprep.subr.mxu0 0.0
  %112 = vmatpush1.msra.mxu0 0.0
  %113 = vmatprep.subr.mxu0 0.0
  %114 = vmatpush1.msra.mxu0 %v50
  %115 = vmatprep.subr.mxu0 0.0
  %116 = vmatpush1.msra.mxu0 %v49
  %117 = vmatprep.subr.mxu0 0.0
  %118 = vmatpush1.msra.mxu0 %v48
  %119 = vmatprep.subr.mxu0 0.0
  %120 = vmatpush1.msra.mxu0 %v47
  %121 = vmatprep.subr.mxu0 0.0
  %122 = vmatpush2.msra.mxu0 0.0
  %123 = vmatprep.subr.mxu0 0.0
  %124 = vmatpush2.msra.mxu0 0.0
  %125 = vmatprep.subr.mxu0 0.0
  %126 = vmatpush2.msra.mxu0 0.0
  %127 = vmatprep.subr.mxu0 0.0
  %128 = vmatpush2.msra.mxu0 0.0
  %129 = vmatprep.subr.mxu0 0.0
  %130 = vmatpush2.msra.mxu0 0.0
  %131 = vmatprep.subr.mxu0 0.0
  %132 = vmatpush2.msra.mxu0 0.0
  %133 = vmatprep.subr.mxu0 0.0
  %134 = vmatpush2.msra.mxu0 0.0
  %135 = vmatprep.subr.mxu0 0.0
  %136 = vmatpush2.msra.mxu0 0.0
  %137 = vmatprep.subr.mxu0 0.0
  %138 = vmatpush2.msra.mxu0 0.0
  %139 = vmatprep.subr.mxu0 0.0
  %140 = vmatpush2.msra.mxu0 0.0
  %141 = vmatprep.subr.mxu0 0.0
  %142 = vmatpush2.msra.mxu0 0.0
  %143 = vmatprep.subr.mxu0 0.0
  %144 = vmatpush2.msra.mxu0 0.0
  %145 = vmatprep.subr.mxu0 0.0
  %146 = vmatpush2.msra.mxu0 0.0
  %147 = vmatprep.subr.mxu0 0.0
  %148 = vmatpush2.msra.mxu0 0.0
  %149 = vmatprep.subr.mxu0 0.0
  %150 = vmatpush2.msra.mxu0 0.0
  %151 = vmatprep.subr.mxu0 0.0
  %152 = vmatpush2.msra.mxu0 0.0
  %153 = vmatprep.mubr.f32.mxu0 0.0
  %154 = vmatmul.mubr.f32.gmra.mxu0 %v60
  %v155 = vpop.f32.mrf.mxu0
  %v156 = vadd.f32 %v56, %v155
  %v157 = vpop.f32.mrf.mxu0
  %158 = vmatprep.mubr.f32.mxu0 0.0
  %159 = vmatmul.mubr.f32.gmra.mxu0 %v63
  %v160 = vpop.f32.mrf.mxu0
  %v161 = vadd.f32 %v56, %v160
  %v162 = vpop.f32.mrf.mxu0
  %163 = vmatprep.mubr.f32.mxu0 0.0
  %164 = vmatmul.mubr.f32.gmra.mxu0 %v66
  %v165 = vpop.f32.mrf.mxu0
  %v166 = vadd.f32 %v56, %v165
  %v167 = vpop.f32.mrf.mxu0
  %168 = vmatprep.mubr.f32.mxu0 0.0
  %169 = vmatmul.mubr.f32.gmra.mxu0 %v69
  %v170 = vpop.f32.mrf.mxu0
  %v171 = vadd.f32 %v56, %v170
  %v172 = vpop.f32.mrf.mxu0
  %173 = vmatprep.mubr.f32.mxu0 0.0
  %174 = vmatmul.mubr.f32.gmra.mxu0 %v72
  %v175 = vpop.f32.mrf.mxu0
  %v176 = vadd.f32 %v56, %v175
  %v177 = vpop.f32.mrf.mxu0
  %178 = vmatprep.mubr.f32.mxu0 0.0
  %179 = vmatmul.mubr.f32.gmra.mxu0 %v75
  %v180 = vpop.f32.mrf.mxu0
  %v181 = vadd.f32 %v56, %v180
  %v182 = vpop.f32.mrf.mxu0
  %183 = vmatprep.mubr.f32.mxu0 0.0
  %184 = vmatmul.mubr.f32.gmra.mxu0 %v78
  %v185 = vpop.f32.mrf.mxu0
  %v186 = vadd.f32 %v56, %v185
  %v187 = vpop.f32.mrf.mxu0
  %188 = vmatprep.mubr.f32.mxu0 0.0
  %189 = vmatmul.mubr.f32.gmra.mxu0 %v81
  %v190 = vpop.f32.mrf.mxu0
  %v191 = vadd.f32 %v56, %v190
  %v192 = vpop.f32.mrf.mxu0
  %193 = vmatprep.mubr.f32.mxu0 0.0
  %194 = vmatmul.mubr.f32.gmra.mxu0 %v84
  %v195 = vpop.f32.mrf.mxu0
  %v196 = vadd.f32 %v56, %v195
  %v197 = vpop.f32.mrf.mxu0
  %198 = vmatprep.mubr.f32.mxu0 0.0
  %199 = vmatmul.mubr.f32.gmra.mxu0 %v87
  %v200 = vpop.f32.mrf.mxu0
  %v201 = vadd.f32 %v56, %v200
  %v202 = vpop.f32.mrf.mxu0
  %203 = vdwg.mxu0
  %v204 = vld [vmem:[%s3] sm:$0xff]
  %v205 = vld [vmem:[%s3 + $0x8] sm:$0xff]
  %v206 = vld [vmem:[%s4] sm:$0xff]
  %v207 = vld [vmem:[%s4 + $0x8] sm:$0xff]
  %vm208 = vcmask 130048
  %v210 = vsel %vm208, 0.0, 0
  %212 = vmatprep.subr.mxu0 0.0
  %213 = vmatpush1.msra.mxu0 0.0
  %214 = vmatprep.subr.mxu0 0.0
  %215 = vmatpush1.msra.mxu0 0.0
  %216 = vmatprep.subr.mxu0 0.0
  %217 = vmatpush1.msra.mxu0 0.0
  %218 = vmatprep.subr.mxu0 0.0
  %219 = vmatpush1.msra.mxu0 0.0
  %220 = vmatprep.subr.mxu0 0.0
  %221 = vmatpush1.msra.mxu0 0.0
  %222 = vmatprep.subr.mxu0 0.0
  %223 = vmatpush1.msra.mxu0 0.0
  %224 = vmatprep.subr.mxu0 0.0
  %225 = vmatpush1.msra.mxu0 0.0
  %226 = vmatprep.subr.mxu0 0.0
  %227 = vmatpush1.msra.mxu0 0.0
  %228 = vmatprep.subr.mxu0 0.0
  %229 = vmatpush1.msra.mxu0 0.0
  %230 = vmatprep.subr.mxu0 0.0
  %231 = vmatpush1.msra.mxu0 0.0
  %232 = vmatprep.subr.mxu0 0.0
  %233 = vmatpush1.msra.mxu0 0.0
  %234 = vmatprep.subr.mxu0 0.0
  %235 = vmatpush1.msra.mxu0 0.0
  %236 = vmatprep.subr.mxu0 0.0
  %237 = vmatpush1.msra.mxu0 0.0
  %238 = vmatprep.subr.mxu0 0.0
  %239 = vmatpush1.msra.mxu0 0.0
  %240 = vmatprep.subr.mxu0 0.0
  %241 = vmatpush1.msra.mxu0 %v205
  %242 = vmatprep.subr.mxu0 0.0
  %243 = vmatpush1.msra.mxu0 %v204
  %244 = vmatprep.subr.mxu0 0.0
  %245 = vmatpush2.msra.mxu0 0.0
  %246 = vmatprep.subr.mxu0 0.0
  %247 = vmatpush2.msra.mxu0 0.0
  %248 = vmatprep.subr.mxu0 0.0
  %249 = vmatpush2.msra.mxu0 0.0
  %250 = vmatprep.subr.mxu0 0.0
  %251 = vmatpush2.msra.mxu0 0.0
  %252 = vmatprep.subr.mxu0 0.0
  %253 = vmatpush2.msra.mxu0 0.0
  %254 = vmatprep.subr.mxu0 0.0
  %255 = vmatpush2.msra.mxu0 0.0
  %256 = vmatprep.subr.mxu0 0.0
  %257 = vmatpush2.msra.mxu0 0.0
  %258 = vmatprep.subr.mxu0 0.0
  %259 = vmatpush2.msra.mxu0 0.0
  %260 = vmatprep.subr.mxu0 0.0
  %261 = vmatpush2.msra.mxu0 0.0
  %262 = vmatprep.subr.mxu0 0.0
  %263 = vmatpush2.msra.mxu0 0.0
  %264 = vmatprep.subr.mxu0 0.0
  %265 = vmatpush2.msra.mxu0 0.0
  %266 = vmatprep.subr.mxu0 0.0
  %267 = vmatpush2.msra.mxu0 0.0
  %268 = vmatprep.subr.mxu0 0.0
  %269 = vmatpush2.msra.mxu0 0.0
  %270 = vmatprep.subr.mxu0 0.0
  %271 = vmatpush2.msra.mxu0 0.0
  %272 = vmatprep.subr.mxu0 0.0
  %273 = vmatpush2.msra.mxu0 0.0
  %274 = vmatprep.subr.mxu0 0.0
  %275 = vmatpush2.msra.mxu0 0.0
  %276 = vmatprep.mubr.f32.mxu0 0.0
  %277 = vmatmul.mubr.f32.gmra.mxu0 %v210
  %v278 = vpop.f32.mrf.mxu0
  %v279 = vadd.f32 0.0, %v278
  %v280 = vpop.f32.mrf.mxu0
  %281 = vdwg.mxu0
  %v282 = vadd.f32 %v156, %v279
  %v283 = vmul.f32 %v282, 0.5
  %v284 = vtanh.pop %v283
  %v285 = vmul.f32 %v284, 0.5
  %v286 = vadd.f32 %v285, 0.5
  %v287 = vtanh.pop %v282
  %v288 = vmul.f32 %v286, 0.0
  %290 = vrot.lane.b32.xlu0 %v287, 80
  %v291 = vpop.permute.xlu0 %290
  %v293 = vmul.f32 %v286, %v291
  %295 = vrot.lane.b32.xlu0 %v293, 16
  %v296 = vpop.permute.xlu0 %295
  %v298 = vadd.f32 %v288, %v296
  %v299 = vtanh.pop %v298
  %301 = vrot.lane.b32.xlu0 %v299, 16
  %v302 = vpop.permute.xlu0 %301
  %v304 = vmul.f32 %v286, %v302
  %306 = vrot.lane.b32.xlu0 %v304, 96
  %v307 = vpop.permute.xlu0 %306
  %v308 = vsel %vm208, %v307, 0
  %310 = vmatprep.subr.mxu0 0.0
  %311 = vmatpush1.msra.mxu0 0.0
  %312 = vmatprep.subr.mxu0 0.0
  %313 = vmatpush1.msra.mxu0 0.0
  %314 = vmatprep.subr.mxu0 0.0
  %315 = vmatpush1.msra.mxu0 0.0
  %316 = vmatprep.subr.mxu0 0.0
  %317 = vmatpush1.msra.mxu0 0.0
  %318 = vmatprep.subr.mxu0 0.0
  %319 = vmatpush1.msra.mxu0 0.0
  %320 = vmatprep.subr.mxu0 0.0
  %321 = vmatpush1.msra.mxu0 0.0
  %322 = vmatprep.subr.mxu0 0.0
  %323 = vmatpush1.msra.mxu0 0.0
  %324 = vmatprep.subr.mxu0 0.0
  %325 = vmatpush1.msra.mxu0 0.0
  %326 = vmatprep.subr.mxu0 0.0
  %327 = vmatpush1.msra.mxu0 0.0
  %328 = vmatprep.subr.mxu0 0.0
  %329 = vmatpush1.msra.mxu0 0.0
  %330 = vmatprep.subr.mxu0 0.0
  %331 = vmatpush1.msra.mxu0 0.0
  %332 = vmatprep.subr.mxu0 0.0
  %333 = vmatpush1.msra.mxu0 0.0
  %334 = vmatprep.subr.mxu0 0.0
  %335 = vmatpush1.msra.mxu0 0.0
  %336 = vmatprep.subr.mxu0 0.0
  %337 = vmatpush1.msra.mxu0 0.0
  %338 = vmatprep.subr.mxu0 0.0
  %339 = vmatpush1.msra.mxu0 %v205
  %340 = vmatprep.subr.mxu0 0.0
  %341 = vmatpush1.msra.mxu0 %v204
  %342 = vmatprep.subr.mxu0 0.0
  %343 = vmatpush2.msra.mxu0 0.0
  %344 = vmatprep.subr.mxu0 0.0
  %345 = vmatpush2.msra.mxu0 0.0
  %346 = vmatprep.subr.mxu0 0.0
  %347 = vmatpush2.msra.mxu0 0.0
  %348 = vmatprep.subr.mxu0 0.0
  %349 = vmatpush2.msra.mxu0 0.0
  %350 = vmatprep.subr.mxu0 0.0
  %351 = vmatpush2.msra.mxu0 0.0
  %352 = vmatprep.subr.mxu0 0.0
  %353 = vmatpush2.msra.mxu0 0.0
  %354 = vmatprep.subr.mxu0 0.0
  %355 = vmatpush2.msra.mxu0 0.0
  %356 = vmatprep.subr.mxu0 0.0
  %357 = vmatpush2.msra.mxu0 0.0
  %358 = vmatprep.subr.mxu0 0.0
  %359 = vmatpush2.msra.mxu0 0.0
  %360 = vmatprep.subr.mxu0 0.0
  %361 = vmatpush2.msra.mxu0 0.0
  %362 = vmatprep.subr.mxu0 0.0
  %363 = vmatpush2.msra.mxu0 0.0
  %364 = vmatprep.subr.mxu0 0.0
  %365 = vmatpush2.msra.mxu0 0.0
  %366 = vmatprep.subr.mxu0 0.0
  %367 = vmatpush2.msra.mxu0 0.0
  %368 = vmatprep.subr.mxu0 0.0
  %369 = vmatpush2.msra.mxu0 0.0
  %370 = vmatprep.subr.mxu0 0.0
  %371 = vmatpush2.msra.mxu0 0.0
  %372 = vmatprep.subr.mxu0 0.0
  %373 = vmatpush2.msra.mxu0 0.0
  %374 = vmatprep.mubr.f32.mxu0 0.0
  %375 = vmatmul.mubr.f32.gmra.mxu0 %v308
  %v376 = vpop.f32.mrf.mxu0
  %v377 = vadd.f32 0.0, %v376
  %v378 = vpop.f32.mrf.mxu0
  %379 = vdwg.mxu0
  %v380 = vadd.f32 %v161, %v377
  %v381 = vmul.f32 %v380, 0.5
  %v382 = vtanh.pop %v381
  %v383 = vmul.f32 %v382, 0.5
  %v384 = vadd.f32 %v383, 0.5
  %v385 = vtanh.pop %v380
  %v386 = vmul.f32 %v384, %v298
  %388 = vrot.lane.b32.xlu0 %v385, 80
  %v389 = vpop.permute.xlu0 %388
  %v391 = vmul.f32 %v384, %v389
  %393 = vrot.lane.b32.xlu0 %v391, 16
  %v394 = vpop.permute.xlu0 %393
  %v396 = vadd.f32 %v386, %v394
  %v397 = vtanh.pop %v396
  %399 = vrot.lane.b32.xlu0 %v397, 16
  %v400 = vpop.permute.xlu0 %399
  %v402 = vmul.f32 %v384, %v400
  %404 = vrot.lane.b32.xlu0 %v402, 96
  %v405 = vpop.permute.xlu0 %404
  %v406 = vsel %vm208, %v405, 0
  %408 = vmatprep.subr.mxu0 0.0
  %409 = vmatpush1.msra.mxu0 0.0
  %410 = vmatprep.subr.mxu0 0.0
  %411 = vmatpush1.msra.mxu0 0.0
  %412 = vmatprep.subr.mxu0 0.0
  %413 = vmatpush1.msra.mxu0 0.0
  %414 = vmatprep.subr.mxu0 0.0
  %415 = vmatpush1.msra.mxu0 0.0
  %416 = vmatprep.subr.mxu0 0.0
  %417 = vmatpush1.msra.mxu0 0.0
  %418 = vmatprep.subr.mxu0 0.0
  %419 = vmatpush1.msra.mxu0 0.0
  %420 = vmatprep.subr.mxu0 0.0
  %421 = vmatpush1.msra.mxu0 0.0
  %422 = vmatprep.subr.mxu0 0.0
  %423 = vmatpush1.msra.mxu0 0.0
  %424 = vmatprep.subr.mxu0 0.0
  %425 = vmatpush1.msra.mxu0 0.0
  %426 = vmatprep.subr.mxu0 0.0
  %427 = vmatpush1.msra.mxu0 0.0
  %428 = vmatprep.subr.mxu0 0.0
  %429 = vmatpush1.msra.mxu0 0.0
  %430 = vmatprep.subr.mxu0 0.0
  %431 = vmatpush1.msra.mxu0 0.0
  %432 = vmatprep.subr.mxu0 0.0
  %433 = vmatpush1.msra.mxu0 0.0
  %434 = vmatprep.subr.mxu0 0.0
  %435 = vmatpush1.msra.mxu0 0.0
  %436 = vmatprep.subr.mxu0 0.0
  %437 = vmatpush1.msra.mxu0 %v205
  %438 = vmatprep.subr.mxu0 0.0
  %439 = vmatpush1.msra.mxu0 %v204
  %440 = vmatprep.subr.mxu0 0.0
  %441 = vmatpush2.msra.mxu0 0.0
  %442 = vmatprep.subr.mxu0 0.0
  %443 = vmatpush2.msra.mxu0 0.0
  %444 = vmatprep.subr.mxu0 0.0
  %445 = vmatpush2.msra.mxu0 0.0
  %446 = vmatprep.subr.mxu0 0.0
  %447 = vmatpush2.msra.mxu0 0.0
  %448 = vmatprep.subr.mxu0 0.0
  %449 = vmatpush2.msra.mxu0 0.0
  %450 = vmatprep.subr.mxu0 0.0
  %451 = vmatpush2.msra.mxu0 0.0
  %452 = vmatprep.subr.mxu0 0.0
  %453 = vmatpush2.msra.mxu0 0.0
  %454 = vmatprep.subr.mxu0 0.0
  %455 = vmatpush2.msra.mxu0 0.0
  %456 = vmatprep.subr.mxu0 0.0
  %457 = vmatpush2.msra.mxu0 0.0
  %458 = vmatprep.subr.mxu0 0.0
  %459 = vmatpush2.msra.mxu0 0.0
  %460 = vmatprep.subr.mxu0 0.0
  %461 = vmatpush2.msra.mxu0 0.0
  %462 = vmatprep.subr.mxu0 0.0
  %463 = vmatpush2.msra.mxu0 0.0
  %464 = vmatprep.subr.mxu0 0.0
  %465 = vmatpush2.msra.mxu0 0.0
  %466 = vmatprep.subr.mxu0 0.0
  %467 = vmatpush2.msra.mxu0 0.0
  %468 = vmatprep.subr.mxu0 0.0
  %469 = vmatpush2.msra.mxu0 0.0
  %470 = vmatprep.subr.mxu0 0.0
  %471 = vmatpush2.msra.mxu0 0.0
  %472 = vmatprep.mubr.f32.mxu0 0.0
  %473 = vmatmul.mubr.f32.gmra.mxu0 %v406
  %v474 = vpop.f32.mrf.mxu0
  %v475 = vadd.f32 0.0, %v474
  %v476 = vpop.f32.mrf.mxu0
  %477 = vdwg.mxu0
  %v478 = vadd.f32 %v166, %v475
  %v479 = vmul.f32 %v478, 0.5
  %v480 = vtanh.pop %v479
  %v481 = vmul.f32 %v480, 0.5
  %v482 = vadd.f32 %v481, 0.5
  %v483 = vtanh.pop %v478
  %v484 = vmul.f32 %v482, %v396
  %486 = vrot.lane.b32.xlu0 %v483, 80
  %v487 = vpop.permute.xlu0 %486
  %v489 = vmul.f32 %v482, %v487
  %491 = vrot.lane.b32.xlu0 %v489, 16
  %v492 = vpop.permute.xlu0 %491
  %v494 = vadd.f32 %v484, %v492
  %v495 = vtanh.pop %v494
  %497 = vrot.lane.b32.xlu0 %v495, 16
  %v498 = vpop.permute.xlu0 %497
  %v500 = vmul.f32 %v482, %v498
  %502 = vrot.lane.b32.xlu0 %v500, 96
  %v503 = vpop.permute.xlu0 %502
  %v504 = vsel %vm208, %v503, 0
  %506 = vmatprep.subr.mxu0 0.0
  %507 = vmatpush1.msra.mxu0 0.0
  %508 = vmatprep.subr.mxu0 0.0
  %509 = vmatpush1.msra.mxu0 0.0
  %510 = vmatprep.subr.mxu0 0.0
  %511 = vmatpush1.msra.mxu0 0.0
  %512 = vmatprep.subr.mxu0 0.0
  %513 = vmatpush1.msra.mxu0 0.0
  %514 = vmatprep.subr.mxu0 0.0
  %515 = vmatpush1.msra.mxu0 0.0
  %516 = vmatprep.subr.mxu0 0.0
  %517 = vmatpush1.msra.mxu0 0.0
  %518 = vmatprep.subr.mxu0 0.0
  %519 = vmatpush1.msra.mxu0 0.0
  %520 = vmatprep.subr.mxu0 0.0
  %521 = vmatpush1.msra.mxu0 0.0
  %522 = vmatprep.subr.mxu0 0.0
  %523 = vmatpush1.msra.mxu0 0.0
  %524 = vmatprep.subr.mxu0 0.0
  %525 = vmatpush1.msra.mxu0 0.0
  %526 = vmatprep.subr.mxu0 0.0
  %527 = vmatpush1.msra.mxu0 0.0
  %528 = vmatprep.subr.mxu0 0.0
  %529 = vmatpush1.msra.mxu0 0.0
  %530 = vmatprep.subr.mxu0 0.0
  %531 = vmatpush1.msra.mxu0 0.0
  %532 = vmatprep.subr.mxu0 0.0
  %533 = vmatpush1.msra.mxu0 0.0
  %534 = vmatprep.subr.mxu0 0.0
  %535 = vmatpush1.msra.mxu0 %v205
  %536 = vmatprep.subr.mxu0 0.0
  %537 = vmatpush1.msra.mxu0 %v204
  %538 = vmatprep.subr.mxu0 0.0
  %539 = vmatpush2.msra.mxu0 0.0
  %540 = vmatprep.subr.mxu0 0.0
  %541 = vmatpush2.msra.mxu0 0.0
  %542 = vmatprep.subr.mxu0 0.0
  %543 = vmatpush2.msra.mxu0 0.0
  %544 = vmatprep.subr.mxu0 0.0
  %545 = vmatpush2.msra.mxu0 0.0
  %546 = vmatprep.subr.mxu0 0.0
  %547 = vmatpush2.msra.mxu0 0.0
  %548 = vmatprep.subr.mxu0 0.0
  %549 = vmatpush2.msra.mxu0 0.0
  %550 = vmatprep.subr.mxu0 0.0
  %551 = vmatpush2.msra.mxu0 0.0
  %552 = vmatprep.subr.mxu0 0.0
  %553 = vmatpush2.msra.mxu0 0.0
  %554 = vmatprep.subr.mxu0 0.0
  %555 = vmatpush2.msra.mxu0 0.0
  %556 = vmatprep.subr.mxu0 0.0
  %557 = vmatpush2.msra.mxu0 0.0
  %558 = vmatprep.subr.mxu0 0.0
  %559 = vmatpush2.msra.mxu0 0.0
  %560 = vmatprep.subr.mxu0 0.0
  %561 = vmatpush2.msra.mxu0 0.0
  %562 = vmatprep.subr.mxu0 0.0
  %563 = vmatpush2.msra.mxu0 0.0
  %564 = vmatprep.subr.mxu0 0.0
  %565 = vmatpush2.msra.mxu0 0.0
  %566 = vmatprep.subr.mxu0 0.0
  %567 = vmatpush2.msra.mxu0 0.0
  %568 = vmatprep.subr.mxu0 0.0
  %569 = vmatpush2.msra.mxu0 0.0
  %570 = vmatprep.mubr.f32.mxu0 0.0
  %571 = vmatmul.mubr.f32.gmra.mxu0 %v504
  %v572 = vpop.f32.mrf.mxu0
  %v573 = vadd.f32 0.0, %v572
  %v574 = vpop.f32.mrf.mxu0
  %575 = vdwg.mxu0
  %v576 = vadd.f32 %v171, %v573
  %v577 = vmul.f32 %v576, 0.5
  %v578 = vtanh.pop %v577
  %v579 = vmul.f32 %v578, 0.5
  %v580 = vadd.f32 %v579, 0.5
  %v581 = vtanh.pop %v576
  %v582 = vmul.f32 %v580, %v494
  %584 = vrot.lane.b32.xlu0 %v581, 80
  %v585 = vpop.permute.xlu0 %584
  %v587 = vmul.f32 %v580, %v585
  %589 = vrot.lane.b32.xlu0 %v587, 16
  %v590 = vpop.permute.xlu0 %589
  %v592 = vadd.f32 %v582, %v590
  %v593 = vtanh.pop %v592
  %595 = vrot.lane.b32.xlu0 %v593, 16
  %v596 = vpop.permute.xlu0 %595
  %v598 = vmul.f32 %v580, %v596
  %600 = vrot.lane.b32.xlu0 %v598, 96
  %v601 = vpop.permute.xlu0 %600
  %v602 = vsel %vm208, %v601, 0
  %604 = vmatprep.subr.mxu0 0.0
  %605 = vmatpush1.msra.mxu0 0.0
  %606 = vmatprep.subr.mxu0 0.0
  %607 = vmatpush1.msra.mxu0 0.0
  %608 = vmatprep.subr.mxu0 0.0
  %609 = vmatpush1.msra.mxu0 0.0
  %610 = vmatprep.subr.mxu0 0.0
  %611 = vmatpush1.msra.mxu0 0.0
  %612 = vmatprep.subr.mxu0 0.0
  %613 = vmatpush1.msra.mxu0 0.0
  %614 = vmatprep.subr.mxu0 0.0
  %615 = vmatpush1.msra.mxu0 0.0
  %616 = vmatprep.subr.mxu0 0.0
  %617 = vmatpush1.msra.mxu0 0.0
  %618 = vmatprep.subr.mxu0 0.0
  %619 = vmatpush1.msra.mxu0 0.0
  %620 = vmatprep.subr.mxu0 0.0
  %621 = vmatpush1.msra.mxu0 0.0
  %622 = vmatprep.subr.mxu0 0.0
  %623 = vmatpush1.msra.mxu0 0.0
  %624 = vmatprep.subr.mxu0 0.0
  %625 = vmatpush1.msra.mxu0 0.0
  %626 = vmatprep.subr.mxu0 0.0
  %627 = vmatpush1.msra.mxu0 0.0
  %628 = vmatprep.subr.mxu0 0.0
  %629 = vmatpush1.msra.mxu0 0.0
  %630 = vmatprep.subr.mxu0 0.0
  %631 = vmatpush1.msra.mxu0 0.0
  %632 = vmatprep.subr.mxu0 0.0
  %633 = vmatpush1.msra.mxu0 %v205
  %634 = vmatprep.subr.mxu0 0.0
  %635 = vmatpush1.msra.mxu0 %v204
  %636 = vmatprep.subr.mxu0 0.0
  %637 = vmatpush2.msra.mxu0 0.0
  %638 = vmatprep.subr.mxu0 0.0
  %639 = vmatpush2.msra.mxu0 0.0
  %640 = vmatprep.subr.mxu0 0.0
  %641 = vmatpush2.msra.mxu0 0.0
  %642 = vmatprep.subr.mxu0 0.0
  %643 = vmatpush2.msra.mxu0 0.0
  %644 = vmatprep.subr.mxu0 0.0
  %645 = vmatpush2.msra.mxu0 0.0
  %646 = vmatprep.subr.mxu0 0.0
  %647 = vmatpush2.msra.mxu0 0.0
  %648 = vmatprep.subr.mxu0 0.0
  %649 = vmatpush2.msra.mxu0 0.0
  %650 = vmatprep.subr.mxu0 0.0
  %651 = vmatpush2.msra.mxu0 0.0
  %652 = vmatprep.subr.mxu0 0.0
  %653 = vmatpush2.msra.mxu0 0.0
  %654 = vmatprep.subr.mxu0 0.0
  %655 = vmatpush2.msra.mxu0 0.0
  %656 = vmatprep.subr.mxu0 0.0
  %657 = vmatpush2.msra.mxu0 0.0
  %658 = vmatprep.subr.mxu0 0.0
  %659 = vmatpush2.msra.mxu0 0.0
  %660 = vmatprep.subr.mxu0 0.0
  %661 = vmatpush2.msra.mxu0 0.0
  %662 = vmatprep.subr.mxu0 0.0
  %663 = vmatpush2.msra.mxu0 0.0
  %664 = vmatprep.subr.mxu0 0.0
  %665 = vmatpush2.msra.mxu0 0.0
  %666 = vmatprep.subr.mxu0 0.0
  %667 = vmatpush2.msra.mxu0 0.0
  %668 = vmatprep.mubr.f32.mxu0 0.0
  %669 = vmatmul.mubr.f32.gmra.mxu0 %v602
  %v670 = vpop.f32.mrf.mxu0
  %v671 = vadd.f32 0.0, %v670
  %v672 = vpop.f32.mrf.mxu0
  %673 = vdwg.mxu0
  %v674 = vadd.f32 %v176, %v671
  %v675 = vmul.f32 %v674, 0.5
  %v676 = vtanh.pop %v675
  %v677 = vmul.f32 %v676, 0.5
  %v678 = vadd.f32 %v677, 0.5
  %v679 = vtanh.pop %v674
  %v680 = vmul.f32 %v678, %v592
  %682 = vrot.lane.b32.xlu0 %v679, 80
  %v683 = vpop.permute.xlu0 %682
  %v685 = vmul.f32 %v678, %v683
  %687 = vrot.lane.b32.xlu0 %v685, 16
  %v688 = vpop.permute.xlu0 %687
  %v690 = vadd.f32 %v680, %v688
  %v691 = vtanh.pop %v690
  %693 = vrot.lane.b32.xlu0 %v691, 16
  %v694 = vpop.permute.xlu0 %693
  %v696 = vmul.f32 %v678, %v694
  %698 = vrot.lane.b32.xlu0 %v696, 96
  %v699 = vpop.permute.xlu0 %698
  %v700 = vsel %vm208, %v699, 0
  %702 = vmatprep.subr.mxu0 0.0
  %703 = vmatpush1.msra.mxu0 0.0
  %704 = vmatprep.subr.mxu0 0.0
  %705 = vmatpush1.msra.mxu0 0.0
  %706 = vmatprep.subr.mxu0 0.0
  %707 = vmatpush1.msra.mxu0 0.0
  %708 = vmatprep.subr.mxu0 0.0
  %709 = vmatpush1.msra.mxu0 0.0
  %710 = vmatprep.subr.mxu0 0.0
  %711 = vmatpush1.msra.mxu0 0.0
  %712 = vmatprep.subr.mxu0 0.0
  %713 = vmatpush1.msra.mxu0 0.0
  %714 = vmatprep.subr.mxu0 0.0
  %715 = vmatpush1.msra.mxu0 0.0
  %716 = vmatprep.subr.mxu0 0.0
  %717 = vmatpush1.msra.mxu0 0.0
  %718 = vmatprep.subr.mxu0 0.0
  %719 = vmatpush1.msra.mxu0 0.0
  %720 = vmatprep.subr.mxu0 0.0
  %721 = vmatpush1.msra.mxu0 0.0
  %722 = vmatprep.subr.mxu0 0.0
  %723 = vmatpush1.msra.mxu0 0.0
  %724 = vmatprep.subr.mxu0 0.0
  %725 = vmatpush1.msra.mxu0 0.0
  %726 = vmatprep.subr.mxu0 0.0
  %727 = vmatpush1.msra.mxu0 0.0
  %728 = vmatprep.subr.mxu0 0.0
  %729 = vmatpush1.msra.mxu0 0.0
  %730 = vmatprep.subr.mxu0 0.0
  %731 = vmatpush1.msra.mxu0 %v205
  %732 = vmatprep.subr.mxu0 0.0
  %733 = vmatpush1.msra.mxu0 %v204
  %734 = vmatprep.subr.mxu0 0.0
  %735 = vmatpush2.msra.mxu0 0.0
  %736 = vmatprep.subr.mxu0 0.0
  %737 = vmatpush2.msra.mxu0 0.0
  %738 = vmatprep.subr.mxu0 0.0
  %739 = vmatpush2.msra.mxu0 0.0
  %740 = vmatprep.subr.mxu0 0.0
  %741 = vmatpush2.msra.mxu0 0.0
  %742 = vmatprep.subr.mxu0 0.0
  %743 = vmatpush2.msra.mxu0 0.0
  %744 = vmatprep.subr.mxu0 0.0
  %745 = vmatpush2.msra.mxu0 0.0
  %746 = vmatprep.subr.mxu0 0.0
  %747 = vmatpush2.msra.mxu0 0.0
  %748 = vmatprep.subr.mxu0 0.0
  %749 = vmatpush2.msra.mxu0 0.0
  %750 = vmatprep.subr.mxu0 0.0
  %751 = vmatpush2.msra.mxu0 0.0
  %752 = vmatprep.subr.mxu0 0.0
  %753 = vmatpush2.msra.mxu0 0.0
  %754 = vmatprep.subr.mxu0 0.0
  %755 = vmatpush2.msra.mxu0 0.0
  %756 = vmatprep.subr.mxu0 0.0
  %757 = vmatpush2.msra.mxu0 0.0
  %758 = vmatprep.subr.mxu0 0.0
  %759 = vmatpush2.msra.mxu0 0.0
  %760 = vmatprep.subr.mxu0 0.0
  %761 = vmatpush2.msra.mxu0 0.0
  %762 = vmatprep.subr.mxu0 0.0
  %763 = vmatpush2.msra.mxu0 0.0
  %764 = vmatprep.subr.mxu0 0.0
  %765 = vmatpush2.msra.mxu0 0.0
  %766 = vmatprep.mubr.f32.mxu0 0.0
  %767 = vmatmul.mubr.f32.gmra.mxu0 %v700
  %v768 = vpop.f32.mrf.mxu0
  %v769 = vadd.f32 0.0, %v768
  %v770 = vpop.f32.mrf.mxu0
  %771 = vdwg.mxu0
  %v772 = vadd.f32 %v181, %v769
  %v773 = vmul.f32 %v772, 0.5
  %v774 = vtanh.pop %v773
  %v775 = vmul.f32 %v774, 0.5
  %v776 = vadd.f32 %v775, 0.5
  %v777 = vtanh.pop %v772
  %v778 = vmul.f32 %v776, %v690
  %780 = vrot.lane.b32.xlu0 %v777, 80
  %v781 = vpop.permute.xlu0 %780
  %v783 = vmul.f32 %v776, %v781
  %785 = vrot.lane.b32.xlu0 %v783, 16
  %v786 = vpop.permute.xlu0 %785
  %v788 = vadd.f32 %v778, %v786
  %v789 = vtanh.pop %v788
  %791 = vrot.lane.b32.xlu0 %v789, 16
  %v792 = vpop.permute.xlu0 %791
  %v794 = vmul.f32 %v776, %v792
  %796 = vrot.lane.b32.xlu0 %v794, 96
  %v797 = vpop.permute.xlu0 %796
  %v798 = vsel %vm208, %v797, 0
  %800 = vmatprep.subr.mxu0 0.0
  %801 = vmatpush1.msra.mxu0 0.0
  %802 = vmatprep.subr.mxu0 0.0
  %803 = vmatpush1.msra.mxu0 0.0
  %804 = vmatprep.subr.mxu0 0.0
  %805 = vmatpush1.msra.mxu0 0.0
  %806 = vmatprep.subr.mxu0 0.0
  %807 = vmatpush1.msra.mxu0 0.0
  %808 = vmatprep.subr.mxu0 0.0
  %809 = vmatpush1.msra.mxu0 0.0
  %810 = vmatprep.subr.mxu0 0.0
  %811 = vmatpush1.msra.mxu0 0.0
  %812 = vmatprep.subr.mxu0 0.0
  %813 = vmatpush1.msra.mxu0 0.0
  %814 = vmatprep.subr.mxu0 0.0
  %815 = vmatpush1.msra.mxu0 0.0
  %816 = vmatprep.subr.mxu0 0.0
  %817 = vmatpush1.msra.mxu0 0.0
  %818 = vmatprep.subr.mxu0 0.0
  %819 = vmatpush1.msra.mxu0 0.0
  %820 = vmatprep.subr.mxu0 0.0
  %821 = vmatpush1.msra.mxu0 0.0
  %822 = vmatprep.subr.mxu0 0.0
  %823 = vmatpush1.msra.mxu0 0.0
  %824 = vmatprep.subr.mxu0 0.0
  %825 = vmatpush1.msra.mxu0 0.0
  %826 = vmatprep.subr.mxu0 0.0
  %827 = vmatpush1.msra.mxu0 0.0
  %828 = vmatprep.subr.mxu0 0.0
  %829 = vmatpush1.msra.mxu0 %v205
  %830 = vmatprep.subr.mxu0 0.0
  %831 = vmatpush1.msra.mxu0 %v204
  %832 = vmatprep.subr.mxu0 0.0
  %833 = vmatpush2.msra.mxu0 0.0
  %834 = vmatprep.subr.mxu0 0.0
  %835 = vmatpush2.msra.mxu0 0.0
  %836 = vmatprep.subr.mxu0 0.0
  %837 = vmatpush2.msra.mxu0 0.0
  %838 = vmatprep.subr.mxu0 0.0
  %839 = vmatpush2.msra.mxu0 0.0
  %840 = vmatprep.subr.mxu0 0.0
  %841 = vmatpush2.msra.mxu0 0.0
  %842 = vmatprep.subr.mxu0 0.0
  %843 = vmatpush2.msra.mxu0 0.0
  %844 = vmatprep.subr.mxu0 0.0
  %845 = vmatpush2.msra.mxu0 0.0
  %846 = vmatprep.subr.mxu0 0.0
  %847 = vmatpush2.msra.mxu0 0.0
  %848 = vmatprep.subr.mxu0 0.0
  %849 = vmatpush2.msra.mxu0 0.0
  %850 = vmatprep.subr.mxu0 0.0
  %851 = vmatpush2.msra.mxu0 0.0
  %852 = vmatprep.subr.mxu0 0.0
  %853 = vmatpush2.msra.mxu0 0.0
  %854 = vmatprep.subr.mxu0 0.0
  %855 = vmatpush2.msra.mxu0 0.0
  %856 = vmatprep.subr.mxu0 0.0
  %857 = vmatpush2.msra.mxu0 0.0
  %858 = vmatprep.subr.mxu0 0.0
  %859 = vmatpush2.msra.mxu0 0.0
  %860 = vmatprep.subr.mxu0 0.0
  %861 = vmatpush2.msra.mxu0 0.0
  %862 = vmatprep.subr.mxu0 0.0
  %863 = vmatpush2.msra.mxu0 0.0
  %864 = vmatprep.mubr.f32.mxu0 0.0
  %865 = vmatmul.mubr.f32.gmra.mxu0 %v798
  %v866 = vpop.f32.mrf.mxu0
  %v867 = vadd.f32 0.0, %v866
  %v868 = vpop.f32.mrf.mxu0
  %869 = vdwg.mxu0
  %v870 = vadd.f32 %v186, %v867
  %v871 = vmul.f32 %v870, 0.5
  %v872 = vtanh.pop %v871
  %v873 = vmul.f32 %v872, 0.5
  %v874 = vadd.f32 %v873, 0.5
  %v875 = vtanh.pop %v870
  %v876 = vmul.f32 %v874, %v788
  %878 = vrot.lane.b32.xlu0 %v875, 80
  %v879 = vpop.permute.xlu0 %878
  %v881 = vmul.f32 %v874, %v879
  %883 = vrot.lane.b32.xlu0 %v881, 16
  %v884 = vpop.permute.xlu0 %883
  %v886 = vadd.f32 %v876, %v884
  %v887 = vtanh.pop %v886
  %889 = vrot.lane.b32.xlu0 %v887, 16
  %v890 = vpop.permute.xlu0 %889
  %v892 = vmul.f32 %v874, %v890
  %894 = vrot.lane.b32.xlu0 %v892, 96
  %v895 = vpop.permute.xlu0 %894
  %v896 = vsel %vm208, %v895, 0
  %898 = vmatprep.subr.mxu0 0.0
  %899 = vmatpush1.msra.mxu0 0.0
  %900 = vmatprep.subr.mxu0 0.0
  %901 = vmatpush1.msra.mxu0 0.0
  %902 = vmatprep.subr.mxu0 0.0
  %903 = vmatpush1.msra.mxu0 0.0
  %904 = vmatprep.subr.mxu0 0.0
  %905 = vmatpush1.msra.mxu0 0.0
  %906 = vmatprep.subr.mxu0 0.0
  %907 = vmatpush1.msra.mxu0 0.0
  %908 = vmatprep.subr.mxu0 0.0
  %909 = vmatpush1.msra.mxu0 0.0
  %910 = vmatprep.subr.mxu0 0.0
  %911 = vmatpush1.msra.mxu0 0.0
  %912 = vmatprep.subr.mxu0 0.0
  %913 = vmatpush1.msra.mxu0 0.0
  %914 = vmatprep.subr.mxu0 0.0
  %915 = vmatpush1.msra.mxu0 0.0
  %916 = vmatprep.subr.mxu0 0.0
  %917 = vmatpush1.msra.mxu0 0.0
  %918 = vmatprep.subr.mxu0 0.0
  %919 = vmatpush1.msra.mxu0 0.0
  %920 = vmatprep.subr.mxu0 0.0
  %921 = vmatpush1.msra.mxu0 0.0
  %922 = vmatprep.subr.mxu0 0.0
  %923 = vmatpush1.msra.mxu0 0.0
  %924 = vmatprep.subr.mxu0 0.0
  %925 = vmatpush1.msra.mxu0 0.0
  %926 = vmatprep.subr.mxu0 0.0
  %927 = vmatpush1.msra.mxu0 %v205
  %928 = vmatprep.subr.mxu0 0.0
  %929 = vmatpush1.msra.mxu0 %v204
  %930 = vmatprep.subr.mxu0 0.0
  %931 = vmatpush2.msra.mxu0 0.0
  %932 = vmatprep.subr.mxu0 0.0
  %933 = vmatpush2.msra.mxu0 0.0
  %934 = vmatprep.subr.mxu0 0.0
  %935 = vmatpush2.msra.mxu0 0.0
  %936 = vmatprep.subr.mxu0 0.0
  %937 = vmatpush2.msra.mxu0 0.0
  %938 = vmatprep.subr.mxu0 0.0
  %939 = vmatpush2.msra.mxu0 0.0
  %940 = vmatprep.subr.mxu0 0.0
  %941 = vmatpush2.msra.mxu0 0.0
  %942 = vmatprep.subr.mxu0 0.0
  %943 = vmatpush2.msra.mxu0 0.0
  %944 = vmatprep.subr.mxu0 0.0
  %945 = vmatpush2.msra.mxu0 0.0
  %946 = vmatprep.subr.mxu0 0.0
  %947 = vmatpush2.msra.mxu0 0.0
  %948 = vmatprep.subr.mxu0 0.0
  %949 = vmatpush2.msra.mxu0 0.0
  %950 = vmatprep.subr.mxu0 0.0
  %951 = vmatpush2.msra.mxu0 0.0
  %952 = vmatprep.subr.mxu0 0.0
  %953 = vmatpush2.msra.mxu0 0.0
  %954 = vmatprep.subr.mxu0 0.0
  %955 = vmatpush2.msra.mxu0 0.0
  %956 = vmatprep.subr.mxu0 0.0
  %957 = vmatpush2.msra.mxu0 0.0
  %958 = vmatprep.subr.mxu0 0.0
  %959 = vmatpush2.msra.mxu0 0.0
  %960 = vmatprep.subr.mxu0 0.0
  %961 = vmatpush2.msra.mxu0 0.0
  %962 = vmatprep.mubr.f32.mxu0 0.0
  %963 = vmatmul.mubr.f32.gmra.mxu0 %v896
  %v964 = vpop.f32.mrf.mxu0
  %v965 = vadd.f32 0.0, %v964
  %v966 = vpop.f32.mrf.mxu0
  %967 = vdwg.mxu0
  %v968 = vadd.f32 %v191, %v965
  %v969 = vmul.f32 %v968, 0.5
  %v970 = vtanh.pop %v969
  %v971 = vmul.f32 %v970, 0.5
  %v972 = vadd.f32 %v971, 0.5
  %v973 = vtanh.pop %v968
  %v974 = vmul.f32 %v972, %v886
  %976 = vrot.lane.b32.xlu0 %v973, 80
  %v977 = vpop.permute.xlu0 %976
  %v979 = vmul.f32 %v972, %v977
  %981 = vrot.lane.b32.xlu0 %v979, 16
  %v982 = vpop.permute.xlu0 %981
  %v984 = vadd.f32 %v974, %v982
  %v985 = vtanh.pop %v984
  %987 = vrot.lane.b32.xlu0 %v985, 16
  %v988 = vpop.permute.xlu0 %987
  %v990 = vmul.f32 %v972, %v988
  %992 = vrot.lane.b32.xlu0 %v990, 96
  %v993 = vpop.permute.xlu0 %992
  %v994 = vsel %vm208, %v993, 0
  %996 = vmatprep.subr.mxu0 0.0
  %997 = vmatpush1.msra.mxu0 0.0
  %998 = vmatprep.subr.mxu0 0.0
  %999 = vmatpush1.msra.mxu0 0.0
  %1000 = vmatprep.subr.mxu0 0.0
  %1001 = vmatpush1.msra.mxu0 0.0
  %1002 = vmatprep.subr.mxu0 0.0
  %1003 = vmatpush1.msra.mxu0 0.0
  %1004 = vmatprep.subr.mxu0 0.0
  %1005 = vmatpush1.msra.mxu0 0.0
  %1006 = vmatprep.subr.mxu0 0.0
  %1007 = vmatpush1.msra.mxu0 0.0
  %1008 = vmatprep.subr.mxu0 0.0
  %1009 = vmatpush1.msra.mxu0 0.0
  %1010 = vmatprep.subr.mxu0 0.0
  %1011 = vmatpush1.msra.mxu0 0.0
  %1012 = vmatprep.subr.mxu0 0.0
  %1013 = vmatpush1.msra.mxu0 0.0
  %1014 = vmatprep.subr.mxu0 0.0
  %1015 = vmatpush1.msra.mxu0 0.0
  %1016 = vmatprep.subr.mxu0 0.0
  %1017 = vmatpush1.msra.mxu0 0.0
  %1018 = vmatprep.subr.mxu0 0.0
  %1019 = vmatpush1.msra.mxu0 0.0
  %1020 = vmatprep.subr.mxu0 0.0
  %1021 = vmatpush1.msra.mxu0 0.0
  %1022 = vmatprep.subr.mxu0 0.0
  %1023 = vmatpush1.msra.mxu0 0.0
  %1024 = vmatprep.subr.mxu0 0.0
  %1025 = vmatpush1.msra.mxu0 %v205
  %1026 = vmatprep.subr.mxu0 0.0
  %1027 = vmatpush1.msra.mxu0 %v204
  %1028 = vmatprep.subr.mxu0 0.0
  %1029 = vmatpush2.msra.mxu0 0.0
  %1030 = vmatprep.subr.mxu0 0.0
  %1031 = vmatpush2.msra.mxu0 0.0
  %1032 = vmatprep.subr.mxu0 0.0
  %1033 = vmatpush2.msra.mxu0 0.0
  %1034 = vmatprep.subr.mxu0 0.0
  %1035 = vmatpush2.msra.mxu0 0.0
  %1036 = vmatprep.subr.mxu0 0.0
  %1037 = vmatpush2.msra.mxu0 0.0
  %1038 = vmatprep.subr.mxu0 0.0
  %1039 = vmatpush2.msra.mxu0 0.0
  %1040 = vmatprep.subr.mxu0 0.0
  %1041 = vmatpush2.msra.mxu0 0.0
  %1042 = vmatprep.subr.mxu0 0.0
  %1043 = vmatpush2.msra.mxu0 0.0
  %1044 = vmatprep.subr.mxu0 0.0
  %1045 = vmatpush2.msra.mxu0 0.0
  %1046 = vmatprep.subr.mxu0 0.0
  %1047 = vmatpush2.msra.mxu0 0.0
  %1048 = vmatprep.subr.mxu0 0.0
  %1049 = vmatpush2.msra.mxu0 0.0
  %1050 = vmatprep.subr.mxu0 0.0
  %1051 = vmatpush2.msra.mxu0 0.0
  %1052 = vmatprep.subr.mxu0 0.0
  %1053 = vmatpush2.msra.mxu0 0.0
  %1054 = vmatprep.subr.mxu0 0.0
  %1055 = vmatpush2.msra.mxu0 0.0
  %1056 = vmatprep.subr.mxu0 0.0
  %1057 = vmatpush2.msra.mxu0 0.0
  %1058 = vmatprep.subr.mxu0 0.0
  %1059 = vmatpush2.msra.mxu0 0.0
  %1060 = vmatprep.mubr.f32.mxu0 0.0
  %1061 = vmatmul.mubr.f32.gmra.mxu0 %v994
  %v1062 = vpop.f32.mrf.mxu0
  %v1063 = vadd.f32 0.0, %v1062
  %v1064 = vpop.f32.mrf.mxu0
  %1065 = vdwg.mxu0
  %v1066 = vadd.f32 %v196, %v1063
  %v1067 = vmul.f32 %v1066, 0.5
  %v1068 = vtanh.pop %v1067
  %v1069 = vmul.f32 %v1068, 0.5
  %v1070 = vadd.f32 %v1069, 0.5
  %v1071 = vtanh.pop %v1066
  %v1072 = vmul.f32 %v1070, %v984
  %1074 = vrot.lane.b32.xlu0 %v1071, 80
  %v1075 = vpop.permute.xlu0 %1074
  %v1077 = vmul.f32 %v1070, %v1075
  %1079 = vrot.lane.b32.xlu0 %v1077, 16
  %v1080 = vpop.permute.xlu0 %1079
  %v1082 = vadd.f32 %v1072, %v1080
  %v1083 = vtanh.pop %v1082
  %1085 = vrot.lane.b32.xlu0 %v1083, 16
  %v1086 = vpop.permute.xlu0 %1085
  %v1088 = vmul.f32 %v1070, %v1086
  %1090 = vrot.lane.b32.xlu0 %v1088, 96
  %v1091 = vpop.permute.xlu0 %1090
  %v1092 = vsel %vm208, %v1091, 0
  %1094 = vmatprep.subr.mxu0 0.0
  %1095 = vmatpush1.msra.mxu0 0.0
  %1096 = vmatprep.subr.mxu0 0.0
  %1097 = vmatpush1.msra.mxu0 0.0
  %1098 = vmatprep.subr.mxu0 0.0
  %1099 = vmatpush1.msra.mxu0 0.0
  %1100 = vmatprep.subr.mxu0 0.0
  %1101 = vmatpush1.msra.mxu0 0.0
  %1102 = vmatprep.subr.mxu0 0.0
  %1103 = vmatpush1.msra.mxu0 0.0
  %1104 = vmatprep.subr.mxu0 0.0
  %1105 = vmatpush1.msra.mxu0 0.0
  %1106 = vmatprep.subr.mxu0 0.0
  %1107 = vmatpush1.msra.mxu0 0.0
  %1108 = vmatprep.subr.mxu0 0.0
  %1109 = vmatpush1.msra.mxu0 0.0
  %1110 = vmatprep.subr.mxu0 0.0
  %1111 = vmatpush1.msra.mxu0 0.0
  %1112 = vmatprep.subr.mxu0 0.0
  %1113 = vmatpush1.msra.mxu0 0.0
  %1114 = vmatprep.subr.mxu0 0.0
  %1115 = vmatpush1.msra.mxu0 0.0
  %1116 = vmatprep.subr.mxu0 0.0
  %1117 = vmatpush1.msra.mxu0 0.0
  %1118 = vmatprep.subr.mxu0 0.0
  %1119 = vmatpush1.msra.mxu0 0.0
  %1120 = vmatprep.subr.mxu0 0.0
  %1121 = vmatpush1.msra.mxu0 0.0
  %1122 = vmatprep.subr.mxu0 0.0
  %1123 = vmatpush1.msra.mxu0 %v205
  %1124 = vmatprep.subr.mxu0 0.0
  %1125 = vmatpush1.msra.mxu0 %v204
  %1126 = vmatprep.subr.mxu0 0.0
  %1127 = vmatpush2.msra.mxu0 0.0
  %1128 = vmatprep.subr.mxu0 0.0
  %1129 = vmatpush2.msra.mxu0 0.0
  %1130 = vmatprep.subr.mxu0 0.0
  %1131 = vmatpush2.msra.mxu0 0.0
  %1132 = vmatprep.subr.mxu0 0.0
  %1133 = vmatpush2.msra.mxu0 0.0
  %1134 = vmatprep.subr.mxu0 0.0
  %1135 = vmatpush2.msra.mxu0 0.0
  %1136 = vmatprep.subr.mxu0 0.0
  %1137 = vmatpush2.msra.mxu0 0.0
  %1138 = vmatprep.subr.mxu0 0.0
  %1139 = vmatpush2.msra.mxu0 0.0
  %1140 = vmatprep.subr.mxu0 0.0
  %1141 = vmatpush2.msra.mxu0 0.0
  %1142 = vmatprep.subr.mxu0 0.0
  %1143 = vmatpush2.msra.mxu0 0.0
  %1144 = vmatprep.subr.mxu0 0.0
  %1145 = vmatpush2.msra.mxu0 0.0
  %1146 = vmatprep.subr.mxu0 0.0
  %1147 = vmatpush2.msra.mxu0 0.0
  %1148 = vmatprep.subr.mxu0 0.0
  %1149 = vmatpush2.msra.mxu0 0.0
  %1150 = vmatprep.subr.mxu0 0.0
  %1151 = vmatpush2.msra.mxu0 0.0
  %1152 = vmatprep.subr.mxu0 0.0
  %1153 = vmatpush2.msra.mxu0 0.0
  %1154 = vmatprep.subr.mxu0 0.0
  %1155 = vmatpush2.msra.mxu0 0.0
  %1156 = vmatprep.subr.mxu0 0.0
  %1157 = vmatpush2.msra.mxu0 0.0
  %1158 = vmatprep.mubr.f32.mxu0 0.0
  %1159 = vmatmul.mubr.f32.gmra.mxu0 %v1092
  %v1160 = vpop.f32.mrf.mxu0
  %v1161 = vadd.f32 0.0, %v1160
  %v1162 = vpop.f32.mrf.mxu0
  %1163 = vdwg.mxu0
  %v1164 = vadd.f32 %v201, %v1161
  %v1165 = vmul.f32 %v1164, 0.5
  %v1166 = vtanh.pop %v1165
  %v1167 = vmul.f32 %v1166, 0.5
  %v1168 = vadd.f32 %v1167, 0.5
  %v1169 = vtanh.pop %v1164
  %v1170 = vmul.f32 %v1168, %v1082
  %1172 = vrot.lane.b32.xlu0 %v1169, 80
  %v1173 = vpop.permute.xlu0 %1172
  %v1175 = vmul.f32 %v1168, %v1173
  %1177 = vrot.lane.b32.xlu0 %v1175, 16
  %v1178 = vpop.permute.xlu0 %1177
  %v1180 = vadd.f32 %v1170, %v1178
  %v1181 = vtanh.pop %v1180
  %1183 = vrot.lane.b32.xlu0 %v1181, 16
  %v1184 = vpop.permute.xlu0 %1183
  %v1186 = vmul.f32 %v1168, %v1184
  %1187 = vmatprep.subr.mxu0 0.0
  %1188 = vmatpush1.msra.mxu0 0.0
  %1189 = vmatprep.subr.mxu0 0.0
  %1190 = vmatpush1.msra.mxu0 0.0
  %1191 = vmatprep.subr.mxu0 0.0
  %1192 = vmatpush1.msra.mxu0 0.0
  %1193 = vmatprep.subr.mxu0 0.0
  %1194 = vmatpush1.msra.mxu0 0.0
  %1195 = vmatprep.subr.mxu0 0.0
  %1196 = vmatpush1.msra.mxu0 0.0
  %1197 = vmatprep.subr.mxu0 0.0
  %1198 = vmatpush1.msra.mxu0 0.0
  %1199 = vmatprep.subr.mxu0 0.0
  %1200 = vmatpush1.msra.mxu0 0.0
  %1201 = vmatprep.subr.mxu0 0.0
  %1202 = vmatpush1.msra.mxu0 0.0
  %1203 = vmatprep.subr.mxu0 0.0
  %1204 = vmatpush1.msra.mxu0 0.0
  %1205 = vmatprep.subr.mxu0 0.0
  %1206 = vmatpush1.msra.mxu0 0.0
  %1207 = vmatprep.subr.mxu0 0.0
  %1208 = vmatpush1.msra.mxu0 0.0
  %1209 = vmatprep.subr.mxu0 0.0
  %1210 = vmatpush1.msra.mxu0 0.0
  %1211 = vmatprep.subr.mxu0 0.0
  %1212 = vmatpush1.msra.mxu0 0.0
  %1213 = vmatprep.subr.mxu0 0.0
  %1214 = vmatpush1.msra.mxu0 0.0
  %1215 = vmatprep.subr.mxu0 0.0
  %1216 = vmatpush1.msra.mxu0 %v207
  %1217 = vmatprep.subr.mxu0 0.0
  %1218 = vmatpush1.msra.mxu0 %v206
  %1219 = vmatprep.subr.mxu0 0.0
  %1220 = vmatpush2.msra.mxu0 0.0
  %1221 = vmatprep.subr.mxu0 0.0
  %1222 = vmatpush2.msra.mxu0 0.0
  %1223 = vmatprep.subr.mxu0 0.0
  %1224 = vmatpush2.msra.mxu0 0.0
  %1225 = vmatprep.subr.mxu0 0.0
  %1226 = vmatpush2.msra.mxu0 0.0
  %1227 = vmatprep.subr.mxu0 0.0
  %1228 = vmatpush2.msra.mxu0 0.0
  %1229 = vmatprep.subr.mxu0 0.0
  %1230 = vmatpush2.msra.mxu0 0.0
  %1231 = vmatprep.subr.mxu0 0.0
  %1232 = vmatpush2.msra.mxu0 0.0
  %1233 = vmatprep.subr.mxu0 0.0
  %1234 = vmatpush2.msra.mxu0 0.0
  %1235 = vmatprep.subr.mxu0 0.0
  %1236 = vmatpush2.msra.mxu0 0.0
  %1237 = vmatprep.subr.mxu0 0.0
  %1238 = vmatpush2.msra.mxu0 0.0
  %1239 = vmatprep.subr.mxu0 0.0
  %1240 = vmatpush2.msra.mxu0 0.0
  %1241 = vmatprep.subr.mxu0 0.0
  %1242 = vmatpush2.msra.mxu0 0.0
  %1243 = vmatprep.subr.mxu0 0.0
  %1244 = vmatpush2.msra.mxu0 0.0
  %1245 = vmatprep.subr.mxu0 0.0
  %1246 = vmatpush2.msra.mxu0 0.0
  %1247 = vmatprep.subr.mxu0 0.0
  %1248 = vmatpush2.msra.mxu0 0.0
  %1249 = vmatprep.subr.mxu0 0.0
  %1250 = vmatpush2.msra.mxu0 0.0
  %1251 = vmatprep.mubr.f32.mxu0 0.0
  %1252 = vmatmul.mubr.f32.gmra.mxu0 %v210
  %v1253 = vpop.f32.mrf.mxu0
  %v1254 = vadd.f32 0.0, %v1253
  %v1255 = vpop.f32.mrf.mxu0
  %1256 = vdwg.mxu0
  %1258 = vrot.lane.b32.xlu0 %v1254, 64
  %v1259 = vpop.permute.xlu0 %1258
  %v1261 = vadd.f32 %v201, %v1259
  %v1262 = vmul.f32 %v1261, 0.5
  %v1263 = vtanh.pop %v1262
  %v1264 = vmul.f32 %v1263, 0.5
  %v1265 = vadd.f32 %v1264, 0.5
  %v1266 = vtanh.pop %v1261
  %v1267 = vmul.f32 %v1265, 0.0
  %1269 = vrot.lane.b32.xlu0 %v1266, 80
  %v1270 = vpop.permute.xlu0 %1269
  %v1272 = vmul.f32 %v1265, %v1270
  %1274 = vrot.lane.b32.xlu0 %v1272, 16
  %v1275 = vpop.permute.xlu0 %1274
  %v1277 = vadd.f32 %v1267, %v1275
  %v1278 = vtanh.pop %v1277
  %1280 = vrot.lane.b32.xlu0 %v1278, 16
  %v1281 = vpop.permute.xlu0 %1280
  %v1283 = vmul.f32 %v1265, %v1281
  %1285 = vrot.lane.b32.xlu0 %v1283, 32
  %v1286 = vpop.permute.xlu0 %1285
  %v1287 = vsel %vm208, %v1286, 0
  %1289 = vmatprep.subr.mxu0 0.0
  %1290 = vmatpush1.msra.mxu0 0.0
  %1291 = vmatprep.subr.mxu0 0.0
  %1292 = vmatpush1.msra.mxu0 0.0
  %1293 = vmatprep.subr.mxu0 0.0
  %1294 = vmatpush1.msra.mxu0 0.0
  %1295 = vmatprep.subr.mxu0 0.0
  %1296 = vmatpush1.msra.mxu0 0.0
  %1297 = vmatprep.subr.mxu0 0.0
  %1298 = vmatpush1.msra.mxu0 0.0
  %1299 = vmatprep.subr.mxu0 0.0
  %1300 = vmatpush1.msra.mxu0 0.0
  %1301 = vmatprep.subr.mxu0 0.0
  %1302 = vmatpush1.msra.mxu0 0.0
  %1303 = vmatprep.subr.mxu0 0.0
  %1304 = vmatpush1.msra.mxu0 0.0
  %1305 = vmatprep.subr.mxu0 0.0
  %1306 = vmatpush1.msra.mxu0 0.0
  %1307 = vmatprep.subr.mxu0 0.0
  %1308 = vmatpush1.msra.mxu0 0.0
  %1309 = vmatprep.subr.mxu0 0.0
  %1310 = vmatpush1.msra.mxu0 0.0
  %1311 = vmatprep.subr.mxu0 0.0
  %1312 = vmatpush1.msra.mxu0 0.0
  %1313 = vmatprep.subr.mxu0 0.0
  %1314 = vmatpush1.msra.mxu0 0.0
  %1315 = vmatprep.subr.mxu0 0.0
  %1316 = vmatpush1.msra.mxu0 0.0
  %1317 = vmatprep.subr.mxu0 0.0
  %1318 = vmatpush1.msra.mxu0 %v207
  %1319 = vmatprep.subr.mxu0 0.0
  %1320 = vmatpush1.msra.mxu0 %v206
  %1321 = vmatprep.subr.mxu0 0.0
  %1322 = vmatpush2.msra.mxu0 0.0
  %1323 = vmatprep.subr.mxu0 0.0
  %1324 = vmatpush2.msra.mxu0 0.0
  %1325 = vmatprep.subr.mxu0 0.0
  %1326 = vmatpush2.msra.mxu0 0.0
  %1327 = vmatprep.subr.mxu0 0.0
  %1328 = vmatpush2.msra.mxu0 0.0
  %1329 = vmatprep.subr.mxu0 0.0
  %1330 = vmatpush2.msra.mxu0 0.0
  %1331 = vmatprep.subr.mxu0 0.0
  %1332 = vmatpush2.msra.mxu0 0.0
  %1333 = vmatprep.subr.mxu0 0.0
  %1334 = vmatpush2.msra.mxu0 0.0
  %1335 = vmatprep.subr.mxu0 0.0
  %1336 = vmatpush2.msra.mxu0 0.0
  %1337 = vmatprep.subr.mxu0 0.0
  %1338 = vmatpush2.msra.mxu0 0.0
  %1339 = vmatprep.subr.mxu0 0.0
  %1340 = vmatpush2.msra.mxu0 0.0
  %1341 = vmatprep.subr.mxu0 0.0
  %1342 = vmatpush2.msra.mxu0 0.0
  %1343 = vmatprep.subr.mxu0 0.0
  %1344 = vmatpush2.msra.mxu0 0.0
  %1345 = vmatprep.subr.mxu0 0.0
  %1346 = vmatpush2.msra.mxu0 0.0
  %1347 = vmatprep.subr.mxu0 0.0
  %1348 = vmatpush2.msra.mxu0 0.0
  %1349 = vmatprep.subr.mxu0 0.0
  %1350 = vmatpush2.msra.mxu0 0.0
  %1351 = vmatprep.subr.mxu0 0.0
  %1352 = vmatpush2.msra.mxu0 0.0
  %1353 = vmatprep.mubr.f32.mxu0 0.0
  %1354 = vmatmul.mubr.f32.gmra.mxu0 %v1287
  %v1355 = vpop.f32.mrf.mxu0
  %v1356 = vadd.f32 0.0, %v1355
  %v1357 = vpop.f32.mrf.mxu0
  %1358 = vdwg.mxu0
  %1360 = vrot.lane.b32.xlu0 %v1356, 64
  %v1361 = vpop.permute.xlu0 %1360
  %v1363 = vadd.f32 %v196, %v1361
  %v1364 = vmul.f32 %v1363, 0.5
  %v1365 = vtanh.pop %v1364
  %v1366 = vmul.f32 %v1365, 0.5
  %v1367 = vadd.f32 %v1366, 0.5
  %v1368 = vtanh.pop %v1363
  %v1369 = vmul.f32 %v1367, %v1277
  %1371 = vrot.lane.b32.xlu0 %v1368, 80
  %v1372 = vpop.permute.xlu0 %1371
  %v1374 = vmul.f32 %v1367, %v1372
  %1376 = vrot.lane.b32.xlu0 %v1374, 16
  %v1377 = vpop.permute.xlu0 %1376
  %v1379 = vadd.f32 %v1369, %v1377
  %v1380 = vtanh.pop %v1379
  %1382 = vrot.lane.b32.xlu0 %v1380, 16
  %v1383 = vpop.permute.xlu0 %1382
  %v1385 = vmul.f32 %v1367, %v1383
  %1387 = vrot.lane.b32.xlu0 %v1385, 32
  %v1388 = vpop.permute.xlu0 %1387
  %v1389 = vsel %vm208, %v1388, 0
  %1391 = vmatprep.subr.mxu0 0.0
  %1392 = vmatpush1.msra.mxu0 0.0
  %1393 = vmatprep.subr.mxu0 0.0
  %1394 = vmatpush1.msra.mxu0 0.0
  %1395 = vmatprep.subr.mxu0 0.0
  %1396 = vmatpush1.msra.mxu0 0.0
  %1397 = vmatprep.subr.mxu0 0.0
  %1398 = vmatpush1.msra.mxu0 0.0
  %1399 = vmatprep.subr.mxu0 0.0
  %1400 = vmatpush1.msra.mxu0 0.0
  %1401 = vmatprep.subr.mxu0 0.0
  %1402 = vmatpush1.msra.mxu0 0.0
  %1403 = vmatprep.subr.mxu0 0.0
  %1404 = vmatpush1.msra.mxu0 0.0
  %1405 = vmatprep.subr.mxu0 0.0
  %1406 = vmatpush1.msra.mxu0 0.0
  %1407 = vmatprep.subr.mxu0 0.0
  %1408 = vmatpush1.msra.mxu0 0.0
  %1409 = vmatprep.subr.mxu0 0.0
  %1410 = vmatpush1.msra.mxu0 0.0
  %1411 = vmatprep.subr.mxu0 0.0
  %1412 = vmatpush1.msra.mxu0 0.0
  %1413 = vmatprep.subr.mxu0 0.0
  %1414 = vmatpush1.msra.mxu0 0.0
  %1415 = vmatprep.subr.mxu0 0.0
  %1416 = vmatpush1.msra.mxu0 0.0
  %1417 = vmatprep.subr.mxu0 0.0
  %1418 = vmatpush1.msra.mxu0 0.0
  %1419 = vmatprep.subr.mxu0 0.0
  %1420 = vmatpush1.msra.mxu0 %v207
  %1421 = vmatprep.subr.mxu0 0.0
  %1422 = vmatpush1.msra.mxu0 %v206
  %1423 = vmatprep.subr.mxu0 0.0
  %1424 = vmatpush2.msra.mxu0 0.0
  %1425 = vmatprep.subr.mxu0 0.0
  %1426 = vmatpush2.msra.mxu0 0.0
  %1427 = vmatprep.subr.mxu0 0.0
  %1428 = vmatpush2.msra.mxu0 0.0
  %1429 = vmatprep.subr.mxu0 0.0
  %1430 = vmatpush2.msra.mxu0 0.0
  %1431 = vmatprep.subr.mxu0 0.0
  %1432 = vmatpush2.msra.mxu0 0.0
  %1433 = vmatprep.subr.mxu0 0.0
  %1434 = vmatpush2.msra.mxu0 0.0
  %1435 = vmatprep.subr.mxu0 0.0
  %1436 = vmatpush2.msra.mxu0 0.0
  %1437 = vmatprep.subr.mxu0 0.0
  %1438 = vmatpush2.msra.mxu0 0.0
  %1439 = vmatprep.subr.mxu0 0.0
  %1440 = vmatpush2.msra.mxu0 0.0
  %1441 = vmatprep.subr.mxu0 0.0
  %1442 = vmatpush2.msra.mxu0 0.0
  %1443 = vmatprep.subr.mxu0 0.0
  %1444 = vmatpush2.msra.mxu0 0.0
  %1445 = vmatprep.subr.mxu0 0.0
  %1446 = vmatpush2.msra.mxu0 0.0
  %1447 = vmatprep.subr.mxu0 0.0
  %1448 = vmatpush2.msra.mxu0 0.0
  %1449 = vmatprep.subr.mxu0 0.0
  %1450 = vmatpush2.msra.mxu0 0.0
  %1451 = vmatprep.subr.mxu0 0.0
  %1452 = vmatpush2.msra.mxu0 0.0
  %1453 = vmatprep.subr.mxu0 0.0
  %1454 = vmatpush2.msra.mxu0 0.0
  %1455 = vmatprep.mubr.f32.mxu0 0.0
  %1456 = vmatmul.mubr.f32.gmra.mxu0 %v1389
  %v1457 = vpop.f32.mrf.mxu0
  %v1458 = vadd.f32 0.0, %v1457
  %v1459 = vpop.f32.mrf.mxu0
  %1460 = vdwg.mxu0
  %1462 = vrot.lane.b32.xlu0 %v1458, 64
  %v1463 = vpop.permute.xlu0 %1462
  %v1465 = vadd.f32 %v191, %v1463
  %v1466 = vmul.f32 %v1465, 0.5
  %v1467 = vtanh.pop %v1466
  %v1468 = vmul.f32 %v1467, 0.5
  %v1469 = vadd.f32 %v1468, 0.5
  %v1470 = vtanh.pop %v1465
  %v1471 = vmul.f32 %v1469, %v1379
  %1473 = vrot.lane.b32.xlu0 %v1470, 80
  %v1474 = vpop.permute.xlu0 %1473
  %v1476 = vmul.f32 %v1469, %v1474
  %1478 = vrot.lane.b32.xlu0 %v1476, 16
  %v1479 = vpop.permute.xlu0 %1478
  %v1481 = vadd.f32 %v1471, %v1479
  %v1482 = vtanh.pop %v1481
  %1484 = vrot.lane.b32.xlu0 %v1482, 16
  %v1485 = vpop.permute.xlu0 %1484
  %v1487 = vmul.f32 %v1469, %v1485
  %1489 = vrot.lane.b32.xlu0 %v1487, 32
  %v1490 = vpop.permute.xlu0 %1489
  %v1491 = vsel %vm208, %v1490, 0
  %1493 = vmatprep.subr.mxu0 0.0
  %1494 = vmatpush1.msra.mxu0 0.0
  %1495 = vmatprep.subr.mxu0 0.0
  %1496 = vmatpush1.msra.mxu0 0.0
  %1497 = vmatprep.subr.mxu0 0.0
  %1498 = vmatpush1.msra.mxu0 0.0
  %1499 = vmatprep.subr.mxu0 0.0
  %1500 = vmatpush1.msra.mxu0 0.0
  %1501 = vmatprep.subr.mxu0 0.0
  %1502 = vmatpush1.msra.mxu0 0.0
  %1503 = vmatprep.subr.mxu0 0.0
  %1504 = vmatpush1.msra.mxu0 0.0
  %1505 = vmatprep.subr.mxu0 0.0
  %1506 = vmatpush1.msra.mxu0 0.0
  %1507 = vmatprep.subr.mxu0 0.0
  %1508 = vmatpush1.msra.mxu0 0.0
  %1509 = vmatprep.subr.mxu0 0.0
  %1510 = vmatpush1.msra.mxu0 0.0
  %1511 = vmatprep.subr.mxu0 0.0
  %1512 = vmatpush1.msra.mxu0 0.0
  %1513 = vmatprep.subr.mxu0 0.0
  %1514 = vmatpush1.msra.mxu0 0.0
  %1515 = vmatprep.subr.mxu0 0.0
  %1516 = vmatpush1.msra.mxu0 0.0
  %1517 = vmatprep.subr.mxu0 0.0
  %1518 = vmatpush1.msra.mxu0 0.0
  %1519 = vmatprep.subr.mxu0 0.0
  %1520 = vmatpush1.msra.mxu0 0.0
  %1521 = vmatprep.subr.mxu0 0.0
  %1522 = vmatpush1.msra.mxu0 %v207
  %1523 = vmatprep.subr.mxu0 0.0
  %1524 = vmatpush1.msra.mxu0 %v206
  %1525 = vmatprep.subr.mxu0 0.0
  %1526 = vmatpush2.msra.mxu0 0.0
  %1527 = vmatprep.subr.mxu0 0.0
  %1528 = vmatpush2.msra.mxu0 0.0
  %1529 = vmatprep.subr.mxu0 0.0
  %1530 = vmatpush2.msra.mxu0 0.0
  %1531 = vmatprep.subr.mxu0 0.0
  %1532 = vmatpush2.msra.mxu0 0.0
  %1533 = vmatprep.subr.mxu0 0.0
  %1534 = vmatpush2.msra.mxu0 0.0
  %1535 = vmatprep.subr.mxu0 0.0
  %1536 = vmatpush2.msra.mxu0 0.0
  %1537 = vmatprep.subr.mxu0 0.0
  %1538 = vmatpush2.msra.mxu0 0.0
  %1539 = vmatprep.subr.mxu0 0.0
  %1540 = vmatpush2.msra.mxu0 0.0
  %1541 = vmatprep.subr.mxu0 0.0
  %1542 = vmatpush2.msra.mxu0 0.0
  %1543 = vmatprep.subr.mxu0 0.0
  %1544 = vmatpush2.msra.mxu0 0.0
  %1545 = vmatprep.subr.mxu0 0.0
  %1546 = vmatpush2.msra.mxu0 0.0
  %1547 = vmatprep.subr.mxu0 0.0
  %1548 = vmatpush2.msra.mxu0 0.0
  %1549 = vmatprep.subr.mxu0 0.0
  %1550 = vmatpush2.msra.mxu0 0.0
  %1551 = vmatprep.subr.mxu0 0.0
  %1552 = vmatpush2.msra.mxu0 0.0
  %1553 = vmatprep.subr.mxu0 0.0
  %1554 = vmatpush2.msra.mxu0 0.0
  %1555 = vmatprep.subr.mxu0 0.0
  %1556 = vmatpush2.msra.mxu0 0.0
  %1557 = vmatprep.mubr.f32.mxu0 0.0
  %1558 = vmatmul.mubr.f32.gmra.mxu0 %v1491
  %v1559 = vpop.f32.mrf.mxu0
  %v1560 = vadd.f32 0.0, %v1559
  %v1561 = vpop.f32.mrf.mxu0
  %1562 = vdwg.mxu0
  %1564 = vrot.lane.b32.xlu0 %v1560, 64
  %v1565 = vpop.permute.xlu0 %1564
  %v1567 = vadd.f32 %v186, %v1565
  %v1568 = vmul.f32 %v1567, 0.5
  %v1569 = vtanh.pop %v1568
  %v1570 = vmul.f32 %v1569, 0.5
  %v1571 = vadd.f32 %v1570, 0.5
  %v1572 = vtanh.pop %v1567
  %v1573 = vmul.f32 %v1571, %v1481
  %1575 = vrot.lane.b32.xlu0 %v1572, 80
  %v1576 = vpop.permute.xlu0 %1575
  %v1578 = vmul.f32 %v1571, %v1576
  %1580 = vrot.lane.b32.xlu0 %v1578, 16
  %v1581 = vpop.permute.xlu0 %1580
  %v1583 = vadd.f32 %v1573, %v1581
  %v1584 = vtanh.pop %v1583
  %1586 = vrot.lane.b32.xlu0 %v1584, 16
  %v1587 = vpop.permute.xlu0 %1586
  %v1589 = vmul.f32 %v1571, %v1587
  %1591 = vrot.lane.b32.xlu0 %v1589, 32
  %v1592 = vpop.permute.xlu0 %1591
  %v1593 = vsel %vm208, %v1592, 0
  %1595 = vmatprep.subr.mxu0 0.0
  %1596 = vmatpush1.msra.mxu0 0.0
  %1597 = vmatprep.subr.mxu0 0.0
  %1598 = vmatpush1.msra.mxu0 0.0
  %1599 = vmatprep.subr.mxu0 0.0
  %1600 = vmatpush1.msra.mxu0 0.0
  %1601 = vmatprep.subr.mxu0 0.0
  %1602 = vmatpush1.msra.mxu0 0.0
  %1603 = vmatprep.subr.mxu0 0.0
  %1604 = vmatpush1.msra.mxu0 0.0
  %1605 = vmatprep.subr.mxu0 0.0
  %1606 = vmatpush1.msra.mxu0 0.0
  %1607 = vmatprep.subr.mxu0 0.0
  %1608 = vmatpush1.msra.mxu0 0.0
  %1609 = vmatprep.subr.mxu0 0.0
  %1610 = vmatpush1.msra.mxu0 0.0
  %1611 = vmatprep.subr.mxu0 0.0
  %1612 = vmatpush1.msra.mxu0 0.0
  %1613 = vmatprep.subr.mxu0 0.0
  %1614 = vmatpush1.msra.mxu0 0.0
  %1615 = vmatprep.subr.mxu0 0.0
  %1616 = vmatpush1.msra.mxu0 0.0
  %1617 = vmatprep.subr.mxu0 0.0
  %1618 = vmatpush1.msra.mxu0 0.0
  %1619 = vmatprep.subr.mxu0 0.0
  %1620 = vmatpush1.msra.mxu0 0.0
  %1621 = vmatprep.subr.mxu0 0.0
  %1622 = vmatpush1.msra.mxu0 0.0
  %1623 = vmatprep.subr.mxu0 0.0
  %1624 = vmatpush1.msra.mxu0 %v207
  %1625 = vmatprep.subr.mxu0 0.0
  %1626 = vmatpush1.msra.mxu0 %v206
  %1627 = vmatprep.subr.mxu0 0.0
  %1628 = vmatpush2.msra.mxu0 0.0
  %1629 = vmatprep.subr.mxu0 0.0
  %1630 = vmatpush2.msra.mxu0 0.0
  %1631 = vmatprep.subr.mxu0 0.0
  %1632 = vmatpush2.msra.mxu0 0.0
  %1633 = vmatprep.subr.mxu0 0.0
  %1634 = vmatpush2.msra.mxu0 0.0
  %1635 = vmatprep.subr.mxu0 0.0
  %1636 = vmatpush2.msra.mxu0 0.0
  %1637 = vmatprep.subr.mxu0 0.0
  %1638 = vmatpush2.msra.mxu0 0.0
  %1639 = vmatprep.subr.mxu0 0.0
  %1640 = vmatpush2.msra.mxu0 0.0
  %1641 = vmatprep.subr.mxu0 0.0
  %1642 = vmatpush2.msra.mxu0 0.0
  %1643 = vmatprep.subr.mxu0 0.0
  %1644 = vmatpush2.msra.mxu0 0.0
  %1645 = vmatprep.subr.mxu0 0.0
  %1646 = vmatpush2.msra.mxu0 0.0
  %1647 = vmatprep.subr.mxu0 0.0
  %1648 = vmatpush2.msra.mxu0 0.0
  %1649 = vmatprep.subr.mxu0 0.0
  %1650 = vmatpush2.msra.mxu0 0.0
  %1651 = vmatprep.subr.mxu0 0.0
  %1652 = vmatpush2.msra.mxu0 0.0
  %1653 = vmatprep.subr.mxu0 0.0
  %1654 = vmatpush2.msra.mxu0 0.0
  %1655 = vmatprep.subr.mxu0 0.0
  %1656 = vmatpush2.msra.mxu0 0.0
  %1657 = vmatprep.subr.mxu0 0.0
  %1658 = vmatpush2.msra.mxu0 0.0
  %1659 = vmatprep.mubr.f32.mxu0 0.0
  %1660 = vmatmul.mubr.f32.gmra.mxu0 %v1593
  %v1661 = vpop.f32.mrf.mxu0
  %v1662 = vadd.f32 0.0, %v1661
  %v1663 = vpop.f32.mrf.mxu0
  %1664 = vdwg.mxu0
  %1666 = vrot.lane.b32.xlu0 %v1662, 64
  %v1667 = vpop.permute.xlu0 %1666
  %v1669 = vadd.f32 %v181, %v1667
  %v1670 = vmul.f32 %v1669, 0.5
  %v1671 = vtanh.pop %v1670
  %v1672 = vmul.f32 %v1671, 0.5
  %v1673 = vadd.f32 %v1672, 0.5
  %v1674 = vtanh.pop %v1669
  %v1675 = vmul.f32 %v1673, %v1583
  %1677 = vrot.lane.b32.xlu0 %v1674, 80
  %v1678 = vpop.permute.xlu0 %1677
  %v1680 = vmul.f32 %v1673, %v1678
  %1682 = vrot.lane.b32.xlu0 %v1680, 16
  %v1683 = vpop.permute.xlu0 %1682
  %v1685 = vadd.f32 %v1675, %v1683
  %v1686 = vtanh.pop %v1685
  %1688 = vrot.lane.b32.xlu0 %v1686, 16
  %v1689 = vpop.permute.xlu0 %1688
  %v1691 = vmul.f32 %v1673, %v1689
  %1693 = vrot.lane.b32.xlu0 %v1691, 32
  %v1694 = vpop.permute.xlu0 %1693
  %v1695 = vsel %vm208, %v1694, 0
  %1697 = vmatprep.subr.mxu0 0.0
  %1698 = vmatpush1.msra.mxu0 0.0
  %1699 = vmatprep.subr.mxu0 0.0
  %1700 = vmatpush1.msra.mxu0 0.0
  %1701 = vmatprep.subr.mxu0 0.0
  %1702 = vmatpush1.msra.mxu0 0.0
  %1703 = vmatprep.subr.mxu0 0.0
  %1704 = vmatpush1.msra.mxu0 0.0
  %1705 = vmatprep.subr.mxu0 0.0
  %1706 = vmatpush1.msra.mxu0 0.0
  %1707 = vmatprep.subr.mxu0 0.0
  %1708 = vmatpush1.msra.mxu0 0.0
  %1709 = vmatprep.subr.mxu0 0.0
  %1710 = vmatpush1.msra.mxu0 0.0
  %1711 = vmatprep.subr.mxu0 0.0
  %1712 = vmatpush1.msra.mxu0 0.0
  %1713 = vmatprep.subr.mxu0 0.0
  %1714 = vmatpush1.msra.mxu0 0.0
  %1715 = vmatprep.subr.mxu0 0.0
  %1716 = vmatpush1.msra.mxu0 0.0
  %1717 = vmatprep.subr.mxu0 0.0
  %1718 = vmatpush1.msra.mxu0 0.0
  %1719 = vmatprep.subr.mxu0 0.0
  %1720 = vmatpush1.msra.mxu0 0.0
  %1721 = vmatprep.subr.mxu0 0.0
  %1722 = vmatpush1.msra.mxu0 0.0
  %1723 = vmatprep.subr.mxu0 0.0
  %1724 = vmatpush1.msra.mxu0 0.0
  %1725 = vmatprep.subr.mxu0 0.0
  %1726 = vmatpush1.msra.mxu0 %v207
  %1727 = vmatprep.subr.mxu0 0.0
  %1728 = vmatpush1.msra.mxu0 %v206
  %1729 = vmatprep.subr.mxu0 0.0
  %1730 = vmatpush2.msra.mxu0 0.0
  %1731 = vmatprep.subr.mxu0 0.0
  %1732 = vmatpush2.msra.mxu0 0.0
  %1733 = vmatprep.subr.mxu0 0.0
  %1734 = vmatpush2.msra.mxu0 0.0
  %1735 = vmatprep.subr.mxu0 0.0
  %1736 = vmatpush2.msra.mxu0 0.0
  %1737 = vmatprep.subr.mxu0 0.0
  %1738 = vmatpush2.msra.mxu0 0.0
  %1739 = vmatprep.subr.mxu0 0.0
  %1740 = vmatpush2.msra.mxu0 0.0
  %1741 = vmatprep.subr.mxu0 0.0
  %1742 = vmatpush2.msra.mxu0 0.0
  %1743 = vmatprep.subr.mxu0 0.0
  %1744 = vmatpush2.msra.mxu0 0.0
  %1745 = vmatprep.subr.mxu0 0.0
  %1746 = vmatpush2.msra.mxu0 0.0
  %1747 = vmatprep.subr.mxu0 0.0
  %1748 = vmatpush2.msra.mxu0 0.0
  %1749 = vmatprep.subr.mxu0 0.0
  %1750 = vmatpush2.msra.mxu0 0.0
  %1751 = vmatprep.subr.mxu0 0.0
  %1752 = vmatpush2.msra.mxu0 0.0
  %1753 = vmatprep.subr.mxu0 0.0
  %1754 = vmatpush2.msra.mxu0 0.0
  %1755 = vmatprep.subr.mxu0 0.0
  %1756 = vmatpush2.msra.mxu0 0.0
  %1757 = vmatprep.subr.mxu0 0.0
  %1758 = vmatpush2.msra.mxu0 0.0
  %1759 = vmatprep.subr.mxu0 0.0
  %1760 = vmatpush2.msra.mxu0 0.0
  %1761 = vmatprep.mubr.f32.mxu0 0.0
  %1762 = vmatmul.mubr.f32.gmra.mxu0 %v1695
  %v1763 = vpop.f32.mrf.mxu0
  %v1764 = vadd.f32 0.0, %v1763
  %v1765 = vpop.f32.mrf.mxu0
  %1766 = vdwg.mxu0
  %1768 = vrot.lane.b32.xlu0 %v1764, 64
  %v1769 = vpop.permute.xlu0 %1768
  %v1771 = vadd.f32 %v176, %v1769
  %v1772 = vmul.f32 %v1771, 0.5
  %v1773 = vtanh.pop %v1772
  %v1774 = vmul.f32 %v1773, 0.5
  %v1775 = vadd.f32 %v1774, 0.5
  %v1776 = vtanh.pop %v1771
  %v1777 = vmul.f32 %v1775, %v1685
  %1779 = vrot.lane.b32.xlu0 %v1776, 80
  %v1780 = vpop.permute.xlu0 %1779
  %v1782 = vmul.f32 %v1775, %v1780
  %1784 = vrot.lane.b32.xlu0 %v1782, 16
  %v1785 = vpop.permute.xlu0 %1784
  %v1787 = vadd.f32 %v1777, %v1785
  %v1788 = vtanh.pop %v1787
  %1790 = vrot.lane.b32.xlu0 %v1788, 16
  %v1791 = vpop.permute.xlu0 %1790
  %v1793 = vmul.f32 %v1775, %v1791
  %1795 = vrot.lane.b32.xlu0 %v1793, 32
  %v1796 = vpop.permute.xlu0 %1795
  %v1797 = vsel %vm208, %v1796, 0
  %1799 = vmatprep.subr.mxu0 0.0
  %1800 = vmatpush1.msra.mxu0 0.0
  %1801 = vmatprep.subr.mxu0 0.0
  %1802 = vmatpush1.msra.mxu0 0.0
  %1803 = vmatprep.subr.mxu0 0.0
  %1804 = vmatpush1.msra.mxu0 0.0
  %1805 = vmatprep.subr.mxu0 0.0
  %1806 = vmatpush1.msra.mxu0 0.0
  %1807 = vmatprep.subr.mxu0 0.0
  %1808 = vmatpush1.msra.mxu0 0.0
  %1809 = vmatprep.subr.mxu0 0.0
  %1810 = vmatpush1.msra.mxu0 0.0
  %1811 = vmatprep.subr.mxu0 0.0
  %1812 = vmatpush1.msra.mxu0 0.0
  %1813 = vmatprep.subr.mxu0 0.0
  %1814 = vmatpush1.msra.mxu0 0.0
  %1815 = vmatprep.subr.mxu0 0.0
  %1816 = vmatpush1.msra.mxu0 0.0
  %1817 = vmatprep.subr.mxu0 0.0
  %1818 = vmatpush1.msra.mxu0 0.0
  %1819 = vmatprep.subr.mxu0 0.0
  %1820 = vmatpush1.msra.mxu0 0.0
  %1821 = vmatprep.subr.mxu0 0.0
  %1822 = vmatpush1.msra.mxu0 0.0
  %1823 = vmatprep.subr.mxu0 0.0
  %1824 = vmatpush1.msra.mxu0 0.0
  %1825 = vmatprep.subr.mxu0 0.0
  %1826 = vmatpush1.msra.mxu0 0.0
  %1827 = vmatprep.subr.mxu0 0.0
  %1828 = vmatpush1.msra.mxu0 %v207
  %1829 = vmatprep.subr.mxu0 0.0
  %1830 = vmatpush1.msra.mxu0 %v206
  %1831 = vmatprep.subr.mxu0 0.0
  %1832 = vmatpush2.msra.mxu0 0.0
  %1833 = vmatprep.subr.mxu0 0.0
  %1834 = vmatpush2.msra.mxu0 0.0
  %1835 = vmatprep.subr.mxu0 0.0
  %1836 = vmatpush2.msra.mxu0 0.0
  %1837 = vmatprep.subr.mxu0 0.0
  %1838 = vmatpush2.msra.mxu0 0.0
  %1839 = vmatprep.subr.mxu0 0.0
  %1840 = vmatpush2.msra.mxu0 0.0
  %1841 = vmatprep.subr.mxu0 0.0
  %1842 = vmatpush2.msra.mxu0 0.0
  %1843 = vmatprep.subr.mxu0 0.0
  %1844 = vmatpush2.msra.mxu0 0.0
  %1845 = vmatprep.subr.mxu0 0.0
  %1846 = vmatpush2.msra.mxu0 0.0
  %1847 = vmatprep.subr.mxu0 0.0
  %1848 = vmatpush2.msra.mxu0 0.0
  %1849 = vmatprep.subr.mxu0 0.0
  %1850 = vmatpush2.msra.mxu0 0.0
  %1851 = vmatprep.subr.mxu0 0.0
  %1852 = vmatpush2.msra.mxu0 0.0
  %1853 = vmatprep.subr.mxu0 0.0
  %1854 = vmatpush2.msra.mxu0 0.0
  %1855 = vmatprep.subr.mxu0 0.0
  %1856 = vmatpush2.msra.mxu0 0.0
  %1857 = vmatprep.subr.mxu0 0.0
  %1858 = vmatpush2.msra.mxu0 0.0
  %1859 = vmatprep.subr.mxu0 0.0
  %1860 = vmatpush2.msra.mxu0 0.0
  %1861 = vmatprep.subr.mxu0 0.0
  %1862 = vmatpush2.msra.mxu0 0.0
  %1863 = vmatprep.mubr.f32.mxu0 0.0
  %1864 = vmatmul.mubr.f32.gmra.mxu0 %v1797
  %v1865 = vpop.f32.mrf.mxu0
  %v1866 = vadd.f32 0.0, %v1865
  %v1867 = vpop.f32.mrf.mxu0
  %1868 = vdwg.mxu0
  %1870 = vrot.lane.b32.xlu0 %v1866, 64
  %v1871 = vpop.permute.xlu0 %1870
  %v1873 = vadd.f32 %v171, %v1871
  %v1874 = vmul.f32 %v1873, 0.5
  %v1875 = vtanh.pop %v1874
  %v1876 = vmul.f32 %v1875, 0.5
  %v1877 = vadd.f32 %v1876, 0.5
  %v1878 = vtanh.pop %v1873
  %v1879 = vmul.f32 %v1877, %v1787
  %1881 = vrot.lane.b32.xlu0 %v1878, 80
  %v1882 = vpop.permute.xlu0 %1881
  %v1884 = vmul.f32 %v1877, %v1882
  %1886 = vrot.lane.b32.xlu0 %v1884, 16
  %v1887 = vpop.permute.xlu0 %1886
  %v1889 = vadd.f32 %v1879, %v1887
  %v1890 = vtanh.pop %v1889
  %1892 = vrot.lane.b32.xlu0 %v1890, 16
  %v1893 = vpop.permute.xlu0 %1892
  %v1895 = vmul.f32 %v1877, %v1893
  %1897 = vrot.lane.b32.xlu0 %v1895, 32
  %v1898 = vpop.permute.xlu0 %1897
  %v1899 = vsel %vm208, %v1898, 0
  %1901 = vmatprep.subr.mxu0 0.0
  %1902 = vmatpush1.msra.mxu0 0.0
  %1903 = vmatprep.subr.mxu0 0.0
  %1904 = vmatpush1.msra.mxu0 0.0
  %1905 = vmatprep.subr.mxu0 0.0
  %1906 = vmatpush1.msra.mxu0 0.0
  %1907 = vmatprep.subr.mxu0 0.0
  %1908 = vmatpush1.msra.mxu0 0.0
  %1909 = vmatprep.subr.mxu0 0.0
  %1910 = vmatpush1.msra.mxu0 0.0
  %1911 = vmatprep.subr.mxu0 0.0
  %1912 = vmatpush1.msra.mxu0 0.0
  %1913 = vmatprep.subr.mxu0 0.0
  %1914 = vmatpush1.msra.mxu0 0.0
  %1915 = vmatprep.subr.mxu0 0.0
  %1916 = vmatpush1.msra.mxu0 0.0
  %1917 = vmatprep.subr.mxu0 0.0
  %1918 = vmatpush1.msra.mxu0 0.0
  %1919 = vmatprep.subr.mxu0 0.0
  %1920 = vmatpush1.msra.mxu0 0.0
  %1921 = vmatprep.subr.mxu0 0.0
  %1922 = vmatpush1.msra.mxu0 0.0
  %1923 = vmatprep.subr.mxu0 0.0
  %1924 = vmatpush1.msra.mxu0 0.0
  %1925 = vmatprep.subr.mxu0 0.0
  %1926 = vmatpush1.msra.mxu0 0.0
  %1927 = vmatprep.subr.mxu0 0.0
  %1928 = vmatpush1.msra.mxu0 0.0
  %1929 = vmatprep.subr.mxu0 0.0
  %1930 = vmatpush1.msra.mxu0 %v207
  %1931 = vmatprep.subr.mxu0 0.0
  %1932 = vmatpush1.msra.mxu0 %v206
  %1933 = vmatprep.subr.mxu0 0.0
  %1934 = vmatpush2.msra.mxu0 0.0
  %1935 = vmatprep.subr.mxu0 0.0
  %1936 = vmatpush2.msra.mxu0 0.0
  %1937 = vmatprep.subr.mxu0 0.0
  %1938 = vmatpush2.msra.mxu0 0.0
  %1939 = vmatprep.subr.mxu0 0.0
  %1940 = vmatpush2.msra.mxu0 0.0
  %1941 = vmatprep.subr.mxu0 0.0
  %1942 = vmatpush2.msra.mxu0 0.0
  %1943 = vmatprep.subr.mxu0 0.0
  %1944 = vmatpush2.msra.mxu0 0.0
  %1945 = vmatprep.subr.mxu0 0.0
  %1946 = vmatpush2.msra.mxu0 0.0
  %1947 = vmatprep.subr.mxu0 0.0
  %1948 = vmatpush2.msra.mxu0 0.0
  %1949 = vmatprep.subr.mxu0 0.0
  %1950 = vmatpush2.msra.mxu0 0.0
  %1951 = vmatprep.subr.mxu0 0.0
  %1952 = vmatpush2.msra.mxu0 0.0
  %1953 = vmatprep.subr.mxu0 0.0
  %1954 = vmatpush2.msra.mxu0 0.0
  %1955 = vmatprep.subr.mxu0 0.0
  %1956 = vmatpush2.msra.mxu0 0.0
  %1957 = vmatprep.subr.mxu0 0.0
  %1958 = vmatpush2.msra.mxu0 0.0
  %1959 = vmatprep.subr.mxu0 0.0
  %1960 = vmatpush2.msra.mxu0 0.0
  %1961 = vmatprep.subr.mxu0 0.0
  %1962 = vmatpush2.msra.mxu0 0.0
  %1963 = vmatprep.subr.mxu0 0.0
  %1964 = vmatpush2.msra.mxu0 0.0
  %1965 = vmatprep.mubr.f32.mxu0 0.0
  %1966 = vmatmul.mubr.f32.gmra.mxu0 %v1899
  %v1967 = vpop.f32.mrf.mxu0
  %v1968 = vadd.f32 0.0, %v1967
  %v1969 = vpop.f32.mrf.mxu0
  %1970 = vdwg.mxu0
  %1972 = vrot.lane.b32.xlu0 %v1968, 64
  %v1973 = vpop.permute.xlu0 %1972
  %v1975 = vadd.f32 %v166, %v1973
  %v1976 = vmul.f32 %v1975, 0.5
  %v1977 = vtanh.pop %v1976
  %v1978 = vmul.f32 %v1977, 0.5
  %v1979 = vadd.f32 %v1978, 0.5
  %v1980 = vtanh.pop %v1975
  %v1981 = vmul.f32 %v1979, %v1889
  %1983 = vrot.lane.b32.xlu0 %v1980, 80
  %v1984 = vpop.permute.xlu0 %1983
  %v1986 = vmul.f32 %v1979, %v1984
  %1988 = vrot.lane.b32.xlu0 %v1986, 16
  %v1989 = vpop.permute.xlu0 %1988
  %v1991 = vadd.f32 %v1981, %v1989
  %v1992 = vtanh.pop %v1991
  %1994 = vrot.lane.b32.xlu0 %v1992, 16
  %v1995 = vpop.permute.xlu0 %1994
  %v1997 = vmul.f32 %v1979, %v1995
  %1999 = vrot.lane.b32.xlu0 %v1997, 32
  %v2000 = vpop.permute.xlu0 %1999
  %v2001 = vsel %vm208, %v2000, 0
  %2003 = vmatprep.subr.mxu0 0.0
  %2004 = vmatpush1.msra.mxu0 0.0
  %2005 = vmatprep.subr.mxu0 0.0
  %2006 = vmatpush1.msra.mxu0 0.0
  %2007 = vmatprep.subr.mxu0 0.0
  %2008 = vmatpush1.msra.mxu0 0.0
  %2009 = vmatprep.subr.mxu0 0.0
  %2010 = vmatpush1.msra.mxu0 0.0
  %2011 = vmatprep.subr.mxu0 0.0
  %2012 = vmatpush1.msra.mxu0 0.0
  %2013 = vmatprep.subr.mxu0 0.0
  %2014 = vmatpush1.msra.mxu0 0.0
  %2015 = vmatprep.subr.mxu0 0.0
  %2016 = vmatpush1.msra.mxu0 0.0
  %2017 = vmatprep.subr.mxu0 0.0
  %2018 = vmatpush1.msra.mxu0 0.0
  %2019 = vmatprep.subr.mxu0 0.0
  %2020 = vmatpush1.msra.mxu0 0.0
  %2021 = vmatprep.subr.mxu0 0.0
  %2022 = vmatpush1.msra.mxu0 0.0
  %2023 = vmatprep.subr.mxu0 0.0
  %2024 = vmatpush1.msra.mxu0 0.0
  %2025 = vmatprep.subr.mxu0 0.0
  %2026 = vmatpush1.msra.mxu0 0.0
  %2027 = vmatprep.subr.mxu0 0.0
  %2028 = vmatpush1.msra.mxu0 0.0
  %2029 = vmatprep.subr.mxu0 0.0
  %2030 = vmatpush1.msra.mxu0 0.0
  %2031 = vmatprep.subr.mxu0 0.0
  %2032 = vmatpush1.msra.mxu0 %v207
  %2033 = vmatprep.subr.mxu0 0.0
  %2034 = vmatpush1.msra.mxu0 %v206
  %2035 = vmatprep.subr.mxu0 0.0
  %2036 = vmatpush2.msra.mxu0 0.0
  %2037 = vmatprep.subr.mxu0 0.0
  %2038 = vmatpush2.msra.mxu0 0.0
  %2039 = vmatprep.subr.mxu0 0.0
  %2040 = vmatpush2.msra.mxu0 0.0
  %2041 = vmatprep.subr.mxu0 0.0
  %2042 = vmatpush2.msra.mxu0 0.0
  %2043 = vmatprep.subr.mxu0 0.0
  %2044 = vmatpush2.msra.mxu0 0.0
  %2045 = vmatprep.subr.mxu0 0.0
  %2046 = vmatpush2.msra.mxu0 0.0
  %2047 = vmatprep.subr.mxu0 0.0
  %2048 = vmatpush2.msra.mxu0 0.0
  %2049 = vmatprep.subr.mxu0 0.0
  %2050 = vmatpush2.msra.mxu0 0.0
  %2051 = vmatprep.subr.mxu0 0.0
  %2052 = vmatpush2.msra.mxu0 0.0
  %2053 = vmatprep.subr.mxu0 0.0
  %2054 = vmatpush2.msra.mxu0 0.0
  %2055 = vmatprep.subr.mxu0 0.0
  %2056 = vmatpush2.msra.mxu0 0.0
  %2057 = vmatprep.subr.mxu0 0.0
  %2058 = vmatpush2.msra.mxu0 0.0
  %2059 = vmatprep.subr.mxu0 0.0
  %2060 = vmatpush2.msra.mxu0 0.0
  %2061 = vmatprep.subr.mxu0 0.0
  %2062 = vmatpush2.msra.mxu0 0.0
  %2063 = vmatprep.subr.mxu0 0.0
  %2064 = vmatpush2.msra.mxu0 0.0
  %2065 = vmatprep.subr.mxu0 0.0
  %2066 = vmatpush2.msra.mxu0 0.0
  %2067 = vmatprep.mubr.f32.mxu0 0.0
  %2068 = vmatmul.mubr.f32.gmra.mxu0 %v2001
  %v2069 = vpop.f32.mrf.mxu0
  %v2070 = vadd.f32 0.0, %v2069
  %v2071 = vpop.f32.mrf.mxu0
  %2072 = vdwg.mxu0
  %2074 = vrot.lane.b32.xlu0 %v2070, 64
  %v2075 = vpop.permute.xlu0 %2074
  %v2077 = vadd.f32 %v161, %v2075
  %v2078 = vmul.f32 %v2077, 0.5
  %v2079 = vtanh.pop %v2078
  %v2080 = vmul.f32 %v2079, 0.5
  %v2081 = vadd.f32 %v2080, 0.5
  %v2082 = vtanh.pop %v2077
  %v2083 = vmul.f32 %v2081, %v1991
  %2085 = vrot.lane.b32.xlu0 %v2082, 80
  %v2086 = vpop.permute.xlu0 %2085
  %v2088 = vmul.f32 %v2081, %v2086
  %2090 = vrot.lane.b32.xlu0 %v2088, 16
  %v2091 = vpop.permute.xlu0 %2090
  %v2093 = vadd.f32 %v2083, %v2091
  %v2094 = vtanh.pop %v2093
  %2096 = vrot.lane.b32.xlu0 %v2094, 16
  %v2097 = vpop.permute.xlu0 %2096
  %v2099 = vmul.f32 %v2081, %v2097
  %2101 = vrot.lane.b32.xlu0 %v2099, 32
  %v2102 = vpop.permute.xlu0 %2101
  %v2103 = vsel %vm208, %v2102, 0
  %2105 = vmatprep.subr.mxu0 0.0
  %2106 = vmatpush1.msra.mxu0 0.0
  %2107 = vmatprep.subr.mxu0 0.0
  %2108 = vmatpush1.msra.mxu0 0.0
  %2109 = vmatprep.subr.mxu0 0.0
  %2110 = vmatpush1.msra.mxu0 0.0
  %2111 = vmatprep.subr.mxu0 0.0
  %2112 = vmatpush1.msra.mxu0 0.0
  %2113 = vmatprep.subr.mxu0 0.0
  %2114 = vmatpush1.msra.mxu0 0.0
  %2115 = vmatprep.subr.mxu0 0.0
  %2116 = vmatpush1.msra.mxu0 0.0
  %2117 = vmatprep.subr.mxu0 0.0
  %2118 = vmatpush1.msra.mxu0 0.0
  %2119 = vmatprep.subr.mxu0 0.0
  %2120 = vmatpush1.msra.mxu0 0.0
  %2121 = vmatprep.subr.mxu0 0.0
  %2122 = vmatpush1.msra.mxu0 0.0
  %2123 = vmatprep.subr.mxu0 0.0
  %2124 = vmatpush1.msra.mxu0 0.0
  %2125 = vmatprep.subr.mxu0 0.0
  %2126 = vmatpush1.msra.mxu0 0.0
  %2127 = vmatprep.subr.mxu0 0.0
  %2128 = vmatpush1.msra.mxu0 0.0
  %2129 = vmatprep.subr.mxu0 0.0
  %2130 = vmatpush1.msra.mxu0 0.0
  %2131 = vmatprep.subr.mxu0 0.0
  %2132 = vmatpush1.msra.mxu0 0.0
  %2133 = vmatprep.subr.mxu0 0.0
  %2134 = vmatpush1.msra.mxu0 %v207
  %2135 = vmatprep.subr.mxu0 0.0
  %2136 = vmatpush1.msra.mxu0 %v206
  %2137 = vmatprep.subr.mxu0 0.0
  %2138 = vmatpush2.msra.mxu0 0.0
  %2139 = vmatprep.subr.mxu0 0.0
  %2140 = vmatpush2.msra.mxu0 0.0
  %2141 = vmatprep.subr.mxu0 0.0
  %2142 = vmatpush2.msra.mxu0 0.0
  %2143 = vmatprep.subr.mxu0 0.0
  %2144 = vmatpush2.msra.mxu0 0.0
  %2145 = vmatprep.subr.mxu0 0.0
  %2146 = vmatpush2.msra.mxu0 0.0
  %2147 = vmatprep.subr.mxu0 0.0
  %2148 = vmatpush2.msra.mxu0 0.0
  %2149 = vmatprep.subr.mxu0 0.0
  %2150 = vmatpush2.msra.mxu0 0.0
  %2151 = vmatprep.subr.mxu0 0.0
  %2152 = vmatpush2.msra.mxu0 0.0
  %2153 = vmatprep.subr.mxu0 0.0
  %2154 = vmatpush2.msra.mxu0 0.0
  %2155 = vmatprep.subr.mxu0 0.0
  %2156 = vmatpush2.msra.mxu0 0.0
  %2157 = vmatprep.subr.mxu0 0.0
  %2158 = vmatpush2.msra.mxu0 0.0
  %2159 = vmatprep.subr.mxu0 0.0
  %2160 = vmatpush2.msra.mxu0 0.0
  %2161 = vmatprep.subr.mxu0 0.0
  %2162 = vmatpush2.msra.mxu0 0.0
  %2163 = vmatprep.subr.mxu0 0.0
  %2164 = vmatpush2.msra.mxu0 0.0
  %2165 = vmatprep.subr.mxu0 0.0
  %2166 = vmatpush2.msra.mxu0 0.0
  %2167 = vmatprep.subr.mxu0 0.0
  %2168 = vmatpush2.msra.mxu0 0.0
  %2169 = vmatprep.mubr.f32.mxu0 0.0
  %2170 = vmatmul.mubr.f32.gmra.mxu0 %v2103
  %v2171 = vpop.f32.mrf.mxu0
  %v2172 = vadd.f32 0.0, %v2171
  %v2173 = vpop.f32.mrf.mxu0
  %2174 = vdwg.mxu0
  %2176 = vrot.lane.b32.xlu0 %v2172, 64
  %v2177 = vpop.permute.xlu0 %2176
  %v2179 = vadd.f32 %v156, %v2177
  %v2180 = vmul.f32 %v2179, 0.5
  %v2181 = vtanh.pop %v2180
  %v2182 = vmul.f32 %v2181, 0.5
  %v2183 = vadd.f32 %v2182, 0.5
  %v2184 = vtanh.pop %v2179
  %v2185 = vmul.f32 %v2183, %v2093
  %2187 = vrot.lane.b32.xlu0 %v2184, 80
  %v2188 = vpop.permute.xlu0 %2187
  %v2190 = vmul.f32 %v2183, %v2188
  %2192 = vrot.lane.b32.xlu0 %v2190, 16
  %v2193 = vpop.permute.xlu0 %2192
  %v2195 = vadd.f32 %v2185, %v2193
  %v2196 = vtanh.pop %v2195
  %2198 = vrot.lane.b32.xlu0 %v2196, 16
  %v2199 = vpop.permute.xlu0 %2198
  %v2201 = vmul.f32 %v2183, %v2199
  %2203 = vrot.lane.b32.xlu0 %v1186, 96
  %v2204 = vpop.permute.xlu0 %2203
  %2216 = vrot.lane.b32.xlu0 %v2201, 48
  %v2217 = vpop.permute.xlu0 %2216
  %2218 = vrot.lane.b32.xlu0 %v2099, 48
  %v2219 = vpop.permute.xlu0 %2218
  %2220 = vrot.lane.b32.xlu0 %v1997, 48
  %v2221 = vpop.permute.xlu0 %2220
  %2222 = vrot.lane.b32.xlu0 %v1895, 48
  %v2223 = vpop.permute.xlu0 %2222
  %2224 = vrot.lane.b32.xlu0 %v1793, 48
  %v2225 = vpop.permute.xlu0 %2224
  %2226 = vrot.lane.b32.xlu0 %v1691, 48
  %v2227 = vpop.permute.xlu0 %2226
  %2228 = vrot.lane.b32.xlu0 %v1589, 48
  %v2229 = vpop.permute.xlu0 %2228
  %2230 = vrot.lane.b32.xlu0 %v1487, 48
  %v2231 = vpop.permute.xlu0 %2230
  %2232 = vrot.lane.b32.xlu0 %v1385, 48
  %v2233 = vpop.permute.xlu0 %2232
  %2234 = vrot.lane.b32.xlu0 %v1283, 48
  %v2235 = vpop.permute.xlu0 %2234
  %v2246 = vsel %vm208, %v307, %v2217
  %v2247 = vsel %vm208, %v405, %v2219
  %v2248 = vsel %vm208, %v503, %v2221
  %v2249 = vsel %vm208, %v601, %v2223
  %v2250 = vsel %vm208, %v699, %v2225
  %v2251 = vsel %vm208, %v797, %v2227
  %v2252 = vsel %vm208, %v895, %v2229
  %v2253 = vsel %vm208, %v993, %v2231
  %v2254 = vsel %vm208, %v1091, %v2233
  %v2255 = vsel %vm208, %v2204, %v2235
  %v2256 = vld [vmem:[%s5] sm:$0xff]
  %v2257 = vld [vmem:[%s5 + $0x8] sm:$0xff]
  %v2258 = vld [vmem:[%s5 + $0x10] sm:$0xff]
  %v2259 = vld [vmem:[%s5 + $0x18] sm:$0xff]
  %v2260 = vld [vmem:[%s6] sm:$0x1]
  %v2262 = vlaneseq
  %v2263 = vshrl.u32 %v2262, 7
  %v2264 = vsub.s32 0, %v2263
  %v2265 = vrot.slane %v2260, %v2264
  %v2268 = vsel %vm58, %v2246, 0
  %v2271 = vsel %vm58, %v2247, 0
  %v2274 = vsel %vm58, %v2248, 0
  %v2277 = vsel %vm58, %v2249, 0
  %v2280 = vsel %vm58, %v2250, 0
  %v2283 = vsel %vm58, %v2251, 0
  %v2286 = vsel %vm58, %v2252, 0
  %v2289 = vsel %vm58, %v2253, 0
  %v2292 = vsel %vm58, %v2254, 0
  %v2295 = vsel %vm58, %v2255, 0
  %2297 = vmatprep.subr.mxu0 0.0
  %2298 = vmatpush1.msra.mxu0 0.0
  %2299 = vmatprep.subr.mxu0 0.0
  %2300 = vmatpush1.msra.mxu0 0.0
  %2301 = vmatprep.subr.mxu0 0.0
  %2302 = vmatpush1.msra.mxu0 0.0
  %2303 = vmatprep.subr.mxu0 0.0
  %2304 = vmatpush1.msra.mxu0 0.0
  %2305 = vmatprep.subr.mxu0 0.0
  %2306 = vmatpush1.msra.mxu0 0.0
  %2307 = vmatprep.subr.mxu0 0.0
  %2308 = vmatpush1.msra.mxu0 0.0
  %2309 = vmatprep.subr.mxu0 0.0
  %2310 = vmatpush1.msra.mxu0 0.0
  %2311 = vmatprep.subr.mxu0 0.0
  %2312 = vmatpush1.msra.mxu0 0.0
  %2313 = vmatprep.subr.mxu0 0.0
  %2314 = vmatpush1.msra.mxu0 0.0
  %2315 = vmatprep.subr.mxu0 0.0
  %2316 = vmatpush1.msra.mxu0 0.0
  %2317 = vmatprep.subr.mxu0 0.0
  %2318 = vmatpush1.msra.mxu0 0.0
  %2319 = vmatprep.subr.mxu0 0.0
  %2320 = vmatpush1.msra.mxu0 0.0
  %2321 = vmatprep.subr.mxu0 0.0
  %2322 = vmatpush1.msra.mxu0 %v2259
  %2323 = vmatprep.subr.mxu0 0.0
  %2324 = vmatpush1.msra.mxu0 %v2258
  %2325 = vmatprep.subr.mxu0 0.0
  %2326 = vmatpush1.msra.mxu0 %v2257
  %2327 = vmatprep.subr.mxu0 0.0
  %2328 = vmatpush1.msra.mxu0 %v2256
  %2329 = vmatprep.subr.mxu0 0.0
  %2330 = vmatpush2.msra.mxu0 0.0
  %2331 = vmatprep.subr.mxu0 0.0
  %2332 = vmatpush2.msra.mxu0 0.0
  %2333 = vmatprep.subr.mxu0 0.0
  %2334 = vmatpush2.msra.mxu0 0.0
  %2335 = vmatprep.subr.mxu0 0.0
  %2336 = vmatpush2.msra.mxu0 0.0
  %2337 = vmatprep.subr.mxu0 0.0
  %2338 = vmatpush2.msra.mxu0 0.0
  %2339 = vmatprep.subr.mxu0 0.0
  %2340 = vmatpush2.msra.mxu0 0.0
  %2341 = vmatprep.subr.mxu0 0.0
  %2342 = vmatpush2.msra.mxu0 0.0
  %2343 = vmatprep.subr.mxu0 0.0
  %2344 = vmatpush2.msra.mxu0 0.0
  %2345 = vmatprep.subr.mxu0 0.0
  %2346 = vmatpush2.msra.mxu0 0.0
  %2347 = vmatprep.subr.mxu0 0.0
  %2348 = vmatpush2.msra.mxu0 0.0
  %2349 = vmatprep.subr.mxu0 0.0
  %2350 = vmatpush2.msra.mxu0 0.0
  %2351 = vmatprep.subr.mxu0 0.0
  %2352 = vmatpush2.msra.mxu0 0.0
  %2353 = vmatprep.subr.mxu0 0.0
  %2354 = vmatpush2.msra.mxu0 0.0
  %2355 = vmatprep.subr.mxu0 0.0
  %2356 = vmatpush2.msra.mxu0 0.0
  %2357 = vmatprep.subr.mxu0 0.0
  %2358 = vmatpush2.msra.mxu0 0.0
  %2359 = vmatprep.subr.mxu0 0.0
  %2360 = vmatpush2.msra.mxu0 0.0
  %2361 = vmatprep.mubr.f32.mxu0 0.0
  %2362 = vmatmul.mubr.f32.gmra.mxu0 %v2268
  %v2363 = vpop.f32.mrf.mxu0
  %v2364 = vadd.f32 %v2265, %v2363
  %v2365 = vpop.f32.mrf.mxu0
  %2366 = vmatprep.mubr.f32.mxu0 0.0
  %2367 = vmatmul.mubr.f32.gmra.mxu0 %v2271
  %v2368 = vpop.f32.mrf.mxu0
  %v2369 = vadd.f32 %v2265, %v2368
  %v2370 = vpop.f32.mrf.mxu0
  %2371 = vmatprep.mubr.f32.mxu0 0.0
  %2372 = vmatmul.mubr.f32.gmra.mxu0 %v2274
  %v2373 = vpop.f32.mrf.mxu0
  %v2374 = vadd.f32 %v2265, %v2373
  %v2375 = vpop.f32.mrf.mxu0
  %2376 = vmatprep.mubr.f32.mxu0 0.0
  %2377 = vmatmul.mubr.f32.gmra.mxu0 %v2277
  %v2378 = vpop.f32.mrf.mxu0
  %v2379 = vadd.f32 %v2265, %v2378
  %v2380 = vpop.f32.mrf.mxu0
  %2381 = vmatprep.mubr.f32.mxu0 0.0
  %2382 = vmatmul.mubr.f32.gmra.mxu0 %v2280
  %v2383 = vpop.f32.mrf.mxu0
  %v2384 = vadd.f32 %v2265, %v2383
  %v2385 = vpop.f32.mrf.mxu0
  %2386 = vmatprep.mubr.f32.mxu0 0.0
  %2387 = vmatmul.mubr.f32.gmra.mxu0 %v2283
  %v2388 = vpop.f32.mrf.mxu0
  %v2389 = vadd.f32 %v2265, %v2388
  %v2390 = vpop.f32.mrf.mxu0
  %2391 = vmatprep.mubr.f32.mxu0 0.0
  %2392 = vmatmul.mubr.f32.gmra.mxu0 %v2286
  %v2393 = vpop.f32.mrf.mxu0
  %v2394 = vadd.f32 %v2265, %v2393
  %v2395 = vpop.f32.mrf.mxu0
  %2396 = vmatprep.mubr.f32.mxu0 0.0
  %2397 = vmatmul.mubr.f32.gmra.mxu0 %v2289
  %v2398 = vpop.f32.mrf.mxu0
  %v2399 = vadd.f32 %v2265, %v2398
  %v2400 = vpop.f32.mrf.mxu0
  %2401 = vmatprep.mubr.f32.mxu0 0.0
  %2402 = vmatmul.mubr.f32.gmra.mxu0 %v2292
  %v2403 = vpop.f32.mrf.mxu0
  %v2404 = vadd.f32 %v2265, %v2403
  %v2405 = vpop.f32.mrf.mxu0
  %2406 = vmatprep.mubr.f32.mxu0 0.0
  %2407 = vmatmul.mubr.f32.gmra.mxu0 %v2295
  %v2408 = vpop.f32.mrf.mxu0
  %v2409 = vadd.f32 %v2265, %v2408
  %v2410 = vpop.f32.mrf.mxu0
  %2411 = vdwg.mxu0
  %2412 = vst [vmem:[%s11] sm:$0xff] %v2364
  %2413 = vst [vmem:[%s11 + $0x8] sm:$0xff] %v2369
  %2414 = vst [vmem:[%s11 + $0x10] sm:$0xff] %v2374
  %2415 = vst [vmem:[%s11 + $0x18] sm:$0xff] %v2379
  %2416 = vst [vmem:[%s11 + $0x20] sm:$0xff] %v2384
  %2417 = vst [vmem:[%s11 + $0x28] sm:$0xff] %v2389
  %2418 = vst [vmem:[%s11 + $0x30] sm:$0xff] %v2394
  %2419 = vst [vmem:[%s11 + $0x38] sm:$0xff] %v2399
  %2420 = vst [vmem:[%s11 + $0x40] sm:$0xff] %v2404
  %2421 = vst [vmem:[%s11 + $0x48] sm:$0xff] %v2409
  %v2422 = vld [vmem:[%s7] sm:$0x1f]
  %v2423 = vlaneseq
  %v2424 = vshrl.u32 %v2423, 7
  %v2425 = vlaneseq
  %v2426 = vand.u32 %v2425, 127
  %v2427 = vld [vmem:[%s8] sm:$0x1]
  %v2429 = vlaneseq
  %v2430 = vshrl.u32 %v2429, 7
  %v2431 = vsub.s32 0, %v2430
  %v2432 = vrot.slane %v2427, %v2431
  %v2444 = vrot.slane %v2369, 7
  %vm2445 = vcmask 1041409
  %v2446 = vsel %vm2445, %v2444, %v2364
  %v2447 = vrot.slane %v2374, 6
  %vm2448 = vcmask 1042434
  %v2449 = vsel %vm2448, %v2447, %v2446
  %v2450 = vrot.slane %v2379, 5
  %vm2451 = vcmask 1043459
  %v2452 = vsel %vm2451, %v2450, %v2449
  %v2453 = vrot.slane %v2384, 4
  %vm2454 = vcmask 1044484
  %v2455 = vsel %vm2454, %v2453, %v2452
  %v2456 = vrot.slane %v2389, 3
  %vm2457 = vcmask 1045509
  %v2458 = vsel %vm2457, %v2456, %v2455
  %v2459 = vrot.slane %v2394, 2
  %vm2460 = vcmask 1046534
  %v2461 = vsel %vm2460, %v2459, %v2458
  %v2462 = vrot.slane %v2399, 1
  %vm2463 = vcmask 1047559
  %v2464 = vsel %vm2463, %v2462, %v2461
  %v2465 = vrot.slane %v2409, 7
  %v2466 = vsel %vm2445, %v2465, %v2404
  %v2469 = vadd.f32 %v2432, %v2464
  %v2470 = vadd.f32 %v2432, %v2466
  %v2471 = vlaneseq
  %v2472 = vshrl.u32 %v2471, 7
  %v2473 = vsub.s32 0, %v2472
  %v2474 = vrot.slane %v2469, %v2473
  %2476 = vbcast.lane.b32.xlu0 %v2474, 256
  %v2477 = vpop.permute.xlu0 %2476
  %v2478 = vlaneseq
  %v2479 = vshrl.u32 %v2478, 7
  %v2480 = vsub.s32 1, %v2479
  %v2481 = vrot.slane %v2469, %v2480
  %2483 = vbcast.lane.b32.xlu0 %v2481, 256
  %v2484 = vpop.permute.xlu0 %2483
  %v2485 = vlaneseq
  %v2486 = vshrl.u32 %v2485, 7
  %v2487 = vsub.s32 2, %v2486
  %v2488 = vrot.slane %v2469, %v2487
  %2490 = vbcast.lane.b32.xlu0 %v2488, 256
  %v2491 = vpop.permute.xlu0 %2490
  %v2492 = vlaneseq
  %v2493 = vshrl.u32 %v2492, 7
  %v2494 = vsub.s32 3, %v2493
  %v2495 = vrot.slane %v2469, %v2494
  %2497 = vbcast.lane.b32.xlu0 %v2495, 256
  %v2498 = vpop.permute.xlu0 %2497
  %v2499 = vlaneseq
  %v2500 = vshrl.u32 %v2499, 7
  %v2501 = vsub.s32 4, %v2500
  %v2502 = vrot.slane %v2469, %v2501
  %2504 = vbcast.lane.b32.xlu0 %v2502, 256
  %v2505 = vpop.permute.xlu0 %2504
  %v2506 = vlaneseq
  %v2507 = vshrl.u32 %v2506, 7
  %v2508 = vsub.s32 5, %v2507
  %v2509 = vrot.slane %v2469, %v2508
  %2511 = vbcast.lane.b32.xlu0 %v2509, 256
  %v2512 = vpop.permute.xlu0 %2511
  %v2513 = vlaneseq
  %v2514 = vshrl.u32 %v2513, 7
  %v2515 = vsub.s32 6, %v2514
  %v2516 = vrot.slane %v2469, %v2515
  %2518 = vbcast.lane.b32.xlu0 %v2516, 256
  %v2519 = vpop.permute.xlu0 %2518
  %v2520 = vlaneseq
  %v2521 = vshrl.u32 %v2520, 7
  %v2522 = vsub.s32 7, %v2521
  %v2523 = vrot.slane %v2469, %v2522
  %2525 = vbcast.lane.b32.xlu0 %v2523, 256
  %v2526 = vpop.permute.xlu0 %2525
  %v2527 = vlaneseq
  %v2528 = vshrl.u32 %v2527, 7
  %v2529 = vsub.s32 0, %v2528
  %v2530 = vrot.slane %v2470, %v2529
  %2532 = vbcast.lane.b32.xlu0 %v2530, 256
  %v2533 = vpop.permute.xlu0 %2532
  %v2534 = vlaneseq
  %v2535 = vshrl.u32 %v2534, 7
  %v2536 = vsub.s32 1, %v2535
  %v2537 = vrot.slane %v2470, %v2536
  %2539 = vbcast.lane.b32.xlu0 %v2537, 256
  %v2540 = vpop.permute.xlu0 %2539
  %v2541 = vadd.f32 %v2477, %v2422
  %v2542 = vadd.f32 %v2484, %v2422
  %v2543 = vadd.f32 %v2491, %v2422
  %v2544 = vadd.f32 %v2498, %v2422
  %v2545 = vadd.f32 %v2505, %v2422
  %v2546 = vadd.f32 %v2512, %v2422
  %v2547 = vadd.f32 %v2519, %v2422
  %v2548 = vadd.f32 %v2526, %v2422
  %v2549 = vadd.f32 %v2533, %v2422
  %v2550 = vadd.f32 %v2540, %v2422
  %vm2551 = vcmask 36864
  %v2552 = vsel %vm2551, %v2541, -inf
  %v2553 = vrot.slane %v2552, 4
  %v2554 = vmax.f32 %v2552, %v2553
  %v2555 = vrot.slane %v2554, 2
  %v2556 = vmax.f32 %v2554, %v2555
  %v2557 = vrot.slane %v2556, 1
  %v2558 = vmax.f32 %v2556, %v2557
  %v2559 = vsel %vm2551, %v2542, -inf
  %v2560 = vrot.slane %v2559, 4
  %v2561 = vmax.f32 %v2559, %v2560
  %v2562 = vrot.slane %v2561, 2
  %v2563 = vmax.f32 %v2561, %v2562
  %v2564 = vrot.slane %v2563, 1
  %v2565 = vmax.f32 %v2563, %v2564
  %v2566 = vsel %vm2551, %v2543, -inf
  %v2567 = vrot.slane %v2566, 4
  %v2568 = vmax.f32 %v2566, %v2567
  %v2569 = vrot.slane %v2568, 2
  %v2570 = vmax.f32 %v2568, %v2569
  %v2571 = vrot.slane %v2570, 1
  %v2572 = vmax.f32 %v2570, %v2571
  %v2573 = vsel %vm2551, %v2544, -inf
  %v2574 = vrot.slane %v2573, 4
  %v2575 = vmax.f32 %v2573, %v2574
  %v2576 = vrot.slane %v2575, 2
  %v2577 = vmax.f32 %v2575, %v2576
  %v2578 = vrot.slane %v2577, 1
  %v2579 = vmax.f32 %v2577, %v2578
  %v2580 = vsel %vm2551, %v2545, -inf
  %v2581 = vrot.slane %v2580, 4
  %v2582 = vmax.f32 %v2580, %v2581
  %v2583 = vrot.slane %v2582, 2
  %v2584 = vmax.f32 %v2582, %v2583
  %v2585 = vrot.slane %v2584, 1
  %v2586 = vmax.f32 %v2584, %v2585
  %v2587 = vsel %vm2551, %v2546, -inf
  %v2588 = vrot.slane %v2587, 4
  %v2589 = vmax.f32 %v2587, %v2588
  %v2590 = vrot.slane %v2589, 2
  %v2591 = vmax.f32 %v2589, %v2590
  %v2592 = vrot.slane %v2591, 1
  %v2593 = vmax.f32 %v2591, %v2592
  %v2594 = vsel %vm2551, %v2547, -inf
  %v2595 = vrot.slane %v2594, 4
  %v2596 = vmax.f32 %v2594, %v2595
  %v2597 = vrot.slane %v2596, 2
  %v2598 = vmax.f32 %v2596, %v2597
  %v2599 = vrot.slane %v2598, 1
  %v2600 = vmax.f32 %v2598, %v2599
  %v2601 = vsel %vm2551, %v2548, -inf
  %v2602 = vrot.slane %v2601, 4
  %v2603 = vmax.f32 %v2601, %v2602
  %v2604 = vrot.slane %v2603, 2
  %v2605 = vmax.f32 %v2603, %v2604
  %v2606 = vrot.slane %v2605, 1
  %v2607 = vmax.f32 %v2605, %v2606
  %v2608 = vsel %vm2551, %v2549, -inf
  %v2609 = vrot.slane %v2608, 4
  %v2610 = vmax.f32 %v2608, %v2609
  %v2611 = vrot.slane %v2610, 2
  %v2612 = vmax.f32 %v2610, %v2611
  %v2613 = vrot.slane %v2612, 1
  %v2614 = vmax.f32 %v2612, %v2613
  %v2615 = vsel %vm2551, %v2550, -inf
  %v2616 = vrot.slane %v2615, 4
  %v2617 = vmax.f32 %v2615, %v2616
  %v2618 = vrot.slane %v2617, 2
  %v2619 = vmax.f32 %v2617, %v2618
  %v2620 = vrot.slane %v2619, 1
  %v2621 = vmax.f32 %v2619, %v2620
  %vm2622 = vcmp.eq.f32.partialorder %v2541, %v2558
  %vm2623 = vcmp.eq.f32.partialorder %v2542, %v2565
  %vm2624 = vcmp.eq.f32.partialorder %v2543, %v2572
  %vm2625 = vcmp.eq.f32.partialorder %v2544, %v2579
  %vm2626 = vcmp.eq.f32.partialorder %v2545, %v2586
  %vm2627 = vcmp.eq.f32.partialorder %v2546, %v2593
  %vm2628 = vcmp.eq.f32.partialorder %v2547, %v2600
  %vm2629 = vcmp.eq.f32.partialorder %v2548, %v2607
  %vm2630 = vcmp.eq.f32.partialorder %v2549, %v2614
  %vm2631 = vcmp.eq.f32.partialorder %v2550, %v2621
  %v2632 = vsel %vm2622, %v2424, 5
  %v2633 = vsel %vm2623, %v2424, 5
  %v2634 = vsel %vm2624, %v2424, 5
  %v2635 = vsel %vm2625, %v2424, 5
  %v2636 = vsel %vm2626, %v2424, 5
  %v2637 = vsel %vm2627, %v2424, 5
  %v2638 = vsel %vm2628, %v2424, 5
  %v2639 = vsel %vm2629, %v2424, 5
  %v2640 = vsel %vm2630, %v2424, 5
  %v2641 = vsel %vm2631, %v2424, 5
  %v2642 = vsel %vm2551, %v2632, 2147483647
  %v2643 = vrot.slane %v2642, 4
  %vm2644 = vcmp.lt.s32.totalorder %v2642, %v2643
  %v2645 = vsel %vm2644, %v2642, %v2643
  %v2646 = vrot.slane %v2645, 2
  %vm2647 = vcmp.lt.s32.totalorder %v2645, %v2646
  %v2648 = vsel %vm2647, %v2645, %v2646
  %v2649 = vrot.slane %v2648, 1
  %vm2650 = vcmp.lt.s32.totalorder %v2648, %v2649
  %v2651 = vsel %vm2650, %v2648, %v2649
  %v2652 = vsel %vm2551, %v2633, 2147483647
  %v2653 = vrot.slane %v2652, 4
  %vm2654 = vcmp.lt.s32.totalorder %v2652, %v2653
  %v2655 = vsel %vm2654, %v2652, %v2653
  %v2656 = vrot.slane %v2655, 2
  %vm2657 = vcmp.lt.s32.totalorder %v2655, %v2656
  %v2658 = vsel %vm2657, %v2655, %v2656
  %v2659 = vrot.slane %v2658, 1
  %vm2660 = vcmp.lt.s32.totalorder %v2658, %v2659
  %v2661 = vsel %vm2660, %v2658, %v2659
  %v2662 = vsel %vm2551, %v2634, 2147483647
  %v2663 = vrot.slane %v2662, 4
  %vm2664 = vcmp.lt.s32.totalorder %v2662, %v2663
  %v2665 = vsel %vm2664, %v2662, %v2663
  %v2666 = vrot.slane %v2665, 2
  %vm2667 = vcmp.lt.s32.totalorder %v2665, %v2666
  %v2668 = vsel %vm2667, %v2665, %v2666
  %v2669 = vrot.slane %v2668, 1
  %vm2670 = vcmp.lt.s32.totalorder %v2668, %v2669
  %v2671 = vsel %vm2670, %v2668, %v2669
  %v2672 = vsel %vm2551, %v2635, 2147483647
  %v2673 = vrot.slane %v2672, 4
  %vm2674 = vcmp.lt.s32.totalorder %v2672, %v2673
  %v2675 = vsel %vm2674, %v2672, %v2673
  %v2676 = vrot.slane %v2675, 2
  %vm2677 = vcmp.lt.s32.totalorder %v2675, %v2676
  %v2678 = vsel %vm2677, %v2675, %v2676
  %v2679 = vrot.slane %v2678, 1
  %vm2680 = vcmp.lt.s32.totalorder %v2678, %v2679
  %v2681 = vsel %vm2680, %v2678, %v2679
  %v2682 = vsel %vm2551, %v2636, 2147483647
  %v2683 = vrot.slane %v2682, 4
  %vm2684 = vcmp.lt.s32.totalorder %v2682, %v2683
  %v2685 = vsel %vm2684, %v2682, %v2683
  %v2686 = vrot.slane %v2685, 2
  %vm2687 = vcmp.lt.s32.totalorder %v2685, %v2686
  %v2688 = vsel %vm2687, %v2685, %v2686
  %v2689 = vrot.slane %v2688, 1
  %vm2690 = vcmp.lt.s32.totalorder %v2688, %v2689
  %v2691 = vsel %vm2690, %v2688, %v2689
  %v2692 = vsel %vm2551, %v2637, 2147483647
  %v2693 = vrot.slane %v2692, 4
  %vm2694 = vcmp.lt.s32.totalorder %v2692, %v2693
  %v2695 = vsel %vm2694, %v2692, %v2693
  %v2696 = vrot.slane %v2695, 2
  %vm2697 = vcmp.lt.s32.totalorder %v2695, %v2696
  %v2698 = vsel %vm2697, %v2695, %v2696
  %v2699 = vrot.slane %v2698, 1
  %vm2700 = vcmp.lt.s32.totalorder %v2698, %v2699
  %v2701 = vsel %vm2700, %v2698, %v2699
  %v2702 = vsel %vm2551, %v2638, 2147483647
  %v2703 = vrot.slane %v2702, 4
  %vm2704 = vcmp.lt.s32.totalorder %v2702, %v2703
  %v2705 = vsel %vm2704, %v2702, %v2703
  %v2706 = vrot.slane %v2705, 2
  %vm2707 = vcmp.lt.s32.totalorder %v2705, %v2706
  %v2708 = vsel %vm2707, %v2705, %v2706
  %v2709 = vrot.slane %v2708, 1
  %vm2710 = vcmp.lt.s32.totalorder %v2708, %v2709
  %v2711 = vsel %vm2710, %v2708, %v2709
  %v2712 = vsel %vm2551, %v2639, 2147483647
  %v2713 = vrot.slane %v2712, 4
  %vm2714 = vcmp.lt.s32.totalorder %v2712, %v2713
  %v2715 = vsel %vm2714, %v2712, %v2713
  %v2716 = vrot.slane %v2715, 2
  %vm2717 = vcmp.lt.s32.totalorder %v2715, %v2716
  %v2718 = vsel %vm2717, %v2715, %v2716
  %v2719 = vrot.slane %v2718, 1
  %vm2720 = vcmp.lt.s32.totalorder %v2718, %v2719
  %v2721 = vsel %vm2720, %v2718, %v2719
  %v2722 = vsel %vm2551, %v2640, 2147483647
  %v2723 = vrot.slane %v2722, 4
  %vm2724 = vcmp.lt.s32.totalorder %v2722, %v2723
  %v2725 = vsel %vm2724, %v2722, %v2723
  %v2726 = vrot.slane %v2725, 2
  %vm2727 = vcmp.lt.s32.totalorder %v2725, %v2726
  %v2728 = vsel %vm2727, %v2725, %v2726
  %v2729 = vrot.slane %v2728, 1
  %vm2730 = vcmp.lt.s32.totalorder %v2728, %v2729
  %v2731 = vsel %vm2730, %v2728, %v2729
  %v2732 = vsel %vm2551, %v2641, 2147483647
  %v2733 = vrot.slane %v2732, 4
  %vm2734 = vcmp.lt.s32.totalorder %v2732, %v2733
  %v2735 = vsel %vm2734, %v2732, %v2733
  %v2736 = vrot.slane %v2735, 2
  %vm2737 = vcmp.lt.s32.totalorder %v2735, %v2736
  %v2738 = vsel %vm2737, %v2735, %v2736
  %v2739 = vrot.slane %v2738, 1
  %vm2740 = vcmp.lt.s32.totalorder %v2738, %v2739
  %v2741 = vsel %vm2740, %v2738, %v2739
  %v2742 = vadd.f32 %v2558, %v2364
  %v2743 = vadd.f32 %v2565, %v2369
  %v2744 = vadd.f32 %v2572, %v2374
  %v2745 = vadd.f32 %v2579, %v2379
  %v2746 = vadd.f32 %v2586, %v2384
  %v2747 = vadd.f32 %v2593, %v2389
  %v2748 = vadd.f32 %v2600, %v2394
  %v2749 = vadd.f32 %v2607, %v2399
  %v2750 = vadd.f32 %v2614, %v2404
  %v2751 = vadd.f32 %v2621, %v2409
  %v2752 = vlaneseq
  %v2753 = vshrl.u32 %v2752, 7
  %v2754 = vsub.s32 1, %v2753
  %v2755 = vrot.slane %v2742, %v2754
  %2757 = vbcast.lane.b32.xlu0 %v2755, 256
  %v2758 = vpop.permute.xlu0 %2757
  %v2759 = vlaneseq
  %v2760 = vshrl.u32 %v2759, 7
  %v2761 = vsub.s32 1, %v2760
  %v2762 = vrot.slane %v2743, %v2761
  %2764 = vbcast.lane.b32.xlu0 %v2762, 256
  %v2765 = vpop.permute.xlu0 %2764
  %v2766 = vlaneseq
  %v2767 = vshrl.u32 %v2766, 7
  %v2768 = vsub.s32 1, %v2767
  %v2769 = vrot.slane %v2744, %v2768
  %2771 = vbcast.lane.b32.xlu0 %v2769, 256
  %v2772 = vpop.permute.xlu0 %2771
  %v2773 = vlaneseq
  %v2774 = vshrl.u32 %v2773, 7
  %v2775 = vsub.s32 1, %v2774
  %v2776 = vrot.slane %v2745, %v2775
  %2778 = vbcast.lane.b32.xlu0 %v2776, 256
  %v2779 = vpop.permute.xlu0 %2778
  %v2780 = vlaneseq
  %v2781 = vshrl.u32 %v2780, 7
  %v2782 = vsub.s32 1, %v2781
  %v2783 = vrot.slane %v2746, %v2782
  %2785 = vbcast.lane.b32.xlu0 %v2783, 256
  %v2786 = vpop.permute.xlu0 %2785
  %v2787 = vlaneseq
  %v2788 = vshrl.u32 %v2787, 7
  %v2789 = vsub.s32 1, %v2788
  %v2790 = vrot.slane %v2747, %v2789
  %2792 = vbcast.lane.b32.xlu0 %v2790, 256
  %v2793 = vpop.permute.xlu0 %2792
  %v2794 = vlaneseq
  %v2795 = vshrl.u32 %v2794, 7
  %v2796 = vsub.s32 1, %v2795
  %v2797 = vrot.slane %v2748, %v2796
  %2799 = vbcast.lane.b32.xlu0 %v2797, 256
  %v2800 = vpop.permute.xlu0 %2799
  %v2801 = vlaneseq
  %v2802 = vshrl.u32 %v2801, 7
  %v2803 = vsub.s32 1, %v2802
  %v2804 = vrot.slane %v2749, %v2803
  %2806 = vbcast.lane.b32.xlu0 %v2804, 256
  %v2807 = vpop.permute.xlu0 %2806
  %v2808 = vlaneseq
  %v2809 = vshrl.u32 %v2808, 7
  %v2810 = vsub.s32 1, %v2809
  %v2811 = vrot.slane %v2750, %v2810
  %2813 = vbcast.lane.b32.xlu0 %v2811, 256
  %v2814 = vpop.permute.xlu0 %2813
  %v2815 = vlaneseq
  %v2816 = vshrl.u32 %v2815, 7
  %v2817 = vsub.s32 1, %v2816
  %v2818 = vrot.slane %v2751, %v2817
  %2820 = vbcast.lane.b32.xlu0 %v2818, 256
  %v2821 = vpop.permute.xlu0 %2820
  %v2822 = vadd.f32 %v2758, %v2422
  %v2823 = vadd.f32 %v2765, %v2422
  %v2824 = vadd.f32 %v2772, %v2422
  %v2825 = vadd.f32 %v2779, %v2422
  %v2826 = vadd.f32 %v2786, %v2422
  %v2827 = vadd.f32 %v2793, %v2422
  %v2828 = vadd.f32 %v2800, %v2422
  %v2829 = vadd.f32 %v2807, %v2422
  %v2830 = vadd.f32 %v2814, %v2422
  %v2831 = vadd.f32 %v2821, %v2422
  %v2832 = vsel %vm2551, %v2822, -inf
  %v2833 = vrot.slane %v2832, 4
  %v2834 = vmax.f32 %v2832, %v2833
  %v2835 = vrot.slane %v2834, 2
  %v2836 = vmax.f32 %v2834, %v2835
  %v2837 = vrot.slane %v2836, 1
  %v2838 = vmax.f32 %v2836, %v2837
  %v2839 = vsel %vm2551, %v2823, -inf
  %v2840 = vrot.slane %v2839, 4
  %v2841 = vmax.f32 %v2839, %v2840
  %v2842 = vrot.slane %v2841, 2
  %v2843 = vmax.f32 %v2841, %v2842
  %v2844 = vrot.slane %v2843, 1
  %v2845 = vmax.f32 %v2843, %v2844
  %v2846 = vsel %vm2551, %v2824, -inf
  %v2847 = vrot.slane %v2846, 4
  %v2848 = vmax.f32 %v2846, %v2847
  %v2849 = vrot.slane %v2848, 2
  %v2850 = vmax.f32 %v2848, %v2849
  %v2851 = vrot.slane %v2850, 1
  %v2852 = vmax.f32 %v2850, %v2851
  %v2853 = vsel %vm2551, %v2825, -inf
  %v2854 = vrot.slane %v2853, 4
  %v2855 = vmax.f32 %v2853, %v2854
  %v2856 = vrot.slane %v2855, 2
  %v2857 = vmax.f32 %v2855, %v2856
  %v2858 = vrot.slane %v2857, 1
  %v2859 = vmax.f32 %v2857, %v2858
  %v2860 = vsel %vm2551, %v2826, -inf
  %v2861 = vrot.slane %v2860, 4
  %v2862 = vmax.f32 %v2860, %v2861
  %v2863 = vrot.slane %v2862, 2
  %v2864 = vmax.f32 %v2862, %v2863
  %v2865 = vrot.slane %v2864, 1
  %v2866 = vmax.f32 %v2864, %v2865
  %v2867 = vsel %vm2551, %v2827, -inf
  %v2868 = vrot.slane %v2867, 4
  %v2869 = vmax.f32 %v2867, %v2868
  %v2870 = vrot.slane %v2869, 2
  %v2871 = vmax.f32 %v2869, %v2870
  %v2872 = vrot.slane %v2871, 1
  %v2873 = vmax.f32 %v2871, %v2872
  %v2874 = vsel %vm2551, %v2828, -inf
  %v2875 = vrot.slane %v2874, 4
  %v2876 = vmax.f32 %v2874, %v2875
  %v2877 = vrot.slane %v2876, 2
  %v2878 = vmax.f32 %v2876, %v2877
  %v2879 = vrot.slane %v2878, 1
  %v2880 = vmax.f32 %v2878, %v2879
  %v2881 = vsel %vm2551, %v2829, -inf
  %v2882 = vrot.slane %v2881, 4
  %v2883 = vmax.f32 %v2881, %v2882
  %v2884 = vrot.slane %v2883, 2
  %v2885 = vmax.f32 %v2883, %v2884
  %v2886 = vrot.slane %v2885, 1
  %v2887 = vmax.f32 %v2885, %v2886
  %v2888 = vsel %vm2551, %v2830, -inf
  %v2889 = vrot.slane %v2888, 4
  %v2890 = vmax.f32 %v2888, %v2889
  %v2891 = vrot.slane %v2890, 2
  %v2892 = vmax.f32 %v2890, %v2891
  %v2893 = vrot.slane %v2892, 1
  %v2894 = vmax.f32 %v2892, %v2893
  %v2895 = vsel %vm2551, %v2831, -inf
  %v2896 = vrot.slane %v2895, 4
  %v2897 = vmax.f32 %v2895, %v2896
  %v2898 = vrot.slane %v2897, 2
  %v2899 = vmax.f32 %v2897, %v2898
  %v2900 = vrot.slane %v2899, 1
  %v2901 = vmax.f32 %v2899, %v2900
  %vm2902 = vcmp.eq.f32.partialorder %v2822, %v2838
  %vm2903 = vcmp.eq.f32.partialorder %v2823, %v2845
  %vm2904 = vcmp.eq.f32.partialorder %v2824, %v2852
  %vm2905 = vcmp.eq.f32.partialorder %v2825, %v2859
  %vm2906 = vcmp.eq.f32.partialorder %v2826, %v2866
  %vm2907 = vcmp.eq.f32.partialorder %v2827, %v2873
  %vm2908 = vcmp.eq.f32.partialorder %v2828, %v2880
  %vm2909 = vcmp.eq.f32.partialorder %v2829, %v2887
  %vm2910 = vcmp.eq.f32.partialorder %v2830, %v2894
  %vm2911 = vcmp.eq.f32.partialorder %v2831, %v2901
  %v2912 = vsel %vm2902, %v2424, 5
  %v2913 = vsel %vm2903, %v2424, 5
  %v2914 = vsel %vm2904, %v2424, 5
  %v2915 = vsel %vm2905, %v2424, 5
  %v2916 = vsel %vm2906, %v2424, 5
  %v2917 = vsel %vm2907, %v2424, 5
  %v2918 = vsel %vm2908, %v2424, 5
  %v2919 = vsel %vm2909, %v2424, 5
  %v2920 = vsel %vm2910, %v2424, 5
  %v2921 = vsel %vm2911, %v2424, 5
  %v2922 = vsel %vm2551, %v2912, 2147483647
  %v2923 = vrot.slane %v2922, 4
  %vm2924 = vcmp.lt.s32.totalorder %v2922, %v2923
  %v2925 = vsel %vm2924, %v2922, %v2923
  %v2926 = vrot.slane %v2925, 2
  %vm2927 = vcmp.lt.s32.totalorder %v2925, %v2926
  %v2928 = vsel %vm2927, %v2925, %v2926
  %v2929 = vrot.slane %v2928, 1
  %vm2930 = vcmp.lt.s32.totalorder %v2928, %v2929
  %v2931 = vsel %vm2930, %v2928, %v2929
  %v2932 = vsel %vm2551, %v2913, 2147483647
  %v2933 = vrot.slane %v2932, 4
  %vm2934 = vcmp.lt.s32.totalorder %v2932, %v2933
  %v2935 = vsel %vm2934, %v2932, %v2933
  %v2936 = vrot.slane %v2935, 2
  %vm2937 = vcmp.lt.s32.totalorder %v2935, %v2936
  %v2938 = vsel %vm2937, %v2935, %v2936
  %v2939 = vrot.slane %v2938, 1
  %vm2940 = vcmp.lt.s32.totalorder %v2938, %v2939
  %v2941 = vsel %vm2940, %v2938, %v2939
  %v2942 = vsel %vm2551, %v2914, 2147483647
  %v2943 = vrot.slane %v2942, 4
  %vm2944 = vcmp.lt.s32.totalorder %v2942, %v2943
  %v2945 = vsel %vm2944, %v2942, %v2943
  %v2946 = vrot.slane %v2945, 2
  %vm2947 = vcmp.lt.s32.totalorder %v2945, %v2946
  %v2948 = vsel %vm2947, %v2945, %v2946
  %v2949 = vrot.slane %v2948, 1
  %vm2950 = vcmp.lt.s32.totalorder %v2948, %v2949
  %v2951 = vsel %vm2950, %v2948, %v2949
  %v2952 = vsel %vm2551, %v2915, 2147483647
  %v2953 = vrot.slane %v2952, 4
  %vm2954 = vcmp.lt.s32.totalorder %v2952, %v2953
  %v2955 = vsel %vm2954, %v2952, %v2953
  %v2956 = vrot.slane %v2955, 2
  %vm2957 = vcmp.lt.s32.totalorder %v2955, %v2956
  %v2958 = vsel %vm2957, %v2955, %v2956
  %v2959 = vrot.slane %v2958, 1
  %vm2960 = vcmp.lt.s32.totalorder %v2958, %v2959
  %v2961 = vsel %vm2960, %v2958, %v2959
  %v2962 = vsel %vm2551, %v2916, 2147483647
  %v2963 = vrot.slane %v2962, 4
  %vm2964 = vcmp.lt.s32.totalorder %v2962, %v2963
  %v2965 = vsel %vm2964, %v2962, %v2963
  %v2966 = vrot.slane %v2965, 2
  %vm2967 = vcmp.lt.s32.totalorder %v2965, %v2966
  %v2968 = vsel %vm2967, %v2965, %v2966
  %v2969 = vrot.slane %v2968, 1
  %vm2970 = vcmp.lt.s32.totalorder %v2968, %v2969
  %v2971 = vsel %vm2970, %v2968, %v2969
  %v2972 = vsel %vm2551, %v2917, 2147483647
  %v2973 = vrot.slane %v2972, 4
  %vm2974 = vcmp.lt.s32.totalorder %v2972, %v2973
  %v2975 = vsel %vm2974, %v2972, %v2973
  %v2976 = vrot.slane %v2975, 2
  %vm2977 = vcmp.lt.s32.totalorder %v2975, %v2976
  %v2978 = vsel %vm2977, %v2975, %v2976
  %v2979 = vrot.slane %v2978, 1
  %vm2980 = vcmp.lt.s32.totalorder %v2978, %v2979
  %v2981 = vsel %vm2980, %v2978, %v2979
  %v2982 = vsel %vm2551, %v2918, 2147483647
  %v2983 = vrot.slane %v2982, 4
  %vm2984 = vcmp.lt.s32.totalorder %v2982, %v2983
  %v2985 = vsel %vm2984, %v2982, %v2983
  %v2986 = vrot.slane %v2985, 2
  %vm2987 = vcmp.lt.s32.totalorder %v2985, %v2986
  %v2988 = vsel %vm2987, %v2985, %v2986
  %v2989 = vrot.slane %v2988, 1
  %vm2990 = vcmp.lt.s32.totalorder %v2988, %v2989
  %v2991 = vsel %vm2990, %v2988, %v2989
  %v2992 = vsel %vm2551, %v2919, 2147483647
  %v2993 = vrot.slane %v2992, 4
  %vm2994 = vcmp.lt.s32.totalorder %v2992, %v2993
  %v2995 = vsel %vm2994, %v2992, %v2993
  %v2996 = vrot.slane %v2995, 2
  %vm2997 = vcmp.lt.s32.totalorder %v2995, %v2996
  %v2998 = vsel %vm2997, %v2995, %v2996
  %v2999 = vrot.slane %v2998, 1
  %vm3000 = vcmp.lt.s32.totalorder %v2998, %v2999
  %v3001 = vsel %vm3000, %v2998, %v2999
  %v3002 = vsel %vm2551, %v2920, 2147483647
  %v3003 = vrot.slane %v3002, 4
  %vm3004 = vcmp.lt.s32.totalorder %v3002, %v3003
  %v3005 = vsel %vm3004, %v3002, %v3003
  %v3006 = vrot.slane %v3005, 2
  %vm3007 = vcmp.lt.s32.totalorder %v3005, %v3006
  %v3008 = vsel %vm3007, %v3005, %v3006
  %v3009 = vrot.slane %v3008, 1
  %vm3010 = vcmp.lt.s32.totalorder %v3008, %v3009
  %v3011 = vsel %vm3010, %v3008, %v3009
  %v3012 = vsel %vm2551, %v2921, 2147483647
  %v3013 = vrot.slane %v3012, 4
  %vm3014 = vcmp.lt.s32.totalorder %v3012, %v3013
  %v3015 = vsel %vm3014, %v3012, %v3013
  %v3016 = vrot.slane %v3015, 2
  %vm3017 = vcmp.lt.s32.totalorder %v3015, %v3016
  %v3018 = vsel %vm3017, %v3015, %v3016
  %v3019 = vrot.slane %v3018, 1
  %vm3020 = vcmp.lt.s32.totalorder %v3018, %v3019
  %v3021 = vsel %vm3020, %v3018, %v3019
  %v3022 = vadd.f32 %v2838, %v2364
  %v3023 = vadd.f32 %v2845, %v2369
  %v3024 = vadd.f32 %v2852, %v2374
  %v3025 = vadd.f32 %v2859, %v2379
  %v3026 = vadd.f32 %v2866, %v2384
  %v3027 = vadd.f32 %v2873, %v2389
  %v3028 = vadd.f32 %v2880, %v2394
  %v3029 = vadd.f32 %v2887, %v2399
  %v3030 = vadd.f32 %v2894, %v2404
  %v3031 = vadd.f32 %v2901, %v2409
  %v3032 = vlaneseq
  %v3033 = vshrl.u32 %v3032, 7
  %v3034 = vsub.s32 2, %v3033
  %v3035 = vrot.slane %v3022, %v3034
  %3037 = vbcast.lane.b32.xlu0 %v3035, 256
  %v3038 = vpop.permute.xlu0 %3037
  %v3039 = vlaneseq
  %v3040 = vshrl.u32 %v3039, 7
  %v3041 = vsub.s32 2, %v3040
  %v3042 = vrot.slane %v3023, %v3041
  %3044 = vbcast.lane.b32.xlu0 %v3042, 256
  %v3045 = vpop.permute.xlu0 %3044
  %v3046 = vlaneseq
  %v3047 = vshrl.u32 %v3046, 7
  %v3048 = vsub.s32 2, %v3047
  %v3049 = vrot.slane %v3024, %v3048
  %3051 = vbcast.lane.b32.xlu0 %v3049, 256
  %v3052 = vpop.permute.xlu0 %3051
  %v3053 = vlaneseq
  %v3054 = vshrl.u32 %v3053, 7
  %v3055 = vsub.s32 2, %v3054
  %v3056 = vrot.slane %v3025, %v3055
  %3058 = vbcast.lane.b32.xlu0 %v3056, 256
  %v3059 = vpop.permute.xlu0 %3058
  %v3060 = vlaneseq
  %v3061 = vshrl.u32 %v3060, 7
  %v3062 = vsub.s32 2, %v3061
  %v3063 = vrot.slane %v3026, %v3062
  %3065 = vbcast.lane.b32.xlu0 %v3063, 256
  %v3066 = vpop.permute.xlu0 %3065
  %v3067 = vlaneseq
  %v3068 = vshrl.u32 %v3067, 7
  %v3069 = vsub.s32 2, %v3068
  %v3070 = vrot.slane %v3027, %v3069
  %3072 = vbcast.lane.b32.xlu0 %v3070, 256
  %v3073 = vpop.permute.xlu0 %3072
  %v3074 = vlaneseq
  %v3075 = vshrl.u32 %v3074, 7
  %v3076 = vsub.s32 2, %v3075
  %v3077 = vrot.slane %v3028, %v3076
  %3079 = vbcast.lane.b32.xlu0 %v3077, 256
  %v3080 = vpop.permute.xlu0 %3079
  %v3081 = vlaneseq
  %v3082 = vshrl.u32 %v3081, 7
  %v3083 = vsub.s32 2, %v3082
  %v3084 = vrot.slane %v3029, %v3083
  %3086 = vbcast.lane.b32.xlu0 %v3084, 256
  %v3087 = vpop.permute.xlu0 %3086
  %v3088 = vlaneseq
  %v3089 = vshrl.u32 %v3088, 7
  %v3090 = vsub.s32 2, %v3089
  %v3091 = vrot.slane %v3030, %v3090
  %3093 = vbcast.lane.b32.xlu0 %v3091, 256
  %v3094 = vpop.permute.xlu0 %3093
  %v3095 = vlaneseq
  %v3096 = vshrl.u32 %v3095, 7
  %v3097 = vsub.s32 2, %v3096
  %v3098 = vrot.slane %v3031, %v3097
  %3100 = vbcast.lane.b32.xlu0 %v3098, 256
  %v3101 = vpop.permute.xlu0 %3100
  %v3102 = vadd.f32 %v3038, %v2422
  %v3103 = vadd.f32 %v3045, %v2422
  %v3104 = vadd.f32 %v3052, %v2422
  %v3105 = vadd.f32 %v3059, %v2422
  %v3106 = vadd.f32 %v3066, %v2422
  %v3107 = vadd.f32 %v3073, %v2422
  %v3108 = vadd.f32 %v3080, %v2422
  %v3109 = vadd.f32 %v3087, %v2422
  %v3110 = vadd.f32 %v3094, %v2422
  %v3111 = vadd.f32 %v3101, %v2422
  %v3112 = vsel %vm2551, %v3102, -inf
  %v3113 = vrot.slane %v3112, 4
  %v3114 = vmax.f32 %v3112, %v3113
  %v3115 = vrot.slane %v3114, 2
  %v3116 = vmax.f32 %v3114, %v3115
  %v3117 = vrot.slane %v3116, 1
  %v3118 = vmax.f32 %v3116, %v3117
  %v3119 = vsel %vm2551, %v3103, -inf
  %v3120 = vrot.slane %v3119, 4
  %v3121 = vmax.f32 %v3119, %v3120
  %v3122 = vrot.slane %v3121, 2
  %v3123 = vmax.f32 %v3121, %v3122
  %v3124 = vrot.slane %v3123, 1
  %v3125 = vmax.f32 %v3123, %v3124
  %v3126 = vsel %vm2551, %v3104, -inf
  %v3127 = vrot.slane %v3126, 4
  %v3128 = vmax.f32 %v3126, %v3127
  %v3129 = vrot.slane %v3128, 2
  %v3130 = vmax.f32 %v3128, %v3129
  %v3131 = vrot.slane %v3130, 1
  %v3132 = vmax.f32 %v3130, %v3131
  %v3133 = vsel %vm2551, %v3105, -inf
  %v3134 = vrot.slane %v3133, 4
  %v3135 = vmax.f32 %v3133, %v3134
  %v3136 = vrot.slane %v3135, 2
  %v3137 = vmax.f32 %v3135, %v3136
  %v3138 = vrot.slane %v3137, 1
  %v3139 = vmax.f32 %v3137, %v3138
  %v3140 = vsel %vm2551, %v3106, -inf
  %v3141 = vrot.slane %v3140, 4
  %v3142 = vmax.f32 %v3140, %v3141
  %v3143 = vrot.slane %v3142, 2
  %v3144 = vmax.f32 %v3142, %v3143
  %v3145 = vrot.slane %v3144, 1
  %v3146 = vmax.f32 %v3144, %v3145
  %v3147 = vsel %vm2551, %v3107, -inf
  %v3148 = vrot.slane %v3147, 4
  %v3149 = vmax.f32 %v3147, %v3148
  %v3150 = vrot.slane %v3149, 2
  %v3151 = vmax.f32 %v3149, %v3150
  %v3152 = vrot.slane %v3151, 1
  %v3153 = vmax.f32 %v3151, %v3152
  %v3154 = vsel %vm2551, %v3108, -inf
  %v3155 = vrot.slane %v3154, 4
  %v3156 = vmax.f32 %v3154, %v3155
  %v3157 = vrot.slane %v3156, 2
  %v3158 = vmax.f32 %v3156, %v3157
  %v3159 = vrot.slane %v3158, 1
  %v3160 = vmax.f32 %v3158, %v3159
  %v3161 = vsel %vm2551, %v3109, -inf
  %v3162 = vrot.slane %v3161, 4
  %v3163 = vmax.f32 %v3161, %v3162
  %v3164 = vrot.slane %v3163, 2
  %v3165 = vmax.f32 %v3163, %v3164
  %v3166 = vrot.slane %v3165, 1
  %v3167 = vmax.f32 %v3165, %v3166
  %v3168 = vsel %vm2551, %v3110, -inf
  %v3169 = vrot.slane %v3168, 4
  %v3170 = vmax.f32 %v3168, %v3169
  %v3171 = vrot.slane %v3170, 2
  %v3172 = vmax.f32 %v3170, %v3171
  %v3173 = vrot.slane %v3172, 1
  %v3174 = vmax.f32 %v3172, %v3173
  %v3175 = vsel %vm2551, %v3111, -inf
  %v3176 = vrot.slane %v3175, 4
  %v3177 = vmax.f32 %v3175, %v3176
  %v3178 = vrot.slane %v3177, 2
  %v3179 = vmax.f32 %v3177, %v3178
  %v3180 = vrot.slane %v3179, 1
  %v3181 = vmax.f32 %v3179, %v3180
  %vm3182 = vcmp.eq.f32.partialorder %v3102, %v3118
  %vm3183 = vcmp.eq.f32.partialorder %v3103, %v3125
  %vm3184 = vcmp.eq.f32.partialorder %v3104, %v3132
  %vm3185 = vcmp.eq.f32.partialorder %v3105, %v3139
  %vm3186 = vcmp.eq.f32.partialorder %v3106, %v3146
  %vm3187 = vcmp.eq.f32.partialorder %v3107, %v3153
  %vm3188 = vcmp.eq.f32.partialorder %v3108, %v3160
  %vm3189 = vcmp.eq.f32.partialorder %v3109, %v3167
  %vm3190 = vcmp.eq.f32.partialorder %v3110, %v3174
  %vm3191 = vcmp.eq.f32.partialorder %v3111, %v3181
  %v3192 = vsel %vm3182, %v2424, 5
  %v3193 = vsel %vm3183, %v2424, 5
  %v3194 = vsel %vm3184, %v2424, 5
  %v3195 = vsel %vm3185, %v2424, 5
  %v3196 = vsel %vm3186, %v2424, 5
  %v3197 = vsel %vm3187, %v2424, 5
  %v3198 = vsel %vm3188, %v2424, 5
  %v3199 = vsel %vm3189, %v2424, 5
  %v3200 = vsel %vm3190, %v2424, 5
  %v3201 = vsel %vm3191, %v2424, 5
  %v3202 = vsel %vm2551, %v3192, 2147483647
  %v3203 = vrot.slane %v3202, 4
  %vm3204 = vcmp.lt.s32.totalorder %v3202, %v3203
  %v3205 = vsel %vm3204, %v3202, %v3203
  %v3206 = vrot.slane %v3205, 2
  %vm3207 = vcmp.lt.s32.totalorder %v3205, %v3206
  %v3208 = vsel %vm3207, %v3205, %v3206
  %v3209 = vrot.slane %v3208, 1
  %vm3210 = vcmp.lt.s32.totalorder %v3208, %v3209
  %v3211 = vsel %vm3210, %v3208, %v3209
  %v3212 = vsel %vm2551, %v3193, 2147483647
  %v3213 = vrot.slane %v3212, 4
  %vm3214 = vcmp.lt.s32.totalorder %v3212, %v3213
  %v3215 = vsel %vm3214, %v3212, %v3213
  %v3216 = vrot.slane %v3215, 2
  %vm3217 = vcmp.lt.s32.totalorder %v3215, %v3216
  %v3218 = vsel %vm3217, %v3215, %v3216
  %v3219 = vrot.slane %v3218, 1
  %vm3220 = vcmp.lt.s32.totalorder %v3218, %v3219
  %v3221 = vsel %vm3220, %v3218, %v3219
  %v3222 = vsel %vm2551, %v3194, 2147483647
  %v3223 = vrot.slane %v3222, 4
  %vm3224 = vcmp.lt.s32.totalorder %v3222, %v3223
  %v3225 = vsel %vm3224, %v3222, %v3223
  %v3226 = vrot.slane %v3225, 2
  %vm3227 = vcmp.lt.s32.totalorder %v3225, %v3226
  %v3228 = vsel %vm3227, %v3225, %v3226
  %v3229 = vrot.slane %v3228, 1
  %vm3230 = vcmp.lt.s32.totalorder %v3228, %v3229
  %v3231 = vsel %vm3230, %v3228, %v3229
  %v3232 = vsel %vm2551, %v3195, 2147483647
  %v3233 = vrot.slane %v3232, 4
  %vm3234 = vcmp.lt.s32.totalorder %v3232, %v3233
  %v3235 = vsel %vm3234, %v3232, %v3233
  %v3236 = vrot.slane %v3235, 2
  %vm3237 = vcmp.lt.s32.totalorder %v3235, %v3236
  %v3238 = vsel %vm3237, %v3235, %v3236
  %v3239 = vrot.slane %v3238, 1
  %vm3240 = vcmp.lt.s32.totalorder %v3238, %v3239
  %v3241 = vsel %vm3240, %v3238, %v3239
  %v3242 = vsel %vm2551, %v3196, 2147483647
  %v3243 = vrot.slane %v3242, 4
  %vm3244 = vcmp.lt.s32.totalorder %v3242, %v3243
  %v3245 = vsel %vm3244, %v3242, %v3243
  %v3246 = vrot.slane %v3245, 2
  %vm3247 = vcmp.lt.s32.totalorder %v3245, %v3246
  %v3248 = vsel %vm3247, %v3245, %v3246
  %v3249 = vrot.slane %v3248, 1
  %vm3250 = vcmp.lt.s32.totalorder %v3248, %v3249
  %v3251 = vsel %vm3250, %v3248, %v3249
  %v3252 = vsel %vm2551, %v3197, 2147483647
  %v3253 = vrot.slane %v3252, 4
  %vm3254 = vcmp.lt.s32.totalorder %v3252, %v3253
  %v3255 = vsel %vm3254, %v3252, %v3253
  %v3256 = vrot.slane %v3255, 2
  %vm3257 = vcmp.lt.s32.totalorder %v3255, %v3256
  %v3258 = vsel %vm3257, %v3255, %v3256
  %v3259 = vrot.slane %v3258, 1
  %vm3260 = vcmp.lt.s32.totalorder %v3258, %v3259
  %v3261 = vsel %vm3260, %v3258, %v3259
  %v3262 = vsel %vm2551, %v3198, 2147483647
  %v3263 = vrot.slane %v3262, 4
  %vm3264 = vcmp.lt.s32.totalorder %v3262, %v3263
  %v3265 = vsel %vm3264, %v3262, %v3263
  %v3266 = vrot.slane %v3265, 2
  %vm3267 = vcmp.lt.s32.totalorder %v3265, %v3266
  %v3268 = vsel %vm3267, %v3265, %v3266
  %v3269 = vrot.slane %v3268, 1
  %vm3270 = vcmp.lt.s32.totalorder %v3268, %v3269
  %v3271 = vsel %vm3270, %v3268, %v3269
  %v3272 = vsel %vm2551, %v3199, 2147483647
  %v3273 = vrot.slane %v3272, 4
  %vm3274 = vcmp.lt.s32.totalorder %v3272, %v3273
  %v3275 = vsel %vm3274, %v3272, %v3273
  %v3276 = vrot.slane %v3275, 2
  %vm3277 = vcmp.lt.s32.totalorder %v3275, %v3276
  %v3278 = vsel %vm3277, %v3275, %v3276
  %v3279 = vrot.slane %v3278, 1
  %vm3280 = vcmp.lt.s32.totalorder %v3278, %v3279
  %v3281 = vsel %vm3280, %v3278, %v3279
  %v3282 = vsel %vm2551, %v3200, 2147483647
  %v3283 = vrot.slane %v3282, 4
  %vm3284 = vcmp.lt.s32.totalorder %v3282, %v3283
  %v3285 = vsel %vm3284, %v3282, %v3283
  %v3286 = vrot.slane %v3285, 2
  %vm3287 = vcmp.lt.s32.totalorder %v3285, %v3286
  %v3288 = vsel %vm3287, %v3285, %v3286
  %v3289 = vrot.slane %v3288, 1
  %vm3290 = vcmp.lt.s32.totalorder %v3288, %v3289
  %v3291 = vsel %vm3290, %v3288, %v3289
  %v3292 = vsel %vm2551, %v3201, 2147483647
  %v3293 = vrot.slane %v3292, 4
  %vm3294 = vcmp.lt.s32.totalorder %v3292, %v3293
  %v3295 = vsel %vm3294, %v3292, %v3293
  %v3296 = vrot.slane %v3295, 2
  %vm3297 = vcmp.lt.s32.totalorder %v3295, %v3296
  %v3298 = vsel %vm3297, %v3295, %v3296
  %v3299 = vrot.slane %v3298, 1
  %vm3300 = vcmp.lt.s32.totalorder %v3298, %v3299
  %v3301 = vsel %vm3300, %v3298, %v3299
  %v3302 = vadd.f32 %v3118, %v2364
  %v3303 = vadd.f32 %v3125, %v2369
  %v3304 = vadd.f32 %v3132, %v2374
  %v3305 = vadd.f32 %v3139, %v2379
  %v3306 = vadd.f32 %v3146, %v2384
  %v3307 = vadd.f32 %v3153, %v2389
  %v3308 = vadd.f32 %v3160, %v2394
  %v3309 = vadd.f32 %v3167, %v2399
  %v3310 = vadd.f32 %v3174, %v2404
  %v3311 = vadd.f32 %v3181, %v2409
  %v3312 = vlaneseq
  %v3313 = vshrl.u32 %v3312, 7
  %v3314 = vsub.s32 3, %v3313
  %v3315 = vrot.slane %v3302, %v3314
  %3317 = vbcast.lane.b32.xlu0 %v3315, 256
  %v3318 = vpop.permute.xlu0 %3317
  %v3319 = vlaneseq
  %v3320 = vshrl.u32 %v3319, 7
  %v3321 = vsub.s32 3, %v3320
  %v3322 = vrot.slane %v3303, %v3321
  %3324 = vbcast.lane.b32.xlu0 %v3322, 256
  %v3325 = vpop.permute.xlu0 %3324
  %v3326 = vlaneseq
  %v3327 = vshrl.u32 %v3326, 7
  %v3328 = vsub.s32 3, %v3327
  %v3329 = vrot.slane %v3304, %v3328
  %3331 = vbcast.lane.b32.xlu0 %v3329, 256
  %v3332 = vpop.permute.xlu0 %3331
  %v3333 = vlaneseq
  %v3334 = vshrl.u32 %v3333, 7
  %v3335 = vsub.s32 3, %v3334
  %v3336 = vrot.slane %v3305, %v3335
  %3338 = vbcast.lane.b32.xlu0 %v3336, 256
  %v3339 = vpop.permute.xlu0 %3338
  %v3340 = vlaneseq
  %v3341 = vshrl.u32 %v3340, 7
  %v3342 = vsub.s32 3, %v3341
  %v3343 = vrot.slane %v3306, %v3342
  %3345 = vbcast.lane.b32.xlu0 %v3343, 256
  %v3346 = vpop.permute.xlu0 %3345
  %v3347 = vlaneseq
  %v3348 = vshrl.u32 %v3347, 7
  %v3349 = vsub.s32 3, %v3348
  %v3350 = vrot.slane %v3307, %v3349
  %3352 = vbcast.lane.b32.xlu0 %v3350, 256
  %v3353 = vpop.permute.xlu0 %3352
  %v3354 = vlaneseq
  %v3355 = vshrl.u32 %v3354, 7
  %v3356 = vsub.s32 3, %v3355
  %v3357 = vrot.slane %v3308, %v3356
  %3359 = vbcast.lane.b32.xlu0 %v3357, 256
  %v3360 = vpop.permute.xlu0 %3359
  %v3361 = vlaneseq
  %v3362 = vshrl.u32 %v3361, 7
  %v3363 = vsub.s32 3, %v3362
  %v3364 = vrot.slane %v3309, %v3363
  %3366 = vbcast.lane.b32.xlu0 %v3364, 256
  %v3367 = vpop.permute.xlu0 %3366
  %v3368 = vlaneseq
  %v3369 = vshrl.u32 %v3368, 7
  %v3370 = vsub.s32 3, %v3369
  %v3371 = vrot.slane %v3310, %v3370
  %3373 = vbcast.lane.b32.xlu0 %v3371, 256
  %v3374 = vpop.permute.xlu0 %3373
  %v3375 = vlaneseq
  %v3376 = vshrl.u32 %v3375, 7
  %v3377 = vsub.s32 3, %v3376
  %v3378 = vrot.slane %v3311, %v3377
  %3380 = vbcast.lane.b32.xlu0 %v3378, 256
  %v3381 = vpop.permute.xlu0 %3380
  %v3382 = vadd.f32 %v3318, %v2422
  %v3383 = vadd.f32 %v3325, %v2422
  %v3384 = vadd.f32 %v3332, %v2422
  %v3385 = vadd.f32 %v3339, %v2422
  %v3386 = vadd.f32 %v3346, %v2422
  %v3387 = vadd.f32 %v3353, %v2422
  %v3388 = vadd.f32 %v3360, %v2422
  %v3389 = vadd.f32 %v3367, %v2422
  %v3390 = vadd.f32 %v3374, %v2422
  %v3391 = vadd.f32 %v3381, %v2422
  %v3392 = vsel %vm2551, %v3382, -inf
  %v3393 = vrot.slane %v3392, 4
  %v3394 = vmax.f32 %v3392, %v3393
  %v3395 = vrot.slane %v3394, 2
  %v3396 = vmax.f32 %v3394, %v3395
  %v3397 = vrot.slane %v3396, 1
  %v3398 = vmax.f32 %v3396, %v3397
  %v3399 = vsel %vm2551, %v3383, -inf
  %v3400 = vrot.slane %v3399, 4
  %v3401 = vmax.f32 %v3399, %v3400
  %v3402 = vrot.slane %v3401, 2
  %v3403 = vmax.f32 %v3401, %v3402
  %v3404 = vrot.slane %v3403, 1
  %v3405 = vmax.f32 %v3403, %v3404
  %v3406 = vsel %vm2551, %v3384, -inf
  %v3407 = vrot.slane %v3406, 4
  %v3408 = vmax.f32 %v3406, %v3407
  %v3409 = vrot.slane %v3408, 2
  %v3410 = vmax.f32 %v3408, %v3409
  %v3411 = vrot.slane %v3410, 1
  %v3412 = vmax.f32 %v3410, %v3411
  %v3413 = vsel %vm2551, %v3385, -inf
  %v3414 = vrot.slane %v3413, 4
  %v3415 = vmax.f32 %v3413, %v3414
  %v3416 = vrot.slane %v3415, 2
  %v3417 = vmax.f32 %v3415, %v3416
  %v3418 = vrot.slane %v3417, 1
  %v3419 = vmax.f32 %v3417, %v3418
  %v3420 = vsel %vm2551, %v3386, -inf
  %v3421 = vrot.slane %v3420, 4
  %v3422 = vmax.f32 %v3420, %v3421
  %v3423 = vrot.slane %v3422, 2
  %v3424 = vmax.f32 %v3422, %v3423
  %v3425 = vrot.slane %v3424, 1
  %v3426 = vmax.f32 %v3424, %v3425
  %v3427 = vsel %vm2551, %v3387, -inf
  %v3428 = vrot.slane %v3427, 4
  %v3429 = vmax.f32 %v3427, %v3428
  %v3430 = vrot.slane %v3429, 2
  %v3431 = vmax.f32 %v3429, %v3430
  %v3432 = vrot.slane %v3431, 1
  %v3433 = vmax.f32 %v3431, %v3432
  %v3434 = vsel %vm2551, %v3388, -inf
  %v3435 = vrot.slane %v3434, 4
  %v3436 = vmax.f32 %v3434, %v3435
  %v3437 = vrot.slane %v3436, 2
  %v3438 = vmax.f32 %v3436, %v3437
  %v3439 = vrot.slane %v3438, 1
  %v3440 = vmax.f32 %v3438, %v3439
  %v3441 = vsel %vm2551, %v3389, -inf
  %v3442 = vrot.slane %v3441, 4
  %v3443 = vmax.f32 %v3441, %v3442
  %v3444 = vrot.slane %v3443, 2
  %v3445 = vmax.f32 %v3443, %v3444
  %v3446 = vrot.slane %v3445, 1
  %v3447 = vmax.f32 %v3445, %v3446
  %v3448 = vsel %vm2551, %v3390, -inf
  %v3449 = vrot.slane %v3448, 4
  %v3450 = vmax.f32 %v3448, %v3449
  %v3451 = vrot.slane %v3450, 2
  %v3452 = vmax.f32 %v3450, %v3451
  %v3453 = vrot.slane %v3452, 1
  %v3454 = vmax.f32 %v3452, %v3453
  %v3455 = vsel %vm2551, %v3391, -inf
  %v3456 = vrot.slane %v3455, 4
  %v3457 = vmax.f32 %v3455, %v3456
  %v3458 = vrot.slane %v3457, 2
  %v3459 = vmax.f32 %v3457, %v3458
  %v3460 = vrot.slane %v3459, 1
  %v3461 = vmax.f32 %v3459, %v3460
  %vm3462 = vcmp.eq.f32.partialorder %v3382, %v3398
  %vm3463 = vcmp.eq.f32.partialorder %v3383, %v3405
  %vm3464 = vcmp.eq.f32.partialorder %v3384, %v3412
  %vm3465 = vcmp.eq.f32.partialorder %v3385, %v3419
  %vm3466 = vcmp.eq.f32.partialorder %v3386, %v3426
  %vm3467 = vcmp.eq.f32.partialorder %v3387, %v3433
  %vm3468 = vcmp.eq.f32.partialorder %v3388, %v3440
  %vm3469 = vcmp.eq.f32.partialorder %v3389, %v3447
  %vm3470 = vcmp.eq.f32.partialorder %v3390, %v3454
  %vm3471 = vcmp.eq.f32.partialorder %v3391, %v3461
  %v3472 = vsel %vm3462, %v2424, 5
  %v3473 = vsel %vm3463, %v2424, 5
  %v3474 = vsel %vm3464, %v2424, 5
  %v3475 = vsel %vm3465, %v2424, 5
  %v3476 = vsel %vm3466, %v2424, 5
  %v3477 = vsel %vm3467, %v2424, 5
  %v3478 = vsel %vm3468, %v2424, 5
  %v3479 = vsel %vm3469, %v2424, 5
  %v3480 = vsel %vm3470, %v2424, 5
  %v3481 = vsel %vm3471, %v2424, 5
  %v3482 = vsel %vm2551, %v3472, 2147483647
  %v3483 = vrot.slane %v3482, 4
  %vm3484 = vcmp.lt.s32.totalorder %v3482, %v3483
  %v3485 = vsel %vm3484, %v3482, %v3483
  %v3486 = vrot.slane %v3485, 2
  %vm3487 = vcmp.lt.s32.totalorder %v3485, %v3486
  %v3488 = vsel %vm3487, %v3485, %v3486
  %v3489 = vrot.slane %v3488, 1
  %vm3490 = vcmp.lt.s32.totalorder %v3488, %v3489
  %v3491 = vsel %vm3490, %v3488, %v3489
  %v3492 = vsel %vm2551, %v3473, 2147483647
  %v3493 = vrot.slane %v3492, 4
  %vm3494 = vcmp.lt.s32.totalorder %v3492, %v3493
  %v3495 = vsel %vm3494, %v3492, %v3493
  %v3496 = vrot.slane %v3495, 2
  %vm3497 = vcmp.lt.s32.totalorder %v3495, %v3496
  %v3498 = vsel %vm3497, %v3495, %v3496
  %v3499 = vrot.slane %v3498, 1
  %vm3500 = vcmp.lt.s32.totalorder %v3498, %v3499
  %v3501 = vsel %vm3500, %v3498, %v3499
  %v3502 = vsel %vm2551, %v3474, 2147483647
  %v3503 = vrot.slane %v3502, 4
  %vm3504 = vcmp.lt.s32.totalorder %v3502, %v3503
  %v3505 = vsel %vm3504, %v3502, %v3503
  %v3506 = vrot.slane %v3505, 2
  %vm3507 = vcmp.lt.s32.totalorder %v3505, %v3506
  %v3508 = vsel %vm3507, %v3505, %v3506
  %v3509 = vrot.slane %v3508, 1
  %vm3510 = vcmp.lt.s32.totalorder %v3508, %v3509
  %v3511 = vsel %vm3510, %v3508, %v3509
  %v3512 = vsel %vm2551, %v3475, 2147483647
  %v3513 = vrot.slane %v3512, 4
  %vm3514 = vcmp.lt.s32.totalorder %v3512, %v3513
  %v3515 = vsel %vm3514, %v3512, %v3513
  %v3516 = vrot.slane %v3515, 2
  %vm3517 = vcmp.lt.s32.totalorder %v3515, %v3516
  %v3518 = vsel %vm3517, %v3515, %v3516
  %v3519 = vrot.slane %v3518, 1
  %vm3520 = vcmp.lt.s32.totalorder %v3518, %v3519
  %v3521 = vsel %vm3520, %v3518, %v3519
  %v3522 = vsel %vm2551, %v3476, 2147483647
  %v3523 = vrot.slane %v3522, 4
  %vm3524 = vcmp.lt.s32.totalorder %v3522, %v3523
  %v3525 = vsel %vm3524, %v3522, %v3523
  %v3526 = vrot.slane %v3525, 2
  %vm3527 = vcmp.lt.s32.totalorder %v3525, %v3526
  %v3528 = vsel %vm3527, %v3525, %v3526
  %v3529 = vrot.slane %v3528, 1
  %vm3530 = vcmp.lt.s32.totalorder %v3528, %v3529
  %v3531 = vsel %vm3530, %v3528, %v3529
  %v3532 = vsel %vm2551, %v3477, 2147483647
  %v3533 = vrot.slane %v3532, 4
  %vm3534 = vcmp.lt.s32.totalorder %v3532, %v3533
  %v3535 = vsel %vm3534, %v3532, %v3533
  %v3536 = vrot.slane %v3535, 2
  %vm3537 = vcmp.lt.s32.totalorder %v3535, %v3536
  %v3538 = vsel %vm3537, %v3535, %v3536
  %v3539 = vrot.slane %v3538, 1
  %vm3540 = vcmp.lt.s32.totalorder %v3538, %v3539
  %v3541 = vsel %vm3540, %v3538, %v3539
  %v3542 = vsel %vm2551, %v3478, 2147483647
  %v3543 = vrot.slane %v3542, 4
  %vm3544 = vcmp.lt.s32.totalorder %v3542, %v3543
  %v3545 = vsel %vm3544, %v3542, %v3543
  %v3546 = vrot.slane %v3545, 2
  %vm3547 = vcmp.lt.s32.totalorder %v3545, %v3546
  %v3548 = vsel %vm3547, %v3545, %v3546
  %v3549 = vrot.slane %v3548, 1
  %vm3550 = vcmp.lt.s32.totalorder %v3548, %v3549
  %v3551 = vsel %vm3550, %v3548, %v3549
  %v3552 = vsel %vm2551, %v3479, 2147483647
  %v3553 = vrot.slane %v3552, 4
  %vm3554 = vcmp.lt.s32.totalorder %v3552, %v3553
  %v3555 = vsel %vm3554, %v3552, %v3553
  %v3556 = vrot.slane %v3555, 2
  %vm3557 = vcmp.lt.s32.totalorder %v3555, %v3556
  %v3558 = vsel %vm3557, %v3555, %v3556
  %v3559 = vrot.slane %v3558, 1
  %vm3560 = vcmp.lt.s32.totalorder %v3558, %v3559
  %v3561 = vsel %vm3560, %v3558, %v3559
  %v3562 = vsel %vm2551, %v3480, 2147483647
  %v3563 = vrot.slane %v3562, 4
  %vm3564 = vcmp.lt.s32.totalorder %v3562, %v3563
  %v3565 = vsel %vm3564, %v3562, %v3563
  %v3566 = vrot.slane %v3565, 2
  %vm3567 = vcmp.lt.s32.totalorder %v3565, %v3566
  %v3568 = vsel %vm3567, %v3565, %v3566
  %v3569 = vrot.slane %v3568, 1
  %vm3570 = vcmp.lt.s32.totalorder %v3568, %v3569
  %v3571 = vsel %vm3570, %v3568, %v3569
  %v3572 = vsel %vm2551, %v3481, 2147483647
  %v3573 = vrot.slane %v3572, 4
  %vm3574 = vcmp.lt.s32.totalorder %v3572, %v3573
  %v3575 = vsel %vm3574, %v3572, %v3573
  %v3576 = vrot.slane %v3575, 2
  %vm3577 = vcmp.lt.s32.totalorder %v3575, %v3576
  %v3578 = vsel %vm3577, %v3575, %v3576
  %v3579 = vrot.slane %v3578, 1
  %vm3580 = vcmp.lt.s32.totalorder %v3578, %v3579
  %v3581 = vsel %vm3580, %v3578, %v3579
  %v3582 = vadd.f32 %v3398, %v2364
  %v3583 = vadd.f32 %v3405, %v2369
  %v3584 = vadd.f32 %v3412, %v2374
  %v3585 = vadd.f32 %v3419, %v2379
  %v3586 = vadd.f32 %v3426, %v2384
  %v3587 = vadd.f32 %v3433, %v2389
  %v3588 = vadd.f32 %v3440, %v2394
  %v3589 = vadd.f32 %v3447, %v2399
  %v3590 = vadd.f32 %v3454, %v2404
  %v3591 = vadd.f32 %v3461, %v2409
  %v3592 = vlaneseq
  %v3593 = vshrl.u32 %v3592, 7
  %v3594 = vsub.s32 4, %v3593
  %v3595 = vrot.slane %v3582, %v3594
  %3597 = vbcast.lane.b32.xlu0 %v3595, 256
  %v3598 = vpop.permute.xlu0 %3597
  %v3599 = vlaneseq
  %v3600 = vshrl.u32 %v3599, 7
  %v3601 = vsub.s32 4, %v3600
  %v3602 = vrot.slane %v3583, %v3601
  %3604 = vbcast.lane.b32.xlu0 %v3602, 256
  %v3605 = vpop.permute.xlu0 %3604
  %v3606 = vlaneseq
  %v3607 = vshrl.u32 %v3606, 7
  %v3608 = vsub.s32 4, %v3607
  %v3609 = vrot.slane %v3584, %v3608
  %3611 = vbcast.lane.b32.xlu0 %v3609, 256
  %v3612 = vpop.permute.xlu0 %3611
  %v3613 = vlaneseq
  %v3614 = vshrl.u32 %v3613, 7
  %v3615 = vsub.s32 4, %v3614
  %v3616 = vrot.slane %v3585, %v3615
  %3618 = vbcast.lane.b32.xlu0 %v3616, 256
  %v3619 = vpop.permute.xlu0 %3618
  %v3620 = vlaneseq
  %v3621 = vshrl.u32 %v3620, 7
  %v3622 = vsub.s32 4, %v3621
  %v3623 = vrot.slane %v3586, %v3622
  %3625 = vbcast.lane.b32.xlu0 %v3623, 256
  %v3626 = vpop.permute.xlu0 %3625
  %v3627 = vlaneseq
  %v3628 = vshrl.u32 %v3627, 7
  %v3629 = vsub.s32 4, %v3628
  %v3630 = vrot.slane %v3587, %v3629
  %3632 = vbcast.lane.b32.xlu0 %v3630, 256
  %v3633 = vpop.permute.xlu0 %3632
  %v3634 = vlaneseq
  %v3635 = vshrl.u32 %v3634, 7
  %v3636 = vsub.s32 4, %v3635
  %v3637 = vrot.slane %v3588, %v3636
  %3639 = vbcast.lane.b32.xlu0 %v3637, 256
  %v3640 = vpop.permute.xlu0 %3639
  %v3641 = vlaneseq
  %v3642 = vshrl.u32 %v3641, 7
  %v3643 = vsub.s32 4, %v3642
  %v3644 = vrot.slane %v3589, %v3643
  %3646 = vbcast.lane.b32.xlu0 %v3644, 256
  %v3647 = vpop.permute.xlu0 %3646
  %v3648 = vlaneseq
  %v3649 = vshrl.u32 %v3648, 7
  %v3650 = vsub.s32 4, %v3649
  %v3651 = vrot.slane %v3590, %v3650
  %3653 = vbcast.lane.b32.xlu0 %v3651, 256
  %v3654 = vpop.permute.xlu0 %3653
  %v3655 = vlaneseq
  %v3656 = vshrl.u32 %v3655, 7
  %v3657 = vsub.s32 4, %v3656
  %v3658 = vrot.slane %v3591, %v3657
  %3660 = vbcast.lane.b32.xlu0 %v3658, 256
  %v3661 = vpop.permute.xlu0 %3660
  %v3662 = vadd.f32 %v3598, %v2422
  %v3663 = vadd.f32 %v3605, %v2422
  %v3664 = vadd.f32 %v3612, %v2422
  %v3665 = vadd.f32 %v3619, %v2422
  %v3666 = vadd.f32 %v3626, %v2422
  %v3667 = vadd.f32 %v3633, %v2422
  %v3668 = vadd.f32 %v3640, %v2422
  %v3669 = vadd.f32 %v3647, %v2422
  %v3670 = vadd.f32 %v3654, %v2422
  %v3671 = vadd.f32 %v3661, %v2422
  %v3672 = vsel %vm2551, %v3662, -inf
  %v3673 = vrot.slane %v3672, 4
  %v3674 = vmax.f32 %v3672, %v3673
  %v3675 = vrot.slane %v3674, 2
  %v3676 = vmax.f32 %v3674, %v3675
  %v3677 = vrot.slane %v3676, 1
  %v3678 = vmax.f32 %v3676, %v3677
  %v3679 = vsel %vm2551, %v3663, -inf
  %v3680 = vrot.slane %v3679, 4
  %v3681 = vmax.f32 %v3679, %v3680
  %v3682 = vrot.slane %v3681, 2
  %v3683 = vmax.f32 %v3681, %v3682
  %v3684 = vrot.slane %v3683, 1
  %v3685 = vmax.f32 %v3683, %v3684
  %v3686 = vsel %vm2551, %v3664, -inf
  %v3687 = vrot.slane %v3686, 4
  %v3688 = vmax.f32 %v3686, %v3687
  %v3689 = vrot.slane %v3688, 2
  %v3690 = vmax.f32 %v3688, %v3689
  %v3691 = vrot.slane %v3690, 1
  %v3692 = vmax.f32 %v3690, %v3691
  %v3693 = vsel %vm2551, %v3665, -inf
  %v3694 = vrot.slane %v3693, 4
  %v3695 = vmax.f32 %v3693, %v3694
  %v3696 = vrot.slane %v3695, 2
  %v3697 = vmax.f32 %v3695, %v3696
  %v3698 = vrot.slane %v3697, 1
  %v3699 = vmax.f32 %v3697, %v3698
  %v3700 = vsel %vm2551, %v3666, -inf
  %v3701 = vrot.slane %v3700, 4
  %v3702 = vmax.f32 %v3700, %v3701
  %v3703 = vrot.slane %v3702, 2
  %v3704 = vmax.f32 %v3702, %v3703
  %v3705 = vrot.slane %v3704, 1
  %v3706 = vmax.f32 %v3704, %v3705
  %v3707 = vsel %vm2551, %v3667, -inf
  %v3708 = vrot.slane %v3707, 4
  %v3709 = vmax.f32 %v3707, %v3708
  %v3710 = vrot.slane %v3709, 2
  %v3711 = vmax.f32 %v3709, %v3710
  %v3712 = vrot.slane %v3711, 1
  %v3713 = vmax.f32 %v3711, %v3712
  %v3714 = vsel %vm2551, %v3668, -inf
  %v3715 = vrot.slane %v3714, 4
  %v3716 = vmax.f32 %v3714, %v3715
  %v3717 = vrot.slane %v3716, 2
  %v3718 = vmax.f32 %v3716, %v3717
  %v3719 = vrot.slane %v3718, 1
  %v3720 = vmax.f32 %v3718, %v3719
  %v3721 = vsel %vm2551, %v3669, -inf
  %v3722 = vrot.slane %v3721, 4
  %v3723 = vmax.f32 %v3721, %v3722
  %v3724 = vrot.slane %v3723, 2
  %v3725 = vmax.f32 %v3723, %v3724
  %v3726 = vrot.slane %v3725, 1
  %v3727 = vmax.f32 %v3725, %v3726
  %v3728 = vsel %vm2551, %v3670, -inf
  %v3729 = vrot.slane %v3728, 4
  %v3730 = vmax.f32 %v3728, %v3729
  %v3731 = vrot.slane %v3730, 2
  %v3732 = vmax.f32 %v3730, %v3731
  %v3733 = vrot.slane %v3732, 1
  %v3734 = vmax.f32 %v3732, %v3733
  %v3735 = vsel %vm2551, %v3671, -inf
  %v3736 = vrot.slane %v3735, 4
  %v3737 = vmax.f32 %v3735, %v3736
  %v3738 = vrot.slane %v3737, 2
  %v3739 = vmax.f32 %v3737, %v3738
  %v3740 = vrot.slane %v3739, 1
  %v3741 = vmax.f32 %v3739, %v3740
  %vm3742 = vcmp.eq.f32.partialorder %v3662, %v3678
  %vm3743 = vcmp.eq.f32.partialorder %v3663, %v3685
  %vm3744 = vcmp.eq.f32.partialorder %v3664, %v3692
  %vm3745 = vcmp.eq.f32.partialorder %v3665, %v3699
  %vm3746 = vcmp.eq.f32.partialorder %v3666, %v3706
  %vm3747 = vcmp.eq.f32.partialorder %v3667, %v3713
  %vm3748 = vcmp.eq.f32.partialorder %v3668, %v3720
  %vm3749 = vcmp.eq.f32.partialorder %v3669, %v3727
  %vm3750 = vcmp.eq.f32.partialorder %v3670, %v3734
  %vm3751 = vcmp.eq.f32.partialorder %v3671, %v3741
  %v3752 = vsel %vm3742, %v2424, 5
  %v3753 = vsel %vm3743, %v2424, 5
  %v3754 = vsel %vm3744, %v2424, 5
  %v3755 = vsel %vm3745, %v2424, 5
  %v3756 = vsel %vm3746, %v2424, 5
  %v3757 = vsel %vm3747, %v2424, 5
  %v3758 = vsel %vm3748, %v2424, 5
  %v3759 = vsel %vm3749, %v2424, 5
  %v3760 = vsel %vm3750, %v2424, 5
  %v3761 = vsel %vm3751, %v2424, 5
  %v3762 = vsel %vm2551, %v3752, 2147483647
  %v3763 = vrot.slane %v3762, 4
  %vm3764 = vcmp.lt.s32.totalorder %v3762, %v3763
  %v3765 = vsel %vm3764, %v3762, %v3763
  %v3766 = vrot.slane %v3765, 2
  %vm3767 = vcmp.lt.s32.totalorder %v3765, %v3766
  %v3768 = vsel %vm3767, %v3765, %v3766
  %v3769 = vrot.slane %v3768, 1
  %vm3770 = vcmp.lt.s32.totalorder %v3768, %v3769
  %v3771 = vsel %vm3770, %v3768, %v3769
  %v3772 = vsel %vm2551, %v3753, 2147483647
  %v3773 = vrot.slane %v3772, 4
  %vm3774 = vcmp.lt.s32.totalorder %v3772, %v3773
  %v3775 = vsel %vm3774, %v3772, %v3773
  %v3776 = vrot.slane %v3775, 2
  %vm3777 = vcmp.lt.s32.totalorder %v3775, %v3776
  %v3778 = vsel %vm3777, %v3775, %v3776
  %v3779 = vrot.slane %v3778, 1
  %vm3780 = vcmp.lt.s32.totalorder %v3778, %v3779
  %v3781 = vsel %vm3780, %v3778, %v3779
  %v3782 = vsel %vm2551, %v3754, 2147483647
  %v3783 = vrot.slane %v3782, 4
  %vm3784 = vcmp.lt.s32.totalorder %v3782, %v3783
  %v3785 = vsel %vm3784, %v3782, %v3783
  %v3786 = vrot.slane %v3785, 2
  %vm3787 = vcmp.lt.s32.totalorder %v3785, %v3786
  %v3788 = vsel %vm3787, %v3785, %v3786
  %v3789 = vrot.slane %v3788, 1
  %vm3790 = vcmp.lt.s32.totalorder %v3788, %v3789
  %v3791 = vsel %vm3790, %v3788, %v3789
  %v3792 = vsel %vm2551, %v3755, 2147483647
  %v3793 = vrot.slane %v3792, 4
  %vm3794 = vcmp.lt.s32.totalorder %v3792, %v3793
  %v3795 = vsel %vm3794, %v3792, %v3793
  %v3796 = vrot.slane %v3795, 2
  %vm3797 = vcmp.lt.s32.totalorder %v3795, %v3796
  %v3798 = vsel %vm3797, %v3795, %v3796
  %v3799 = vrot.slane %v3798, 1
  %vm3800 = vcmp.lt.s32.totalorder %v3798, %v3799
  %v3801 = vsel %vm3800, %v3798, %v3799
  %v3802 = vsel %vm2551, %v3756, 2147483647
  %v3803 = vrot.slane %v3802, 4
  %vm3804 = vcmp.lt.s32.totalorder %v3802, %v3803
  %v3805 = vsel %vm3804, %v3802, %v3803
  %v3806 = vrot.slane %v3805, 2
  %vm3807 = vcmp.lt.s32.totalorder %v3805, %v3806
  %v3808 = vsel %vm3807, %v3805, %v3806
  %v3809 = vrot.slane %v3808, 1
  %vm3810 = vcmp.lt.s32.totalorder %v3808, %v3809
  %v3811 = vsel %vm3810, %v3808, %v3809
  %v3812 = vsel %vm2551, %v3757, 2147483647
  %v3813 = vrot.slane %v3812, 4
  %vm3814 = vcmp.lt.s32.totalorder %v3812, %v3813
  %v3815 = vsel %vm3814, %v3812, %v3813
  %v3816 = vrot.slane %v3815, 2
  %vm3817 = vcmp.lt.s32.totalorder %v3815, %v3816
  %v3818 = vsel %vm3817, %v3815, %v3816
  %v3819 = vrot.slane %v3818, 1
  %vm3820 = vcmp.lt.s32.totalorder %v3818, %v3819
  %v3821 = vsel %vm3820, %v3818, %v3819
  %v3822 = vsel %vm2551, %v3758, 2147483647
  %v3823 = vrot.slane %v3822, 4
  %vm3824 = vcmp.lt.s32.totalorder %v3822, %v3823
  %v3825 = vsel %vm3824, %v3822, %v3823
  %v3826 = vrot.slane %v3825, 2
  %vm3827 = vcmp.lt.s32.totalorder %v3825, %v3826
  %v3828 = vsel %vm3827, %v3825, %v3826
  %v3829 = vrot.slane %v3828, 1
  %vm3830 = vcmp.lt.s32.totalorder %v3828, %v3829
  %v3831 = vsel %vm3830, %v3828, %v3829
  %v3832 = vsel %vm2551, %v3759, 2147483647
  %v3833 = vrot.slane %v3832, 4
  %vm3834 = vcmp.lt.s32.totalorder %v3832, %v3833
  %v3835 = vsel %vm3834, %v3832, %v3833
  %v3836 = vrot.slane %v3835, 2
  %vm3837 = vcmp.lt.s32.totalorder %v3835, %v3836
  %v3838 = vsel %vm3837, %v3835, %v3836
  %v3839 = vrot.slane %v3838, 1
  %vm3840 = vcmp.lt.s32.totalorder %v3838, %v3839
  %v3841 = vsel %vm3840, %v3838, %v3839
  %v3842 = vsel %vm2551, %v3760, 2147483647
  %v3843 = vrot.slane %v3842, 4
  %vm3844 = vcmp.lt.s32.totalorder %v3842, %v3843
  %v3845 = vsel %vm3844, %v3842, %v3843
  %v3846 = vrot.slane %v3845, 2
  %vm3847 = vcmp.lt.s32.totalorder %v3845, %v3846
  %v3848 = vsel %vm3847, %v3845, %v3846
  %v3849 = vrot.slane %v3848, 1
  %vm3850 = vcmp.lt.s32.totalorder %v3848, %v3849
  %v3851 = vsel %vm3850, %v3848, %v3849
  %v3852 = vsel %vm2551, %v3761, 2147483647
  %v3853 = vrot.slane %v3852, 4
  %vm3854 = vcmp.lt.s32.totalorder %v3852, %v3853
  %v3855 = vsel %vm3854, %v3852, %v3853
  %v3856 = vrot.slane %v3855, 2
  %vm3857 = vcmp.lt.s32.totalorder %v3855, %v3856
  %v3858 = vsel %vm3857, %v3855, %v3856
  %v3859 = vrot.slane %v3858, 1
  %vm3860 = vcmp.lt.s32.totalorder %v3858, %v3859
  %v3861 = vsel %vm3860, %v3858, %v3859
  %v3862 = vadd.f32 %v3678, %v2364
  %v3863 = vadd.f32 %v3685, %v2369
  %v3864 = vadd.f32 %v3692, %v2374
  %v3865 = vadd.f32 %v3699, %v2379
  %v3866 = vadd.f32 %v3706, %v2384
  %v3867 = vadd.f32 %v3713, %v2389
  %v3868 = vadd.f32 %v3720, %v2394
  %v3869 = vadd.f32 %v3727, %v2399
  %v3870 = vadd.f32 %v3734, %v2404
  %v3871 = vadd.f32 %v3741, %v2409
  %v3872 = vlaneseq
  %v3873 = vshrl.u32 %v3872, 7
  %v3874 = vsub.s32 5, %v3873
  %v3875 = vrot.slane %v3862, %v3874
  %3877 = vbcast.lane.b32.xlu0 %v3875, 256
  %v3878 = vpop.permute.xlu0 %3877
  %v3879 = vlaneseq
  %v3880 = vshrl.u32 %v3879, 7
  %v3881 = vsub.s32 5, %v3880
  %v3882 = vrot.slane %v3863, %v3881
  %3884 = vbcast.lane.b32.xlu0 %v3882, 256
  %v3885 = vpop.permute.xlu0 %3884
  %v3886 = vlaneseq
  %v3887 = vshrl.u32 %v3886, 7
  %v3888 = vsub.s32 5, %v3887
  %v3889 = vrot.slane %v3864, %v3888
  %3891 = vbcast.lane.b32.xlu0 %v3889, 256
  %v3892 = vpop.permute.xlu0 %3891
  %v3893 = vlaneseq
  %v3894 = vshrl.u32 %v3893, 7
  %v3895 = vsub.s32 5, %v3894
  %v3896 = vrot.slane %v3865, %v3895
  %3898 = vbcast.lane.b32.xlu0 %v3896, 256
  %v3899 = vpop.permute.xlu0 %3898
  %v3900 = vlaneseq
  %v3901 = vshrl.u32 %v3900, 7
  %v3902 = vsub.s32 5, %v3901
  %v3903 = vrot.slane %v3866, %v3902
  %3905 = vbcast.lane.b32.xlu0 %v3903, 256
  %v3906 = vpop.permute.xlu0 %3905
  %v3907 = vlaneseq
  %v3908 = vshrl.u32 %v3907, 7
  %v3909 = vsub.s32 5, %v3908
  %v3910 = vrot.slane %v3867, %v3909
  %3912 = vbcast.lane.b32.xlu0 %v3910, 256
  %v3913 = vpop.permute.xlu0 %3912
  %v3914 = vlaneseq
  %v3915 = vshrl.u32 %v3914, 7
  %v3916 = vsub.s32 5, %v3915
  %v3917 = vrot.slane %v3868, %v3916
  %3919 = vbcast.lane.b32.xlu0 %v3917, 256
  %v3920 = vpop.permute.xlu0 %3919
  %v3921 = vlaneseq
  %v3922 = vshrl.u32 %v3921, 7
  %v3923 = vsub.s32 5, %v3922
  %v3924 = vrot.slane %v3869, %v3923
  %3926 = vbcast.lane.b32.xlu0 %v3924, 256
  %v3927 = vpop.permute.xlu0 %3926
  %v3928 = vlaneseq
  %v3929 = vshrl.u32 %v3928, 7
  %v3930 = vsub.s32 5, %v3929
  %v3931 = vrot.slane %v3870, %v3930
  %3933 = vbcast.lane.b32.xlu0 %v3931, 256
  %v3934 = vpop.permute.xlu0 %3933
  %v3935 = vlaneseq
  %v3936 = vshrl.u32 %v3935, 7
  %v3937 = vsub.s32 5, %v3936
  %v3938 = vrot.slane %v3871, %v3937
  %3940 = vbcast.lane.b32.xlu0 %v3938, 256
  %v3941 = vpop.permute.xlu0 %3940
  %v3942 = vadd.f32 %v3878, %v2422
  %v3943 = vadd.f32 %v3885, %v2422
  %v3944 = vadd.f32 %v3892, %v2422
  %v3945 = vadd.f32 %v3899, %v2422
  %v3946 = vadd.f32 %v3906, %v2422
  %v3947 = vadd.f32 %v3913, %v2422
  %v3948 = vadd.f32 %v3920, %v2422
  %v3949 = vadd.f32 %v3927, %v2422
  %v3950 = vadd.f32 %v3934, %v2422
  %v3951 = vadd.f32 %v3941, %v2422
  %v3952 = vsel %vm2551, %v3942, -inf
  %v3953 = vrot.slane %v3952, 4
  %v3954 = vmax.f32 %v3952, %v3953
  %v3955 = vrot.slane %v3954, 2
  %v3956 = vmax.f32 %v3954, %v3955
  %v3957 = vrot.slane %v3956, 1
  %v3958 = vmax.f32 %v3956, %v3957
  %v3959 = vsel %vm2551, %v3943, -inf
  %v3960 = vrot.slane %v3959, 4
  %v3961 = vmax.f32 %v3959, %v3960
  %v3962 = vrot.slane %v3961, 2
  %v3963 = vmax.f32 %v3961, %v3962
  %v3964 = vrot.slane %v3963, 1
  %v3965 = vmax.f32 %v3963, %v3964
  %v3966 = vsel %vm2551, %v3944, -inf
  %v3967 = vrot.slane %v3966, 4
  %v3968 = vmax.f32 %v3966, %v3967
  %v3969 = vrot.slane %v3968, 2
  %v3970 = vmax.f32 %v3968, %v3969
  %v3971 = vrot.slane %v3970, 1
  %v3972 = vmax.f32 %v3970, %v3971
  %v3973 = vsel %vm2551, %v3945, -inf
  %v3974 = vrot.slane %v3973, 4
  %v3975 = vmax.f32 %v3973, %v3974
  %v3976 = vrot.slane %v3975, 2
  %v3977 = vmax.f32 %v3975, %v3976
  %v3978 = vrot.slane %v3977, 1
  %v3979 = vmax.f32 %v3977, %v3978
  %v3980 = vsel %vm2551, %v3946, -inf
  %v3981 = vrot.slane %v3980, 4
  %v3982 = vmax.f32 %v3980, %v3981
  %v3983 = vrot.slane %v3982, 2
  %v3984 = vmax.f32 %v3982, %v3983
  %v3985 = vrot.slane %v3984, 1
  %v3986 = vmax.f32 %v3984, %v3985
  %v3987 = vsel %vm2551, %v3947, -inf
  %v3988 = vrot.slane %v3987, 4
  %v3989 = vmax.f32 %v3987, %v3988
  %v3990 = vrot.slane %v3989, 2
  %v3991 = vmax.f32 %v3989, %v3990
  %v3992 = vrot.slane %v3991, 1
  %v3993 = vmax.f32 %v3991, %v3992
  %v3994 = vsel %vm2551, %v3948, -inf
  %v3995 = vrot.slane %v3994, 4
  %v3996 = vmax.f32 %v3994, %v3995
  %v3997 = vrot.slane %v3996, 2
  %v3998 = vmax.f32 %v3996, %v3997
  %v3999 = vrot.slane %v3998, 1
  %v4000 = vmax.f32 %v3998, %v3999
  %v4001 = vsel %vm2551, %v3949, -inf
  %v4002 = vrot.slane %v4001, 4
  %v4003 = vmax.f32 %v4001, %v4002
  %v4004 = vrot.slane %v4003, 2
  %v4005 = vmax.f32 %v4003, %v4004
  %v4006 = vrot.slane %v4005, 1
  %v4007 = vmax.f32 %v4005, %v4006
  %v4008 = vsel %vm2551, %v3950, -inf
  %v4009 = vrot.slane %v4008, 4
  %v4010 = vmax.f32 %v4008, %v4009
  %v4011 = vrot.slane %v4010, 2
  %v4012 = vmax.f32 %v4010, %v4011
  %v4013 = vrot.slane %v4012, 1
  %v4014 = vmax.f32 %v4012, %v4013
  %v4015 = vsel %vm2551, %v3951, -inf
  %v4016 = vrot.slane %v4015, 4
  %v4017 = vmax.f32 %v4015, %v4016
  %v4018 = vrot.slane %v4017, 2
  %v4019 = vmax.f32 %v4017, %v4018
  %v4020 = vrot.slane %v4019, 1
  %v4021 = vmax.f32 %v4019, %v4020
  %vm4022 = vcmp.eq.f32.partialorder %v3942, %v3958
  %vm4023 = vcmp.eq.f32.partialorder %v3943, %v3965
  %vm4024 = vcmp.eq.f32.partialorder %v3944, %v3972
  %vm4025 = vcmp.eq.f32.partialorder %v3945, %v3979
  %vm4026 = vcmp.eq.f32.partialorder %v3946, %v3986
  %vm4027 = vcmp.eq.f32.partialorder %v3947, %v3993
  %vm4028 = vcmp.eq.f32.partialorder %v3948, %v4000
  %vm4029 = vcmp.eq.f32.partialorder %v3949, %v4007
  %vm4030 = vcmp.eq.f32.partialorder %v3950, %v4014
  %vm4031 = vcmp.eq.f32.partialorder %v3951, %v4021
  %v4032 = vsel %vm4022, %v2424, 5
  %v4033 = vsel %vm4023, %v2424, 5
  %v4034 = vsel %vm4024, %v2424, 5
  %v4035 = vsel %vm4025, %v2424, 5
  %v4036 = vsel %vm4026, %v2424, 5
  %v4037 = vsel %vm4027, %v2424, 5
  %v4038 = vsel %vm4028, %v2424, 5
  %v4039 = vsel %vm4029, %v2424, 5
  %v4040 = vsel %vm4030, %v2424, 5
  %v4041 = vsel %vm4031, %v2424, 5
  %v4042 = vsel %vm2551, %v4032, 2147483647
  %v4043 = vrot.slane %v4042, 4
  %vm4044 = vcmp.lt.s32.totalorder %v4042, %v4043
  %v4045 = vsel %vm4044, %v4042, %v4043
  %v4046 = vrot.slane %v4045, 2
  %vm4047 = vcmp.lt.s32.totalorder %v4045, %v4046
  %v4048 = vsel %vm4047, %v4045, %v4046
  %v4049 = vrot.slane %v4048, 1
  %vm4050 = vcmp.lt.s32.totalorder %v4048, %v4049
  %v4051 = vsel %vm4050, %v4048, %v4049
  %v4052 = vsel %vm2551, %v4033, 2147483647
  %v4053 = vrot.slane %v4052, 4
  %vm4054 = vcmp.lt.s32.totalorder %v4052, %v4053
  %v4055 = vsel %vm4054, %v4052, %v4053
  %v4056 = vrot.slane %v4055, 2
  %vm4057 = vcmp.lt.s32.totalorder %v4055, %v4056
  %v4058 = vsel %vm4057, %v4055, %v4056
  %v4059 = vrot.slane %v4058, 1
  %vm4060 = vcmp.lt.s32.totalorder %v4058, %v4059
  %v4061 = vsel %vm4060, %v4058, %v4059
  %v4062 = vsel %vm2551, %v4034, 2147483647
  %v4063 = vrot.slane %v4062, 4
  %vm4064 = vcmp.lt.s32.totalorder %v4062, %v4063
  %v4065 = vsel %vm4064, %v4062, %v4063
  %v4066 = vrot.slane %v4065, 2
  %vm4067 = vcmp.lt.s32.totalorder %v4065, %v4066
  %v4068 = vsel %vm4067, %v4065, %v4066
  %v4069 = vrot.slane %v4068, 1
  %vm4070 = vcmp.lt.s32.totalorder %v4068, %v4069
  %v4071 = vsel %vm4070, %v4068, %v4069
  %v4072 = vsel %vm2551, %v4035, 2147483647
  %v4073 = vrot.slane %v4072, 4
  %vm4074 = vcmp.lt.s32.totalorder %v4072, %v4073
  %v4075 = vsel %vm4074, %v4072, %v4073
  %v4076 = vrot.slane %v4075, 2
  %vm4077 = vcmp.lt.s32.totalorder %v4075, %v4076
  %v4078 = vsel %vm4077, %v4075, %v4076
  %v4079 = vrot.slane %v4078, 1
  %vm4080 = vcmp.lt.s32.totalorder %v4078, %v4079
  %v4081 = vsel %vm4080, %v4078, %v4079
  %v4082 = vsel %vm2551, %v4036, 2147483647
  %v4083 = vrot.slane %v4082, 4
  %vm4084 = vcmp.lt.s32.totalorder %v4082, %v4083
  %v4085 = vsel %vm4084, %v4082, %v4083
  %v4086 = vrot.slane %v4085, 2
  %vm4087 = vcmp.lt.s32.totalorder %v4085, %v4086
  %v4088 = vsel %vm4087, %v4085, %v4086
  %v4089 = vrot.slane %v4088, 1
  %vm4090 = vcmp.lt.s32.totalorder %v4088, %v4089
  %v4091 = vsel %vm4090, %v4088, %v4089
  %v4092 = vsel %vm2551, %v4037, 2147483647
  %v4093 = vrot.slane %v4092, 4
  %vm4094 = vcmp.lt.s32.totalorder %v4092, %v4093
  %v4095 = vsel %vm4094, %v4092, %v4093
  %v4096 = vrot.slane %v4095, 2
  %vm4097 = vcmp.lt.s32.totalorder %v4095, %v4096
  %v4098 = vsel %vm4097, %v4095, %v4096
  %v4099 = vrot.slane %v4098, 1
  %vm4100 = vcmp.lt.s32.totalorder %v4098, %v4099
  %v4101 = vsel %vm4100, %v4098, %v4099
  %v4102 = vsel %vm2551, %v4038, 2147483647
  %v4103 = vrot.slane %v4102, 4
  %vm4104 = vcmp.lt.s32.totalorder %v4102, %v4103
  %v4105 = vsel %vm4104, %v4102, %v4103
  %v4106 = vrot.slane %v4105, 2
  %vm4107 = vcmp.lt.s32.totalorder %v4105, %v4106
  %v4108 = vsel %vm4107, %v4105, %v4106
  %v4109 = vrot.slane %v4108, 1
  %vm4110 = vcmp.lt.s32.totalorder %v4108, %v4109
  %v4111 = vsel %vm4110, %v4108, %v4109
  %v4112 = vsel %vm2551, %v4039, 2147483647
  %v4113 = vrot.slane %v4112, 4
  %vm4114 = vcmp.lt.s32.totalorder %v4112, %v4113
  %v4115 = vsel %vm4114, %v4112, %v4113
  %v4116 = vrot.slane %v4115, 2
  %vm4117 = vcmp.lt.s32.totalorder %v4115, %v4116
  %v4118 = vsel %vm4117, %v4115, %v4116
  %v4119 = vrot.slane %v4118, 1
  %vm4120 = vcmp.lt.s32.totalorder %v4118, %v4119
  %v4121 = vsel %vm4120, %v4118, %v4119
  %v4122 = vsel %vm2551, %v4040, 2147483647
  %v4123 = vrot.slane %v4122, 4
  %vm4124 = vcmp.lt.s32.totalorder %v4122, %v4123
  %v4125 = vsel %vm4124, %v4122, %v4123
  %v4126 = vrot.slane %v4125, 2
  %vm4127 = vcmp.lt.s32.totalorder %v4125, %v4126
  %v4128 = vsel %vm4127, %v4125, %v4126
  %v4129 = vrot.slane %v4128, 1
  %vm4130 = vcmp.lt.s32.totalorder %v4128, %v4129
  %v4131 = vsel %vm4130, %v4128, %v4129
  %v4132 = vsel %vm2551, %v4041, 2147483647
  %v4133 = vrot.slane %v4132, 4
  %vm4134 = vcmp.lt.s32.totalorder %v4132, %v4133
  %v4135 = vsel %vm4134, %v4132, %v4133
  %v4136 = vrot.slane %v4135, 2
  %vm4137 = vcmp.lt.s32.totalorder %v4135, %v4136
  %v4138 = vsel %vm4137, %v4135, %v4136
  %v4139 = vrot.slane %v4138, 1
  %vm4140 = vcmp.lt.s32.totalorder %v4138, %v4139
  %v4141 = vsel %vm4140, %v4138, %v4139
  %v4142 = vadd.f32 %v3958, %v2364
  %v4143 = vadd.f32 %v3965, %v2369
  %v4144 = vadd.f32 %v3972, %v2374
  %v4145 = vadd.f32 %v3979, %v2379
  %v4146 = vadd.f32 %v3986, %v2384
  %v4147 = vadd.f32 %v3993, %v2389
  %v4148 = vadd.f32 %v4000, %v2394
  %v4149 = vadd.f32 %v4007, %v2399
  %v4150 = vadd.f32 %v4014, %v2404
  %v4151 = vadd.f32 %v4021, %v2409
  %v4152 = vlaneseq
  %v4153 = vshrl.u32 %v4152, 7
  %v4154 = vsub.s32 6, %v4153
  %v4155 = vrot.slane %v4142, %v4154
  %4157 = vbcast.lane.b32.xlu0 %v4155, 256
  %v4158 = vpop.permute.xlu0 %4157
  %v4159 = vlaneseq
  %v4160 = vshrl.u32 %v4159, 7
  %v4161 = vsub.s32 6, %v4160
  %v4162 = vrot.slane %v4143, %v4161
  %4164 = vbcast.lane.b32.xlu0 %v4162, 256
  %v4165 = vpop.permute.xlu0 %4164
  %v4166 = vlaneseq
  %v4167 = vshrl.u32 %v4166, 7
  %v4168 = vsub.s32 6, %v4167
  %v4169 = vrot.slane %v4144, %v4168
  %4171 = vbcast.lane.b32.xlu0 %v4169, 256
  %v4172 = vpop.permute.xlu0 %4171
  %v4173 = vlaneseq
  %v4174 = vshrl.u32 %v4173, 7
  %v4175 = vsub.s32 6, %v4174
  %v4176 = vrot.slane %v4145, %v4175
  %4178 = vbcast.lane.b32.xlu0 %v4176, 256
  %v4179 = vpop.permute.xlu0 %4178
  %v4180 = vlaneseq
  %v4181 = vshrl.u32 %v4180, 7
  %v4182 = vsub.s32 6, %v4181
  %v4183 = vrot.slane %v4146, %v4182
  %4185 = vbcast.lane.b32.xlu0 %v4183, 256
  %v4186 = vpop.permute.xlu0 %4185
  %v4187 = vlaneseq
  %v4188 = vshrl.u32 %v4187, 7
  %v4189 = vsub.s32 6, %v4188
  %v4190 = vrot.slane %v4147, %v4189
  %4192 = vbcast.lane.b32.xlu0 %v4190, 256
  %v4193 = vpop.permute.xlu0 %4192
  %v4194 = vlaneseq
  %v4195 = vshrl.u32 %v4194, 7
  %v4196 = vsub.s32 6, %v4195
  %v4197 = vrot.slane %v4148, %v4196
  %4199 = vbcast.lane.b32.xlu0 %v4197, 256
  %v4200 = vpop.permute.xlu0 %4199
  %v4201 = vlaneseq
  %v4202 = vshrl.u32 %v4201, 7
  %v4203 = vsub.s32 6, %v4202
  %v4204 = vrot.slane %v4149, %v4203
  %4206 = vbcast.lane.b32.xlu0 %v4204, 256
  %v4207 = vpop.permute.xlu0 %4206
  %v4208 = vlaneseq
  %v4209 = vshrl.u32 %v4208, 7
  %v4210 = vsub.s32 6, %v4209
  %v4211 = vrot.slane %v4150, %v4210
  %4213 = vbcast.lane.b32.xlu0 %v4211, 256
  %v4214 = vpop.permute.xlu0 %4213
  %v4215 = vlaneseq
  %v4216 = vshrl.u32 %v4215, 7
  %v4217 = vsub.s32 6, %v4216
  %v4218 = vrot.slane %v4151, %v4217
  %4220 = vbcast.lane.b32.xlu0 %v4218, 256
  %v4221 = vpop.permute.xlu0 %4220
  %v4222 = vadd.f32 %v4158, %v2422
  %v4223 = vadd.f32 %v4165, %v2422
  %v4224 = vadd.f32 %v4172, %v2422
  %v4225 = vadd.f32 %v4179, %v2422
  %v4226 = vadd.f32 %v4186, %v2422
  %v4227 = vadd.f32 %v4193, %v2422
  %v4228 = vadd.f32 %v4200, %v2422
  %v4229 = vadd.f32 %v4207, %v2422
  %v4230 = vadd.f32 %v4214, %v2422
  %v4231 = vadd.f32 %v4221, %v2422
  %v4232 = vsel %vm2551, %v4222, -inf
  %v4233 = vrot.slane %v4232, 4
  %v4234 = vmax.f32 %v4232, %v4233
  %v4235 = vrot.slane %v4234, 2
  %v4236 = vmax.f32 %v4234, %v4235
  %v4237 = vrot.slane %v4236, 1
  %v4238 = vmax.f32 %v4236, %v4237
  %v4239 = vsel %vm2551, %v4223, -inf
  %v4240 = vrot.slane %v4239, 4
  %v4241 = vmax.f32 %v4239, %v4240
  %v4242 = vrot.slane %v4241, 2
  %v4243 = vmax.f32 %v4241, %v4242
  %v4244 = vrot.slane %v4243, 1
  %v4245 = vmax.f32 %v4243, %v4244
  %v4246 = vsel %vm2551, %v4224, -inf
  %v4247 = vrot.slane %v4246, 4
  %v4248 = vmax.f32 %v4246, %v4247
  %v4249 = vrot.slane %v4248, 2
  %v4250 = vmax.f32 %v4248, %v4249
  %v4251 = vrot.slane %v4250, 1
  %v4252 = vmax.f32 %v4250, %v4251
  %v4253 = vsel %vm2551, %v4225, -inf
  %v4254 = vrot.slane %v4253, 4
  %v4255 = vmax.f32 %v4253, %v4254
  %v4256 = vrot.slane %v4255, 2
  %v4257 = vmax.f32 %v4255, %v4256
  %v4258 = vrot.slane %v4257, 1
  %v4259 = vmax.f32 %v4257, %v4258
  %v4260 = vsel %vm2551, %v4226, -inf
  %v4261 = vrot.slane %v4260, 4
  %v4262 = vmax.f32 %v4260, %v4261
  %v4263 = vrot.slane %v4262, 2
  %v4264 = vmax.f32 %v4262, %v4263
  %v4265 = vrot.slane %v4264, 1
  %v4266 = vmax.f32 %v4264, %v4265
  %v4267 = vsel %vm2551, %v4227, -inf
  %v4268 = vrot.slane %v4267, 4
  %v4269 = vmax.f32 %v4267, %v4268
  %v4270 = vrot.slane %v4269, 2
  %v4271 = vmax.f32 %v4269, %v4270
  %v4272 = vrot.slane %v4271, 1
  %v4273 = vmax.f32 %v4271, %v4272
  %v4274 = vsel %vm2551, %v4228, -inf
  %v4275 = vrot.slane %v4274, 4
  %v4276 = vmax.f32 %v4274, %v4275
  %v4277 = vrot.slane %v4276, 2
  %v4278 = vmax.f32 %v4276, %v4277
  %v4279 = vrot.slane %v4278, 1
  %v4280 = vmax.f32 %v4278, %v4279
  %v4281 = vsel %vm2551, %v4229, -inf
  %v4282 = vrot.slane %v4281, 4
  %v4283 = vmax.f32 %v4281, %v4282
  %v4284 = vrot.slane %v4283, 2
  %v4285 = vmax.f32 %v4283, %v4284
  %v4286 = vrot.slane %v4285, 1
  %v4287 = vmax.f32 %v4285, %v4286
  %v4288 = vsel %vm2551, %v4230, -inf
  %v4289 = vrot.slane %v4288, 4
  %v4290 = vmax.f32 %v4288, %v4289
  %v4291 = vrot.slane %v4290, 2
  %v4292 = vmax.f32 %v4290, %v4291
  %v4293 = vrot.slane %v4292, 1
  %v4294 = vmax.f32 %v4292, %v4293
  %v4295 = vsel %vm2551, %v4231, -inf
  %v4296 = vrot.slane %v4295, 4
  %v4297 = vmax.f32 %v4295, %v4296
  %v4298 = vrot.slane %v4297, 2
  %v4299 = vmax.f32 %v4297, %v4298
  %v4300 = vrot.slane %v4299, 1
  %v4301 = vmax.f32 %v4299, %v4300
  %vm4302 = vcmp.eq.f32.partialorder %v4222, %v4238
  %vm4303 = vcmp.eq.f32.partialorder %v4223, %v4245
  %vm4304 = vcmp.eq.f32.partialorder %v4224, %v4252
  %vm4305 = vcmp.eq.f32.partialorder %v4225, %v4259
  %vm4306 = vcmp.eq.f32.partialorder %v4226, %v4266
  %vm4307 = vcmp.eq.f32.partialorder %v4227, %v4273
  %vm4308 = vcmp.eq.f32.partialorder %v4228, %v4280
  %vm4309 = vcmp.eq.f32.partialorder %v4229, %v4287
  %vm4310 = vcmp.eq.f32.partialorder %v4230, %v4294
  %vm4311 = vcmp.eq.f32.partialorder %v4231, %v4301
  %v4312 = vsel %vm4302, %v2424, 5
  %v4313 = vsel %vm4303, %v2424, 5
  %v4314 = vsel %vm4304, %v2424, 5
  %v4315 = vsel %vm4305, %v2424, 5
  %v4316 = vsel %vm4306, %v2424, 5
  %v4317 = vsel %vm4307, %v2424, 5
  %v4318 = vsel %vm4308, %v2424, 5
  %v4319 = vsel %vm4309, %v2424, 5
  %v4320 = vsel %vm4310, %v2424, 5
  %v4321 = vsel %vm4311, %v2424, 5
  %v4322 = vsel %vm2551, %v4312, 2147483647
  %v4323 = vrot.slane %v4322, 4
  %vm4324 = vcmp.lt.s32.totalorder %v4322, %v4323
  %v4325 = vsel %vm4324, %v4322, %v4323
  %v4326 = vrot.slane %v4325, 2
  %vm4327 = vcmp.lt.s32.totalorder %v4325, %v4326
  %v4328 = vsel %vm4327, %v4325, %v4326
  %v4329 = vrot.slane %v4328, 1
  %vm4330 = vcmp.lt.s32.totalorder %v4328, %v4329
  %v4331 = vsel %vm4330, %v4328, %v4329
  %v4332 = vsel %vm2551, %v4313, 2147483647
  %v4333 = vrot.slane %v4332, 4
  %vm4334 = vcmp.lt.s32.totalorder %v4332, %v4333
  %v4335 = vsel %vm4334, %v4332, %v4333
  %v4336 = vrot.slane %v4335, 2
  %vm4337 = vcmp.lt.s32.totalorder %v4335, %v4336
  %v4338 = vsel %vm4337, %v4335, %v4336
  %v4339 = vrot.slane %v4338, 1
  %vm4340 = vcmp.lt.s32.totalorder %v4338, %v4339
  %v4341 = vsel %vm4340, %v4338, %v4339
  %v4342 = vsel %vm2551, %v4314, 2147483647
  %v4343 = vrot.slane %v4342, 4
  %vm4344 = vcmp.lt.s32.totalorder %v4342, %v4343
  %v4345 = vsel %vm4344, %v4342, %v4343
  %v4346 = vrot.slane %v4345, 2
  %vm4347 = vcmp.lt.s32.totalorder %v4345, %v4346
  %v4348 = vsel %vm4347, %v4345, %v4346
  %v4349 = vrot.slane %v4348, 1
  %vm4350 = vcmp.lt.s32.totalorder %v4348, %v4349
  %v4351 = vsel %vm4350, %v4348, %v4349
  %v4352 = vsel %vm2551, %v4315, 2147483647
  %v4353 = vrot.slane %v4352, 4
  %vm4354 = vcmp.lt.s32.totalorder %v4352, %v4353
  %v4355 = vsel %vm4354, %v4352, %v4353
  %v4356 = vrot.slane %v4355, 2
  %vm4357 = vcmp.lt.s32.totalorder %v4355, %v4356
  %v4358 = vsel %vm4357, %v4355, %v4356
  %v4359 = vrot.slane %v4358, 1
  %vm4360 = vcmp.lt.s32.totalorder %v4358, %v4359
  %v4361 = vsel %vm4360, %v4358, %v4359
  %v4362 = vsel %vm2551, %v4316, 2147483647
  %v4363 = vrot.slane %v4362, 4
  %vm4364 = vcmp.lt.s32.totalorder %v4362, %v4363
  %v4365 = vsel %vm4364, %v4362, %v4363
  %v4366 = vrot.slane %v4365, 2
  %vm4367 = vcmp.lt.s32.totalorder %v4365, %v4366
  %v4368 = vsel %vm4367, %v4365, %v4366
  %v4369 = vrot.slane %v4368, 1
  %vm4370 = vcmp.lt.s32.totalorder %v4368, %v4369
  %v4371 = vsel %vm4370, %v4368, %v4369
  %v4372 = vsel %vm2551, %v4317, 2147483647
  %v4373 = vrot.slane %v4372, 4
  %vm4374 = vcmp.lt.s32.totalorder %v4372, %v4373
  %v4375 = vsel %vm4374, %v4372, %v4373
  %v4376 = vrot.slane %v4375, 2
  %vm4377 = vcmp.lt.s32.totalorder %v4375, %v4376
  %v4378 = vsel %vm4377, %v4375, %v4376
  %v4379 = vrot.slane %v4378, 1
  %vm4380 = vcmp.lt.s32.totalorder %v4378, %v4379
  %v4381 = vsel %vm4380, %v4378, %v4379
  %v4382 = vsel %vm2551, %v4318, 2147483647
  %v4383 = vrot.slane %v4382, 4
  %vm4384 = vcmp.lt.s32.totalorder %v4382, %v4383
  %v4385 = vsel %vm4384, %v4382, %v4383
  %v4386 = vrot.slane %v4385, 2
  %vm4387 = vcmp.lt.s32.totalorder %v4385, %v4386
  %v4388 = vsel %vm4387, %v4385, %v4386
  %v4389 = vrot.slane %v4388, 1
  %vm4390 = vcmp.lt.s32.totalorder %v4388, %v4389
  %v4391 = vsel %vm4390, %v4388, %v4389
  %v4392 = vsel %vm2551, %v4319, 2147483647
  %v4393 = vrot.slane %v4392, 4
  %vm4394 = vcmp.lt.s32.totalorder %v4392, %v4393
  %v4395 = vsel %vm4394, %v4392, %v4393
  %v4396 = vrot.slane %v4395, 2
  %vm4397 = vcmp.lt.s32.totalorder %v4395, %v4396
  %v4398 = vsel %vm4397, %v4395, %v4396
  %v4399 = vrot.slane %v4398, 1
  %vm4400 = vcmp.lt.s32.totalorder %v4398, %v4399
  %v4401 = vsel %vm4400, %v4398, %v4399
  %v4402 = vsel %vm2551, %v4320, 2147483647
  %v4403 = vrot.slane %v4402, 4
  %vm4404 = vcmp.lt.s32.totalorder %v4402, %v4403
  %v4405 = vsel %vm4404, %v4402, %v4403
  %v4406 = vrot.slane %v4405, 2
  %vm4407 = vcmp.lt.s32.totalorder %v4405, %v4406
  %v4408 = vsel %vm4407, %v4405, %v4406
  %v4409 = vrot.slane %v4408, 1
  %vm4410 = vcmp.lt.s32.totalorder %v4408, %v4409
  %v4411 = vsel %vm4410, %v4408, %v4409
  %v4412 = vsel %vm2551, %v4321, 2147483647
  %v4413 = vrot.slane %v4412, 4
  %vm4414 = vcmp.lt.s32.totalorder %v4412, %v4413
  %v4415 = vsel %vm4414, %v4412, %v4413
  %v4416 = vrot.slane %v4415, 2
  %vm4417 = vcmp.lt.s32.totalorder %v4415, %v4416
  %v4418 = vsel %vm4417, %v4415, %v4416
  %v4419 = vrot.slane %v4418, 1
  %vm4420 = vcmp.lt.s32.totalorder %v4418, %v4419
  %v4421 = vsel %vm4420, %v4418, %v4419
  %v4422 = vadd.f32 %v4238, %v2364
  %v4423 = vadd.f32 %v4245, %v2369
  %v4424 = vadd.f32 %v4252, %v2374
  %v4425 = vadd.f32 %v4259, %v2379
  %v4426 = vadd.f32 %v4266, %v2384
  %v4427 = vadd.f32 %v4273, %v2389
  %v4428 = vadd.f32 %v4280, %v2394
  %v4429 = vadd.f32 %v4287, %v2399
  %v4430 = vadd.f32 %v4294, %v2404
  %v4431 = vadd.f32 %v4301, %v2409
  %v4432 = vld [vmem:[%s9] sm:$0x1]
  %v4434 = vlaneseq
  %v4435 = vshrl.u32 %v4434, 7
  %v4436 = vsub.s32 0, %v4435
  %v4437 = vrot.slane %v4432, %v4436
  %v4439 = vadd.f32 %v4422, %v4437
  %v4440 = vadd.f32 %v4423, %v4437
  %v4441 = vadd.f32 %v4424, %v4437
  %v4442 = vadd.f32 %v4425, %v4437
  %v4443 = vadd.f32 %v4426, %v4437
  %v4444 = vadd.f32 %v4427, %v4437
  %v4445 = vadd.f32 %v4428, %v4437
  %v4446 = vadd.f32 %v4429, %v4437
  %v4447 = vadd.f32 %v4430, %v4437
  %v4448 = vadd.f32 %v4431, %v4437
  %v4459 = vrot.slane %v4440, 7
  %v4460 = vrot.slane %v4441, 6
  %v4461 = vsel %vm2445, %v4460, %v4459
  %v4462 = vrot.slane %v4442, 5
  %v4463 = vsel %vm2448, %v4462, %v4461
  %v4464 = vrot.slane %v4443, 4
  %v4465 = vsel %vm2451, %v4464, %v4463
  %v4466 = vrot.slane %v4444, 3
  %v4467 = vsel %vm2454, %v4466, %v4465
  %v4468 = vrot.slane %v4445, 2
  %v4469 = vsel %vm2457, %v4468, %v4467
  %v4470 = vrot.slane %v4446, 1
  %v4471 = vsel %vm2460, %v4470, %v4469
  %v4472 = vsel %vm2463, %v4447, %v4471
  %v4473 = vrot.slane %v4448, 7
  %vm4477 = vcmask 39943
  %v4478 = vsel %vm4477, %v4439, -inf
  %4479 = vmax.xlane.f32.xlu0 %v4478
  %v4480 = vpop.xlane.xlu0 %4479
  %vm4481 = vcmask 39936
  %v4482 = vsel %vm4481, %v4472, -inf
  %4483 = vmax.xlane.f32.xlu0 %v4482
  %v4484 = vpop.xlane.xlu0 %4483
  %vm4485 = vcmask 32768
  %v4486 = vsel %vm4485, %v4473, -inf
  %4487 = vmax.xlane.f32.xlu0 %v4486
  %v4488 = vpop.xlane.xlu0 %4487
  %v4492 = vrot.slane %v4484, 1
  %v4493 = vrot.slane %v4484, 2
  %v4494 = vrot.slane %v4484, 3
  %v4495 = vrot.slane %v4484, 4
  %v4496 = vrot.slane %v4484, 5
  %v4497 = vrot.slane %v4484, 6
  %v4498 = vrot.slane %v4484, 7
  %v4499 = vrot.slane %v4488, 1
  %vm4510 = vcmp.eq.f32.partialorder %v4439, %v4480
  %vm4511 = vcmp.eq.f32.partialorder %v4440, %v4492
  %vm4512 = vcmp.eq.f32.partialorder %v4441, %v4493
  %vm4513 = vcmp.eq.f32.partialorder %v4442, %v4494
  %vm4514 = vcmp.eq.f32.partialorder %v4443, %v4495
  %vm4515 = vcmp.eq.f32.partialorder %v4444, %v4496
  %vm4516 = vcmp.eq.f32.partialorder %v4445, %v4497
  %vm4517 = vcmp.eq.f32.partialorder %v4446, %v4498
  %vm4518 = vcmp.eq.f32.partialorder %v4447, %v4484
  %vm4519 = vcmp.eq.f32.partialorder %v4448, %v4499
  %v4520 = vsel %vm4510, %v2426, 5
  %v4521 = vsel %vm4511, %v2426, 5
  %v4522 = vsel %vm4512, %v2426, 5
  %v4523 = vsel %vm4513, %v2426, 5
  %v4524 = vsel %vm4514, %v2426, 5
  %v4525 = vsel %vm4515, %v2426, 5
  %v4526 = vsel %vm4516, %v2426, 5
  %v4527 = vsel %vm4517, %v2426, 5
  %v4528 = vsel %vm4518, %v2426, 5
  %v4529 = vsel %vm4519, %v2426, 5
  %v4530 = vrot.slane %v4521, 7
  %v4531 = vrot.slane %v4522, 6
  %v4532 = vsel %vm2445, %v4531, %v4530
  %v4533 = vrot.slane %v4523, 5
  %v4534 = vsel %vm2448, %v4533, %v4532
  %v4535 = vrot.slane %v4524, 4
  %v4536 = vsel %vm2451, %v4535, %v4534
  %v4537 = vrot.slane %v4525, 3
  %v4538 = vsel %vm2454, %v4537, %v4536
  %v4539 = vrot.slane %v4526, 2
  %v4540 = vsel %vm2457, %v4539, %v4538
  %v4541 = vrot.slane %v4527, 1
  %v4542 = vsel %vm2460, %v4541, %v4540
  %v4543 = vsel %vm2463, %v4528, %v4542
  %v4544 = vrot.slane %v4529, 7
  %v4545 = vsel %vm4477, %v4520, 2147483647
  %v4546 = vand.u32 %v4545, 65535
  %v4547 = vshra.s32 %v4545, 16
  %v4548 = vcvt.s32.f32 %v4546
  %v4549 = vcvt.s32.f32 %v4547
  %4550 = vmin.xlane.f32.xlu0 %v4549
  %v4551 = vpop.xlane.xlu0 %4550
  %vm4552 = vcmp.eq.f32.partialorder %v4549, %v4551
  %v4553 = vsel %vm4552, %v4548, inf
  %4554 = vmin.xlane.f32.xlu0 %v4553
  %v4555 = vpop.xlane.xlu0 %4554
  %v4556 = vcvt.f32.s32 %v4555
  %v4557 = vcvt.f32.s32 %v4551
  %v4558 = vshll.u32 %v4557, 16
  %v4559 = vadd.s32 %v4558, %v4556
  %v4560 = vsel %vm4481, %v4543, 2147483647
  %v4561 = vand.u32 %v4560, 65535
  %v4562 = vshra.s32 %v4560, 16
  %v4563 = vcvt.s32.f32 %v4561
  %v4564 = vcvt.s32.f32 %v4562
  %4565 = vmin.xlane.f32.xlu0 %v4564
  %v4566 = vpop.xlane.xlu0 %4565
  %vm4567 = vcmp.eq.f32.partialorder %v4564, %v4566
  %v4568 = vsel %vm4567, %v4563, inf
  %4569 = vmin.xlane.f32.xlu0 %v4568
  %v4570 = vpop.xlane.xlu0 %4569
  %v4571 = vcvt.f32.s32 %v4570
  %v4572 = vcvt.f32.s32 %v4566
  %v4573 = vshll.u32 %v4572, 16
  %v4574 = vadd.s32 %v4573, %v4571
  %v4575 = vsel %vm4485, %v4544, 2147483647
  %v4576 = vand.u32 %v4575, 65535
  %v4577 = vshra.s32 %v4575, 16
  %v4578 = vcvt.s32.f32 %v4576
  %v4579 = vcvt.s32.f32 %v4577
  %4580 = vmin.xlane.f32.xlu0 %v4579
  %v4581 = vpop.xlane.xlu0 %4580
  %vm4582 = vcmp.eq.f32.partialorder %v4579, %v4581
  %v4583 = vsel %vm4582, %v4578, inf
  %4584 = vmin.xlane.f32.xlu0 %v4583
  %v4585 = vpop.xlane.xlu0 %4584
  %v4586 = vcvt.f32.s32 %v4585
  %v4587 = vcvt.f32.s32 %v4581
  %v4588 = vshll.u32 %v4587, 16
  %v4589 = vadd.s32 %v4588, %v4586
  %vm4590 = vcmp.eq.s32.totalorder %v2426, %v4559
  %vm4591 = vcmp.eq.s32.totalorder %v2426, %v4574
  %vm4592 = vcmp.eq.s32.totalorder %v2426, %v4589
  %v4593 = vsel %vm2445, %v4351, %v4341
  %v4594 = vsel %vm2448, %v4361, %v4593
  %v4595 = vsel %vm2451, %v4371, %v4594
  %v4596 = vsel %vm2454, %v4381, %v4595
  %v4597 = vsel %vm2457, %v4391, %v4596
  %v4598 = vsel %vm2460, %v4401, %v4597
  %v4599 = vsel %vm2463, %v4411, %v4598
  %v4600 = vsel %vm4590, %v4331, 0
  %v4601 = vsel %vm4591, %v4599, 0
  %v4602 = vsel %vm4592, %v4421, 0
  %v4603 = vsel %vm4477, %v4600, 0
  %v4604 = vand.u32 %v4603, 65535
  %v4605 = vshrl.u32 %v4603, 16
  %v4606 = vcvt.s32.f32 %v4604
  %v4607 = vcvt.s32.f32 %v4605
  %4608 = vadd.xlane.f32.xlu0 %v4606
  %v4609 = vpop.xlane.xlu0 %4608
  %4610 = vadd.xlane.f32.xlu0 %v4607
  %v4611 = vpop.xlane.xlu0 %4610
  %v4612 = vcvt.f32.s32 %v4609
  %v4613 = vcvt.f32.s32 %v4611
  %v4614 = vshll.u32 %v4613, 16
  %v4615 = vadd.s32 %v4614, %v4612
  %v4616 = vsel %vm4481, %v4601, 0
  %v4617 = vand.u32 %v4616, 65535
  %v4618 = vshrl.u32 %v4616, 16
  %v4619 = vcvt.s32.f32 %v4617
  %v4620 = vcvt.s32.f32 %v4618
  %4621 = vadd.xlane.f32.xlu0 %v4619
  %v4622 = vpop.xlane.xlu0 %4621
  %4623 = vadd.xlane.f32.xlu0 %v4620
  %v4624 = vpop.xlane.xlu0 %4623
  %v4625 = vcvt.f32.s32 %v4622
  %v4626 = vcvt.f32.s32 %v4624
  %v4627 = vshll.u32 %v4626, 16
  %v4628 = vadd.s32 %v4627, %v4625
  %v4629 = vsel %vm4485, %v4602, 0
  %v4630 = vand.u32 %v4629, 65535
  %v4631 = vshrl.u32 %v4629, 16
  %v4632 = vcvt.s32.f32 %v4630
  %v4633 = vcvt.s32.f32 %v4631
  %4634 = vadd.xlane.f32.xlu0 %v4632
  %v4635 = vpop.xlane.xlu0 %4634
  %4636 = vadd.xlane.f32.xlu0 %v4633
  %v4637 = vpop.xlane.xlu0 %4636
  %v4638 = vcvt.f32.s32 %v4635
  %v4639 = vcvt.f32.s32 %v4637
  %v4640 = vshll.u32 %v4639, 16
  %v4641 = vadd.s32 %v4640, %v4638
  %vm4642 = vcmp.eq.s32.totalorder %v2426, %v4615
  %vm4643 = vcmp.eq.s32.totalorder %v2426, %v4628
  %vm4644 = vcmp.eq.s32.totalorder %v2426, %v4641
  %v4645 = vsel %vm2445, %v4071, %v4061
  %v4646 = vsel %vm2448, %v4081, %v4645
  %v4647 = vsel %vm2451, %v4091, %v4646
  %v4648 = vsel %vm2454, %v4101, %v4647
  %v4649 = vsel %vm2457, %v4111, %v4648
  %v4650 = vsel %vm2460, %v4121, %v4649
  %v4651 = vsel %vm2463, %v4131, %v4650
  %v4652 = vsel %vm4642, %v4051, 0
  %v4653 = vsel %vm4643, %v4651, 0
  %v4654 = vsel %vm4644, %v4141, 0
  %v4655 = vsel %vm4477, %v4652, 0
  %v4656 = vand.u32 %v4655, 65535
  %v4657 = vshrl.u32 %v4655, 16
  %v4658 = vcvt.s32.f32 %v4656
  %v4659 = vcvt.s32.f32 %v4657
  %4660 = vadd.xlane.f32.xlu0 %v4658
  %v4661 = vpop.xlane.xlu0 %4660
  %4662 = vadd.xlane.f32.xlu0 %v4659
  %v4663 = vpop.xlane.xlu0 %4662
  %v4664 = vcvt.f32.s32 %v4661
  %v4665 = vcvt.f32.s32 %v4663
  %v4666 = vshll.u32 %v4665, 16
  %v4667 = vadd.s32 %v4666, %v4664
  %v4668 = vsel %vm4481, %v4653, 0
  %v4669 = vand.u32 %v4668, 65535
  %v4670 = vshrl.u32 %v4668, 16
  %v4671 = vcvt.s32.f32 %v4669
  %v4672 = vcvt.s32.f32 %v4670
  %4673 = vadd.xlane.f32.xlu0 %v4671
  %v4674 = vpop.xlane.xlu0 %4673
  %4675 = vadd.xlane.f32.xlu0 %v4672
  %v4676 = vpop.xlane.xlu0 %4675
  %v4677 = vcvt.f32.s32 %v4674
  %v4678 = vcvt.f32.s32 %v4676
  %v4679 = vshll.u32 %v4678, 16
  %v4680 = vadd.s32 %v4679, %v4677
  %v4681 = vsel %vm4485, %v4654, 0
  %v4682 = vand.u32 %v4681, 65535
  %v4683 = vshrl.u32 %v4681, 16
  %v4684 = vcvt.s32.f32 %v4682
  %v4685 = vcvt.s32.f32 %v4683
  %4686 = vadd.xlane.f32.xlu0 %v4684
  %v4687 = vpop.xlane.xlu0 %4686
  %4688 = vadd.xlane.f32.xlu0 %v4685
  %v4689 = vpop.xlane.xlu0 %4688
  %v4690 = vcvt.f32.s32 %v4687
  %v4691 = vcvt.f32.s32 %v4689
  %v4692 = vshll.u32 %v4691, 16
  %v4693 = vadd.s32 %v4692, %v4690
  %vm4694 = vcmp.eq.s32.totalorder %v2426, %v4667
  %vm4695 = vcmp.eq.s32.totalorder %v2426, %v4680
  %vm4696 = vcmp.eq.s32.totalorder %v2426, %v4693
  %v4697 = vsel %vm2445, %v3791, %v3781
  %v4698 = vsel %vm2448, %v3801, %v4697
  %v4699 = vsel %vm2451, %v3811, %v4698
  %v4700 = vsel %vm2454, %v3821, %v4699
  %v4701 = vsel %vm2457, %v3831, %v4700
  %v4702 = vsel %vm2460, %v3841, %v4701
  %v4703 = vsel %vm2463, %v3851, %v4702
  %v4704 = vsel %vm4694, %v3771, 0
  %v4705 = vsel %vm4695, %v4703, 0
  %v4706 = vsel %vm4696, %v3861, 0
  %v4707 = vsel %vm4477, %v4704, 0
  %v4708 = vand.u32 %v4707, 65535
  %v4709 = vshrl.u32 %v4707, 16
  %v4710 = vcvt.s32.f32 %v4708
  %v4711 = vcvt.s32.f32 %v4709
  %4712 = vadd.xlane.f32.xlu0 %v4710
  %v4713 = vpop.xlane.xlu0 %4712
  %4714 = vadd.xlane.f32.xlu0 %v4711
  %v4715 = vpop.xlane.xlu0 %4714
  %v4716 = vcvt.f32.s32 %v4713
  %v4717 = vcvt.f32.s32 %v4715
  %v4718 = vshll.u32 %v4717, 16
  %v4719 = vadd.s32 %v4718, %v4716
  %v4720 = vsel %vm4481, %v4705, 0
  %v4721 = vand.u32 %v4720, 65535
  %v4722 = vshrl.u32 %v4720, 16
  %v4723 = vcvt.s32.f32 %v4721
  %v4724 = vcvt.s32.f32 %v4722
  %4725 = vadd.xlane.f32.xlu0 %v4723
  %v4726 = vpop.xlane.xlu0 %4725
  %4727 = vadd.xlane.f32.xlu0 %v4724
  %v4728 = vpop.xlane.xlu0 %4727
  %v4729 = vcvt.f32.s32 %v4726
  %v4730 = vcvt.f32.s32 %v4728
  %v4731 = vshll.u32 %v4730, 16
  %v4732 = vadd.s32 %v4731, %v4729
  %v4733 = vsel %vm4485, %v4706, 0
  %v4734 = vand.u32 %v4733, 65535
  %v4735 = vshrl.u32 %v4733, 16
  %v4736 = vcvt.s32.f32 %v4734
  %v4737 = vcvt.s32.f32 %v4735
  %4738 = vadd.xlane.f32.xlu0 %v4736
  %v4739 = vpop.xlane.xlu0 %4738
  %4740 = vadd.xlane.f32.xlu0 %v4737
  %v4741 = vpop.xlane.xlu0 %4740
  %v4742 = vcvt.f32.s32 %v4739
  %v4743 = vcvt.f32.s32 %v4741
  %v4744 = vshll.u32 %v4743, 16
  %v4745 = vadd.s32 %v4744, %v4742
  %vm4746 = vcmp.eq.s32.totalorder %v2426, %v4719
  %vm4747 = vcmp.eq.s32.totalorder %v2426, %v4732
  %vm4748 = vcmp.eq.s32.totalorder %v2426, %v4745
  %v4749 = vsel %vm2445, %v3511, %v3501
  %v4750 = vsel %vm2448, %v3521, %v4749
  %v4751 = vsel %vm2451, %v3531, %v4750
  %v4752 = vsel %vm2454, %v3541, %v4751
  %v4753 = vsel %vm2457, %v3551, %v4752
  %v4754 = vsel %vm2460, %v3561, %v4753
  %v4755 = vsel %vm2463, %v3571, %v4754
  %v4756 = vsel %vm4746, %v3491, 0
  %v4757 = vsel %vm4747, %v4755, 0
  %v4758 = vsel %vm4748, %v3581, 0
  %v4759 = vsel %vm4477, %v4756, 0
  %v4760 = vand.u32 %v4759, 65535
  %v4761 = vshrl.u32 %v4759, 16
  %v4762 = vcvt.s32.f32 %v4760
  %v4763 = vcvt.s32.f32 %v4761
  %4764 = vadd.xlane.f32.xlu0 %v4762
  %v4765 = vpop.xlane.xlu0 %4764
  %4766 = vadd.xlane.f32.xlu0 %v4763
  %v4767 = vpop.xlane.xlu0 %4766
  %v4768 = vcvt.f32.s32 %v4765
  %v4769 = vcvt.f32.s32 %v4767
  %v4770 = vshll.u32 %v4769, 16
  %v4771 = vadd.s32 %v4770, %v4768
  %v4772 = vsel %vm4481, %v4757, 0
  %v4773 = vand.u32 %v4772, 65535
  %v4774 = vshrl.u32 %v4772, 16
  %v4775 = vcvt.s32.f32 %v4773
  %v4776 = vcvt.s32.f32 %v4774
  %4777 = vadd.xlane.f32.xlu0 %v4775
  %v4778 = vpop.xlane.xlu0 %4777
  %4779 = vadd.xlane.f32.xlu0 %v4776
  %v4780 = vpop.xlane.xlu0 %4779
  %v4781 = vcvt.f32.s32 %v4778
  %v4782 = vcvt.f32.s32 %v4780
  %v4783 = vshll.u32 %v4782, 16
  %v4784 = vadd.s32 %v4783, %v4781
  %v4785 = vsel %vm4485, %v4758, 0
  %v4786 = vand.u32 %v4785, 65535
  %v4787 = vshrl.u32 %v4785, 16
  %v4788 = vcvt.s32.f32 %v4786
  %v4789 = vcvt.s32.f32 %v4787
  %4790 = vadd.xlane.f32.xlu0 %v4788
  %v4791 = vpop.xlane.xlu0 %4790
  %4792 = vadd.xlane.f32.xlu0 %v4789
  %v4793 = vpop.xlane.xlu0 %4792
  %v4794 = vcvt.f32.s32 %v4791
  %v4795 = vcvt.f32.s32 %v4793
  %v4796 = vshll.u32 %v4795, 16
  %v4797 = vadd.s32 %v4796, %v4794
  %vm4798 = vcmp.eq.s32.totalorder %v2426, %v4771
  %vm4799 = vcmp.eq.s32.totalorder %v2426, %v4784
  %vm4800 = vcmp.eq.s32.totalorder %v2426, %v4797
  %v4801 = vsel %vm2445, %v3231, %v3221
  %v4802 = vsel %vm2448, %v3241, %v4801
  %v4803 = vsel %vm2451, %v3251, %v4802
  %v4804 = vsel %vm2454, %v3261, %v4803
  %v4805 = vsel %vm2457, %v3271, %v4804
  %v4806 = vsel %vm2460, %v3281, %v4805
  %v4807 = vsel %vm2463, %v3291, %v4806
  %v4808 = vsel %vm4798, %v3211, 0
  %v4809 = vsel %vm4799, %v4807, 0
  %v4810 = vsel %vm4800, %v3301, 0
  %v4811 = vsel %vm4477, %v4808, 0
  %v4812 = vand.u32 %v4811, 65535
  %v4813 = vshrl.u32 %v4811, 16
  %v4814 = vcvt.s32.f32 %v4812
  %v4815 = vcvt.s32.f32 %v4813
  %4816 = vadd.xlane.f32.xlu0 %v4814
  %v4817 = vpop.xlane.xlu0 %4816
  %4818 = vadd.xlane.f32.xlu0 %v4815
  %v4819 = vpop.xlane.xlu0 %4818
  %v4820 = vcvt.f32.s32 %v4817
  %v4821 = vcvt.f32.s32 %v4819
  %v4822 = vshll.u32 %v4821, 16
  %v4823 = vadd.s32 %v4822, %v4820
  %v4824 = vsel %vm4481, %v4809, 0
  %v4825 = vand.u32 %v4824, 65535
  %v4826 = vshrl.u32 %v4824, 16
  %v4827 = vcvt.s32.f32 %v4825
  %v4828 = vcvt.s32.f32 %v4826
  %4829 = vadd.xlane.f32.xlu0 %v4827
  %v4830 = vpop.xlane.xlu0 %4829
  %4831 = vadd.xlane.f32.xlu0 %v4828
  %v4832 = vpop.xlane.xlu0 %4831
  %v4833 = vcvt.f32.s32 %v4830
  %v4834 = vcvt.f32.s32 %v4832
  %v4835 = vshll.u32 %v4834, 16
  %v4836 = vadd.s32 %v4835, %v4833
  %v4837 = vsel %vm4485, %v4810, 0
  %v4838 = vand.u32 %v4837, 65535
  %v4839 = vshrl.u32 %v4837, 16
  %v4840 = vcvt.s32.f32 %v4838
  %v4841 = vcvt.s32.f32 %v4839
  %4842 = vadd.xlane.f32.xlu0 %v4840
  %v4843 = vpop.xlane.xlu0 %4842
  %4844 = vadd.xlane.f32.xlu0 %v4841
  %v4845 = vpop.xlane.xlu0 %4844
  %v4846 = vcvt.f32.s32 %v4843
  %v4847 = vcvt.f32.s32 %v4845
  %v4848 = vshll.u32 %v4847, 16
  %v4849 = vadd.s32 %v4848, %v4846
  %vm4850 = vcmp.eq.s32.totalorder %v2426, %v4823
  %vm4851 = vcmp.eq.s32.totalorder %v2426, %v4836
  %vm4852 = vcmp.eq.s32.totalorder %v2426, %v4849
  %v4853 = vsel %vm2445, %v2951, %v2941
  %v4854 = vsel %vm2448, %v2961, %v4853
  %v4855 = vsel %vm2451, %v2971, %v4854
  %v4856 = vsel %vm2454, %v2981, %v4855
  %v4857 = vsel %vm2457, %v2991, %v4856
  %v4858 = vsel %vm2460, %v3001, %v4857
  %v4859 = vsel %vm2463, %v3011, %v4858
  %v4860 = vsel %vm4850, %v2931, 0
  %v4861 = vsel %vm4851, %v4859, 0
  %v4862 = vsel %vm4852, %v3021, 0
  %v4863 = vsel %vm4477, %v4860, 0
  %v4864 = vand.u32 %v4863, 65535
  %v4865 = vshrl.u32 %v4863, 16
  %v4866 = vcvt.s32.f32 %v4864
  %v4867 = vcvt.s32.f32 %v4865
  %4868 = vadd.xlane.f32.xlu0 %v4866
  %v4869 = vpop.xlane.xlu0 %4868
  %4870 = vadd.xlane.f32.xlu0 %v4867
  %v4871 = vpop.xlane.xlu0 %4870
  %v4872 = vcvt.f32.s32 %v4869
  %v4873 = vcvt.f32.s32 %v4871
  %v4874 = vshll.u32 %v4873, 16
  %v4875 = vadd.s32 %v4874, %v4872
  %v4876 = vsel %vm4481, %v4861, 0
  %v4877 = vand.u32 %v4876, 65535
  %v4878 = vshrl.u32 %v4876, 16
  %v4879 = vcvt.s32.f32 %v4877
  %v4880 = vcvt.s32.f32 %v4878
  %4881 = vadd.xlane.f32.xlu0 %v4879
  %v4882 = vpop.xlane.xlu0 %4881
  %4883 = vadd.xlane.f32.xlu0 %v4880
  %v4884 = vpop.xlane.xlu0 %4883
  %v4885 = vcvt.f32.s32 %v4882
  %v4886 = vcvt.f32.s32 %v4884
  %v4887 = vshll.u32 %v4886, 16
  %v4888 = vadd.s32 %v4887, %v4885
  %v4889 = vsel %vm4485, %v4862, 0
  %v4890 = vand.u32 %v4889, 65535
  %v4891 = vshrl.u32 %v4889, 16
  %v4892 = vcvt.s32.f32 %v4890
  %v4893 = vcvt.s32.f32 %v4891
  %4894 = vadd.xlane.f32.xlu0 %v4892
  %v4895 = vpop.xlane.xlu0 %4894
  %4896 = vadd.xlane.f32.xlu0 %v4893
  %v4897 = vpop.xlane.xlu0 %4896
  %v4898 = vcvt.f32.s32 %v4895
  %v4899 = vcvt.f32.s32 %v4897
  %v4900 = vshll.u32 %v4899, 16
  %v4901 = vadd.s32 %v4900, %v4898
  %vm4902 = vcmp.eq.s32.totalorder %v2426, %v4875
  %vm4903 = vcmp.eq.s32.totalorder %v2426, %v4888
  %vm4904 = vcmp.eq.s32.totalorder %v2426, %v4901
  %v4905 = vsel %vm2445, %v2671, %v2661
  %v4906 = vsel %vm2448, %v2681, %v4905
  %v4907 = vsel %vm2451, %v2691, %v4906
  %v4908 = vsel %vm2454, %v2701, %v4907
  %v4909 = vsel %vm2457, %v2711, %v4908
  %v4910 = vsel %vm2460, %v2721, %v4909
  %v4911 = vsel %vm2463, %v2731, %v4910
  %v4912 = vsel %vm4902, %v2651, 0
  %v4913 = vsel %vm4903, %v4911, 0
  %v4914 = vsel %vm4904, %v2741, 0
  %v4915 = vsel %vm4477, %v4912, 0
  %v4916 = vand.u32 %v4915, 65535
  %v4917 = vshrl.u32 %v4915, 16
  %v4918 = vcvt.s32.f32 %v4916
  %v4919 = vcvt.s32.f32 %v4917
  %4920 = vadd.xlane.f32.xlu0 %v4918
  %v4921 = vpop.xlane.xlu0 %4920
  %4922 = vadd.xlane.f32.xlu0 %v4919
  %v4923 = vpop.xlane.xlu0 %4922
  %v4924 = vcvt.f32.s32 %v4921
  %v4925 = vcvt.f32.s32 %v4923
  %v4926 = vshll.u32 %v4925, 16
  %v4927 = vadd.s32 %v4926, %v4924
  %v4928 = vsel %vm4481, %v4913, 0
  %v4929 = vand.u32 %v4928, 65535
  %v4930 = vshrl.u32 %v4928, 16
  %v4931 = vcvt.s32.f32 %v4929
  %v4932 = vcvt.s32.f32 %v4930
  %4933 = vadd.xlane.f32.xlu0 %v4931
  %v4934 = vpop.xlane.xlu0 %4933
  %4935 = vadd.xlane.f32.xlu0 %v4932
  %v4936 = vpop.xlane.xlu0 %4935
  %v4937 = vcvt.f32.s32 %v4934
  %v4938 = vcvt.f32.s32 %v4936
  %v4939 = vshll.u32 %v4938, 16
  %v4940 = vadd.s32 %v4939, %v4937
  %v4941 = vsel %vm4485, %v4914, 0
  %v4942 = vand.u32 %v4941, 65535
  %v4943 = vshrl.u32 %v4941, 16
  %v4944 = vcvt.s32.f32 %v4942
  %v4945 = vcvt.s32.f32 %v4943
  %4946 = vadd.xlane.f32.xlu0 %v4944
  %v4947 = vpop.xlane.xlu0 %4946
  %4948 = vadd.xlane.f32.xlu0 %v4945
  %v4949 = vpop.xlane.xlu0 %4948
  %v4950 = vcvt.f32.s32 %v4947
  %v4951 = vcvt.f32.s32 %v4949
  %v4952 = vshll.u32 %v4951, 16
  %v4953 = vadd.s32 %v4952, %v4950
  %vm4954 = vcmask 7168
  %v4955 = vsel %vm4954, %v4927, %v4875
  %v4956 = vsel %vm4954, %v4940, %v4888
  %v4957 = vsel %vm4954, %v4953, %v4901
  %vm4958 = vcmask 15360
  %v4959 = vsel %vm4958, %v4955, %v4823
  %v4960 = vsel %vm4958, %v4956, %v4836
  %v4961 = vsel %vm4958, %v4957, %v4849
  %vm4962 = vcmask 23552
  %v4963 = vsel %vm4962, %v4959, %v4771
  %v4964 = vsel %vm4962, %v4960, %v4784
  %v4965 = vsel %vm4962, %v4961, %v4797
  %vm4966 = vcmask 31744
  %v4967 = vsel %vm4966, %v4963, %v4719
  %v4968 = vsel %vm4966, %v4964, %v4732
  %v4969 = vsel %vm4966, %v4965, %v4745
  %v4970 = vsel %vm4481, %v4967, %v4667
  %v4971 = vsel %vm4481, %v4968, %v4680
  %v4972 = vsel %vm4481, %v4969, %v4693
  %vm4973 = vcmask 48128
  %v4974 = vsel %vm4973, %v4970, %v4615
  %v4975 = vsel %vm4973, %v4971, %v4628
  %v4976 = vsel %vm4973, %v4972, %v4641
  %vm4977 = vcmask 56320
  %v4978 = vsel %vm4977, %v4974, %v4559
  %v4979 = vsel %vm4977, %v4975, %v4574
  %v4980 = vsel %vm4977, %v4976, %v4589
  %vm4981 = vcmask 64519
  %4982 = vst.msk [vmem:[%s10 - $0x7] sm:$0x80] %vm4981, %v4978
  %vm4983 = vcmask 64512
  %4984 = vst.msk [vmem:[%s10 + $0x1] sm:$0xff] %vm4983, %v4979
  %vm4985 = vcmask 57344
  %4986 = vst.msk [vmem:[%s10 + $0x9] sm:$0x1] %vm4985, %v4980
  // Predicated region
  $region42: #{_pooler_pallas.1} parent=0 // pred_check
    _
  $region43: #{_pooler_pallas.1} parent=0 // pred_check_branch
    %4988 = sbr.rel (0) target = $region45
  $region44: #{_pooler_pallas.1} parent=0 // pred_region
    _
  $region45: #{_pooler_pallas.1} parent=0 // pred_fallthru
    _
  // Predicated region
  $region46: #{_pooler_pallas.1} parent=0 // pred_check
    _
  $region47: #{_pooler_pallas.1} parent=0 // pred_check_branch
    %4990 = sbr.rel (0) target = $region49
  $region48: #{_pooler_pallas.1} parent=0 // pred_region
    _
  $region49: #{_pooler_pallas.1} parent=0 // pred_fallthru
    _
  // Predicated region
  $region50: #{_pooler_pallas.1} parent=0 // pred_check
    _
  $region51: #{_pooler_pallas.1} parent=0 // pred_check_branch
    %4992 = sbr.rel (0) target = $region53
  $region52: #{_pooler_pallas.1} parent=0 // pred_region
    _
  $region53: #{_pooler_pallas.1} parent=0 // pred_fallthru
    _
  // Predicated region
  $region54: #{_pooler_pallas.1} parent=0 // pred_check
    _
  $region55: #{_pooler_pallas.1} parent=0 // pred_check_branch
    %4994 = sbr.rel (0) target = $region57
  $region56: #{_pooler_pallas.1} parent=0 // pred_region
    _
  $region57: #{_pooler_pallas.1} parent=0 // pred_fallthru
    _

</llo_original>
